<compile_context>
chip_gen: v7x
topology: tpu7x:2x2x1
jax: 0.10.0
libtpu: 0.0.40
codegen_flags: <defaults>
</compile_context>

<pallas_src>
import numpy as np

import jax
import jax.numpy as jnp
from jax.experimental import pallas as pl
from jax.experimental.pallas import tpu as pltpu


# ---------------------------------------------------------------------------
# Bilinear (align_corners=True) interpolation matrices, built in numpy (static).
# ---------------------------------------------------------------------------
def _bilinear_matrix_np(out_len, in_len):
    if in_len == 1:
        return np.ones((out_len, 1), np.float32)
    if out_len == 1:
        m = np.zeros((1, in_len), np.float32)
        m[0, 0] = 1.0
        return m
    pos = np.arange(out_len, dtype=np.float64) * ((in_len - 1) / (out_len - 1))
    lo = np.clip(np.floor(pos).astype(np.int64), 0, in_len - 1)
    hi = np.clip(lo + 1, 0, in_len - 1)
    frac = (pos - lo).astype(np.float32)
    m = np.zeros((out_len, in_len), np.float32)
    m[np.arange(out_len), lo] += 1.0 - frac
    m[np.arange(out_len), hi] += frac
    return m


def _resize_pad_flatten(x_nchw, out_h, out_w):
    """NCHW -> resized, zero-bordered, lane-flattened bf16 (N, out_h+2, (out_w+2)*C).

    The conv's zero padding is folded into the interpolation matrices (zero first/last
    rows), the NCHW->NHWC transpose is folded into the first einsum, and the bf16 cast
    is fused into the second einsum's output -> no separate pad / transpose / cast
    HBM round trips.
    """
    n, c, hin, win = x_nchw.shape
    ryp = jnp.asarray(np.pad(_bilinear_matrix_np(out_h, hin), ((1, 1), (0, 0))))
    rxp = jnp.asarray(np.pad(_bilinear_matrix_np(out_w, win), ((1, 1), (0, 0))))
    t = jnp.einsum("oy,ncyx->noxc", ryp, x_nchw)          # row interp + layout change
    t = jnp.einsum("px,noxc->nopc", rxp, t)               # col interp, zero borders
    return t.astype(jnp.bfloat16).reshape(n, out_h + 2, (out_w + 2) * c)


def bilinear_resize_nhwc(x, out_h, out_w):
    """Plain align_corners=True bilinear resize (used only by the pure-JAX reference)."""
    n, h, w, c = x.shape
    if (h, w) == (out_h, out_w):
        return x
    ry = jnp.asarray(_bilinear_matrix_np(out_h, h))
    rx = jnp.asarray(_bilinear_matrix_np(out_w, w))
    x = jnp.einsum("oy,nyxc->noxc", ry, x)
    x = jnp.einsum("px,noxc->nopc", rx, x)
    return x


# ---------------------------------------------------------------------------
# Banded (block-Toeplitz) weight slabs: one matmul per ky tap with merged K.
#   band[dy][(x, cin), (col, cout)] = w[dy, x - j(col), cin, cout]  (0 <= x-j <= 2)
# pad_output=True also emits zero left/right border columns so the stage-1 output
# already carries its own W-padding for stage 2.
# ---------------------------------------------------------------------------
def _band_weight(w_hwio, width, pad_output):
    cin, cout = int(w_hwio.shape[2]), int(w_hwio.shape[3])
    wp2 = width + 2
    outcols = wp2 if pad_output else width
    sel = np.zeros((wp2, 3, outcols), np.float32)
    for j in range(width):
        col = j + 1 if pad_output else j
        for dx in range(3):
            sel[j + dx, dx, col] = 1.0
    band = jnp.einsum("xdj,edcf->excjf", jnp.asarray(sel), w_hwio)
    return band.reshape(3, wp2 * cin, outcols * cout)


def _vmem_limit_bytes():
    cap = 128 * 1024 * 1024
    try:
        info = pltpu.get_tpu_info()
        cap = int(getattr(info, "vmem_capacity_bytes", cap) or cap)
    except Exception:
        pass
    # ~48 MiB on v7x (64 MiB/TC), up to 96 MiB on v5e/v6e (128 MiB).
    return int(min(cap * 3 // 4, 96 * 1024 * 1024))


# ---------------------------------------------------------------------------
# Fused DecoderBlock kernel: conv1(+concat) -> BN -> ReLU -> conv2 -> BN -> ReLU,
# one whole image per grid step.
# ---------------------------------------------------------------------------
def _make_decoder_kernel(h, w, cout):
    wp2 = w + 2

    def kernel(x_ref, s_ref, w1x_ref, w1s_ref, w2_ref, b1_ref, b2_ref,
               o_ref, y1pad_ref):
        xw = x_ref[0]                                    # (h+2, (w+2)*cx) bf16, padded
        sw = s_ref[0]                                    # (h+2, (w+2)*cs) bf16, padded

        # ---- conv1 (fused channel concat) + folded BN + ReLU --------------------
        # 3 accumulating matmuls per source, K = (w+2)*Cin, N = (w+2)*cout.
        acc1 = jnp.zeros((h, wp2 * cout), jnp.float32)
        for dy in range(3):
            acc1 = acc1 + jnp.dot(xw[dy:dy + h, :], w1x_ref[dy],
                                  preferred_element_type=jnp.float32)
            acc1 = acc1 + jnp.dot(sw[dy:dy + h, :], w1s_ref[dy],
                                  preferred_element_type=jnp.float32)
        # Bias is zero on the border columns, so the output keeps its zero W-padding.
        y1 = jnp.maximum(acc1 + b1_ref[...], 0.0)        # (h, (w+2)*cout) f32

        # ---- stage-1 activation stays in VMEM; add the H zero-padding rows ------
        y1pad_ref[...] = jnp.zeros((h + 2, wp2 * cout), jnp.float32)
        y1pad_ref[1:h + 1, :] = y1
        y1w = y1pad_ref[...]                             # (h+2, (w+2)*cout) f32

        # ---- conv2 + folded BN + ReLU -------------------------------------------
        acc2 = jnp.zeros((h, w * cout), jnp.float32)
        for dy in range(3):
            acc2 = acc2 + jnp.dot(y1w[dy:dy + h, :].astype(jnp.bfloat16), w2_ref[dy],
                                  preferred_element_type=jnp.float32)
        out = jnp.maximum(acc2 + b2_ref[...], 0.0)       # (h, w*cout) -> lane-dense
        o_ref[0] = out.astype(o_ref.dtype)

    return kernel


# ---------------------------------------------------------------------------
# DecoderBlock forward (NCHW in/out like the PyTorch module).
# ---------------------------------------------------------------------------
def decoder_block_forward(x_nchw, skip_nchw, params):
    (w1, b1), (w2, b2) = params
    n, cx, hx, wx = x_nchw.shape
    cs = int(skip_nchw.shape[1])
    cout = int(w1.shape[3])
    h, w = 2 * hx, 2 * wx
    wp2 = w + 2

    # Upsample(scale=2, bilinear, align_corners=True) / F.interpolate for skip, with
    # zero conv padding, NHWC flattening and bf16 cast all fused into the einsums.
    # (When skip already has size (h, w) the matrices are an exact identity.)
    xf = _resize_pad_flatten(x_nchw, h, w)               # (n, h+2, (w+2)*cx) bf16
    sf = _resize_pad_flatten(skip_nchw, h, w)            # (n, h+2, (w+2)*cs) bf16

    # torch.cat([x, skip], dim=1) fused into conv1 by splitting its weights along Cin.
    w1x_band = _band_weight(w1[:, :, :cx, :], w, pad_output=True).astype(jnp.bfloat16)
    w1s_band = _band_weight(w1[:, :, cx:, :], w, pad_output=True).astype(jnp.bfloat16)
    w2_band = _band_weight(w2, w, pad_output=False).astype(jnp.bfloat16)

    b1_flat = jnp.concatenate([jnp.zeros((cout,), jnp.float32),
                               jnp.tile(b1.astype(jnp.float32), w),
                               jnp.zeros((cout,), jnp.float32)]).reshape(1, wp2 * cout)
    b2_flat = jnp.tile(b2.astype(jnp.float32), w).reshape(1, w * cout)

    flops = 2 * n * 3 * h * (wp2 * cx * wp2 * cout
                             + wp2 * cs * wp2 * cout
                             + wp2 * cout * w * cout)
    bytes_accessed = (xf.size * 2 + sf.size * 2
                      + w1x_band.size * 2 + w1s_band.size * 2 + w2_band.size * 2
                      + b1_flat.size * 4 + b2_flat.size * 4
                      + n * h * w * cout * 4)

    out_flat = pl.pallas_call(
        _make_decoder_kernel(h, w, cout),
        out_shape=jax.ShapeDtypeStruct((n, h, w * cout), jnp.float32),
        grid=(n,),
        in_specs=[
            pl.BlockSpec((1, h + 2, wp2 * cx), lambda i: (i, 0, 0)),
            pl.BlockSpec((1, h + 2, wp2 * cs), lambda i: (i, 0, 0)),
            # Constant block indices -> fetched once and kept VMEM-resident across steps.
            pl.BlockSpec((3, wp2 * cx, wp2 * cout), lambda i: (0, 0, 0)),
            pl.BlockSpec((3, wp2 * cs, wp2 * cout), lambda i: (0, 0, 0)),
            pl.BlockSpec((3, wp2 * cout, w * cout), lambda i: (0, 0, 0)),
            pl.BlockSpec((1, wp2 * cout), lambda i: (0, 0)),
            pl.BlockSpec((1, w * cout), lambda i: (0, 0)),
        ],
        out_specs=pl.BlockSpec((1, h, w * cout), lambda i: (i, 0, 0)),
        scratch_shapes=[pltpu.VMEM((h + 2, wp2 * cout), jnp.float32)],
        compiler_params=pltpu.CompilerParams(
            dimension_semantics=("parallel",),            # N=2 items -> both v7x TCs busy
            vmem_limit_bytes=_vmem_limit_bytes(),
        ),
        cost_estimate=pl.CostEstimate(flops=flops, transcendentals=0,
                                      bytes_accessed=bytes_accessed),
    )(xf, sf, w1x_band, w1s_band, w2_band, b1_flat, b2_flat)

    out = out_flat.reshape(n, h, w, cout)                 # free (row-major identical)
    return jnp.transpose(out, (0, 3, 1, 2))               # NHWC -> NCHW (tiny XLA glue)


# ---------------------------------------------------------------------------
# Parameter init (deterministic) with BatchNorm folded into weights/bias.
# ---------------------------------------------------------------------------
def init_conv_bn_params(key, cin, cout, eps=1e-5):
    k1, k2, k3, k4, k5, k6 = jax.random.split(key, 6)
    w = jax.random.normal(k1, (3, 3, cin, cout), jnp.float32) / jnp.sqrt(9.0 * cin)
    conv_b = 0.05 * jax.random.normal(k2, (cout,), jnp.float32)
    gamma = 1.0 + 0.1 * jax.random.normal(k3, (cout,), jnp.float32)
    beta = 0.05 * jax.random.normal(k4, (cout,), jnp.float32)
    rmean = 0.1 * jax.random.normal(k5, (cout,), jnp.float32)
    rvar = 1.0 + 0.1 * jnp.abs(jax.random.normal(k6, (cout,), jnp.float32))
    scale = gamma / jnp.sqrt(rvar + eps)                  # folded BN scale
    w_folded = w * scale                                  # fold scale into conv weights
    bias = (conv_b - rmean) * scale + beta                # folded BN bias
    return w_folded, bias                                 # (3,3,cin,cout) HWIO, (cout,)


# ---------------------------------------------------------------------------
# Pure-JAX f32 reference (lax.conv) for a correctness check.
# ---------------------------------------------------------------------------
def _reference_forward(x_nchw, skip_nchw, params):
    (w1, b1), (w2, b2) = params
    x = jnp.transpose(x_nchw, (0, 2, 3, 1))
    skip = jnp.transpose(skip_nchw, (0, 2, 3, 1))
    oh, ow = 2 * x.shape[1], 2 * x.shape[2]
    x = bilinear_resize_nhwc(x, oh, ow)
    if skip.shape[1] != oh or skip.shape[2] != ow:
        skip = bilinear_resize_nhwc(skip, oh, ow)
    y = jnp.concatenate([x, skip], axis=-1)
    for w_f, b in ((w1, b1), (w2, b2)):
        y = jax.lax.conv_general_dilated(
            y, w_f, window_strides=(1, 1), padding="SAME",
            dimension_numbers=("NHWC", "HWIO", "NHWC"))
        y = jnp.maximum(y + b, 0.0)
    return jnp.transpose(y, (0, 3, 1, 2))


if __name__ == "__main__":
    key = jax.random.PRNGKey(0)
    kx, ks, kp = jax.random.split(key, 3)

    # x: (N=2, C=4, 16, 16) is upsampled 2x -> (2, 4, 32, 32)
    # skip: (2, 4, 28, 28) -> exercises the F.interpolate branch (resized to 32x32)
    # concat channels = 8 == DecoderBlock in_channels; out_channels = 8
    n, cx, hx, wx = 2, 4, 16, 16
    cs, hs, ws = 4, 28, 28
    in_channels = cx + cs
    out_channels = 8

    x = jax.random.normal(kx, (n, cx, hx, wx), jnp.float32)
    skip = jax.random.normal(ks, (n, cs, hs, ws), jnp.float32)

    kp1, kp2 = jax.random.split(kp)
    params = (
        init_conv_bn_params(kp1, in_channels, out_channels),
        init_conv_bn_params(kp2, out_channels, out_channels),
    )

    fwd = jax.jit(decoder_block_forward)
    out = fwd(x, skip, params)
    out = jax.block_until_ready(out)

    assert out.shape == (n, out_channels, 2 * hx, 2 * wx)
    assert bool(jnp.all(out >= 0.0))                      # ReLU output

    # Tolerance vs a pure-JAX f32 reference (kernel uses bf16 activations/weights on
    # the MXU with f32 accumulation; the stage-1 activation stays f32 in VMEM).
    ref = _reference_forward(x, skip, params)
    max_err = float(jnp.max(jnp.abs(out - ref)))
    assert max_err < 0.15, f"max abs error vs reference too large: {max_err}"

    print("KERNEL_OK")
</pallas_src>

<mosaic_0001>
module attributes {stable_mosaic.version = 11 : i64} {
  func.func @kernel(%arg0: i32, %arg1: memref<1x34x136xbf16, #tpu.memory_space<vmem>>, %arg2: memref<1x34x136xbf16, #tpu.memory_space<vmem>>, %arg3: memref<3x136x272xbf16, #tpu.memory_space<vmem>>, %arg4: memref<3x136x272xbf16, #tpu.memory_space<vmem>>, %arg5: memref<3x272x256xbf16, #tpu.memory_space<vmem>>, %arg6: memref<1x272xf32, #tpu.memory_space<vmem>>, %arg7: memref<1x256xf32, #tpu.memory_space<vmem>>, %arg8: memref<1x32x256xf32, #tpu.memory_space<vmem>>, %arg9: memref<34x272xf32, #tpu.memory_space<vmem>>) attributes {dimension_semantics = [#tpu.dimension_semantics<parallel>], iteration_bounds = array<i64: 2>, scalar_prefetch = 0 : i64, scratch_operands = 1 : i64, tpu.core_type = #tpu.core_type<tc>, window_params = [{transform_indices = @transform_0, window_bounds = array<i64: 1, 34, 136>}, {transform_indices = @transform_1, window_bounds = array<i64: 1, 34, 136>}, {pipeline_mode = #tpu.pipeline_mode<synchronous>, transform_indices = @transform_2, window_bounds = array<i64: 3, 136, 272>}, {pipeline_mode = #tpu.pipeline_mode<synchronous>, transform_indices = @transform_3, window_bounds = array<i64: 3, 136, 272>}, {pipeline_mode = #tpu.pipeline_mode<synchronous>, transform_indices = @transform_4, window_bounds = array<i64: 3, 272, 256>}, {pipeline_mode = #tpu.pipeline_mode<synchronous>, transform_indices = @transform_5, window_bounds = array<i64: 1, 272>}, {pipeline_mode = #tpu.pipeline_mode<synchronous>, transform_indices = @transform_6, window_bounds = array<i64: 1, 256>}, {transform_indices = @transform_7, window_bounds = array<i64: 1, 32, 256>}]} {
    %c0 = arith.constant 0 : index
    %c0_0 = arith.constant 0 : index
    %c0_1 = arith.constant 0 : index
    %0 = vector.load %arg1[%c0, %c0_0, %c0_1] : memref<1x34x136xbf16, #tpu.memory_space<vmem>>, vector<1x34x136xbf16>
    %1 = vector.shape_cast %0 : vector<1x34x136xbf16> to vector<34x136xbf16>
    %c0_2 = arith.constant 0 : index
    %c0_3 = arith.constant 0 : index
    %c0_4 = arith.constant 0 : index
    %2 = vector.load %arg2[%c0_2, %c0_3, %c0_4] : memref<1x34x136xbf16, #tpu.memory_space<vmem>>, vector<1x34x136xbf16>
    %3 = vector.shape_cast %2 : vector<1x34x136xbf16> to vector<34x136xbf16>
    %cst = arith.constant 0.000000e+00 : f32
    %4 = vector.broadcast %cst : f32 to vector<32x272xf32>
    %5 = vector.extract_strided_slice %1 {offsets = [0, 0], sizes = [32, 136], strides = [1, 1]} : vector<34x136xbf16> to vector<32x136xbf16>
    %c0_5 = arith.constant 0 : index
    %c0_6 = arith.constant 0 : index
    %c0_7 = arith.constant 0 : index
    %6 = vector.load %arg3[%c0_5, %c0_6, %c0_7] : memref<3x136x272xbf16, #tpu.memory_space<vmem>>, vector<1x136x272xbf16>
    %7 = vector.shape_cast %6 : vector<1x136x272xbf16> to vector<136x272xbf16>
    %cst_8 = arith.constant dense<0.000000e+00> : vector<32x272xf32>
    %8 = tpu.matmul %5, %7, %cst_8 {dimension_numbers = #tpu.dot_dimension_numbers<[1], [0], [0], [1], [0, 0, 1, 1], [], []>} : vector<32x136xbf16>, vector<136x272xbf16>, vector<32x272xf32> -> vector<32x272xf32>
    %9 = arith.addf %4, %8 : vector<32x272xf32>
    %10 = vector.extract_strided_slice %3 {offsets = [0, 0], sizes = [32, 136], strides = [1, 1]} : vector<34x136xbf16> to vector<32x136xbf16>
    %c0_9 = arith.constant 0 : index
    %c0_10 = arith.constant 0 : index
    %c0_11 = arith.constant 0 : index
    %11 = vector.load %arg4[%c0_9, %c0_10, %c0_11] : memref<3x136x272xbf16, #tpu.memory_space<vmem>>, vector<1x136x272xbf16>
    %12 = vector.shape_cast %11 : vector<1x136x272xbf16> to vector<136x272xbf16>
    %cst_12 = arith.constant dense<0.000000e+00> : vector<32x272xf32>
    %13 = tpu.matmul %10, %12, %cst_12 {dimension_numbers = #tpu.dot_dimension_numbers<[1], [0], [0], [1], [0, 0, 1, 1], [], []>} : vector<32x136xbf16>, vector<136x272xbf16>, vector<32x272xf32> -> vector<32x272xf32>
    %14 = arith.addf %9, %13 : vector<32x272xf32>
    %15 = vector.extract_strided_slice %1 {offsets = [1, 0], sizes = [32, 136], strides = [1, 1]} : vector<34x136xbf16> to vector<32x136xbf16>
    %c1 = arith.constant 1 : index
    %c0_13 = arith.constant 0 : index
    %c0_14 = arith.constant 0 : index
    %16 = vector.load %arg3[%c1, %c0_13, %c0_14] : memref<3x136x272xbf16, #tpu.memory_space<vmem>>, vector<1x136x272xbf16>
    %17 = vector.shape_cast %16 : vector<1x136x272xbf16> to vector<136x272xbf16>
    %cst_15 = arith.constant dense<0.000000e+00> : vector<32x272xf32>
    %18 = tpu.matmul %15, %17, %cst_15 {dimension_numbers = #tpu.dot_dimension_numbers<[1], [0], [0], [1], [0, 0, 1, 1], [], []>} : vector<32x136xbf16>, vector<136x272xbf16>, vector<32x272xf32> -> vector<32x272xf32>
    %19 = arith.addf %14, %18 : vector<32x272xf32>
    %20 = vector.extract_strided_slice %3 {offsets = [1, 0], sizes = [32, 136], strides = [1, 1]} : vector<34x136xbf16> to vector<32x136xbf16>
    %c1_16 = arith.constant 1 : index
    %c0_17 = arith.constant 0 : index
    %c0_18 = arith.constant 0 : index
    %21 = vector.load %arg4[%c1_16, %c0_17, %c0_18] : memref<3x136x272xbf16, #tpu.memory_space<vmem>>, vector<1x136x272xbf16>
    %22 = vector.shape_cast %21 : vector<1x136x272xbf16> to vector<136x272xbf16>
    %cst_19 = arith.constant dense<0.000000e+00> : vector<32x272xf32>
    %23 = tpu.matmul %20, %22, %cst_19 {dimension_numbers = #tpu.dot_dimension_numbers<[1], [0], [0], [1], [0, 0, 1, 1], [], []>} : vector<32x136xbf16>, vector<136x272xbf16>, vector<32x272xf32> -> vector<32x272xf32>
    %24 = arith.addf %19, %23 : vector<32x272xf32>
    %25 = vector.extract_strided_slice %1 {offsets = [2, 0], sizes = [32, 136], strides = [1, 1]} : vector<34x136xbf16> to vector<32x136xbf16>
    %c2 = arith.constant 2 : index
    %c0_20 = arith.constant 0 : index
    %c0_21 = arith.constant 0 : index
    %26 = vector.load %arg3[%c2, %c0_20, %c0_21] : memref<3x136x272xbf16, #tpu.memory_space<vmem>>, vector<1x136x272xbf16>
    %27 = vector.shape_cast %26 : vector<1x136x272xbf16> to vector<136x272xbf16>
    %cst_22 = arith.constant dense<0.000000e+00> : vector<32x272xf32>
    %28 = tpu.matmul %25, %27, %cst_22 {dimension_numbers = #tpu.dot_dimension_numbers<[1], [0], [0], [1], [0, 0, 1, 1], [], []>} : vector<32x136xbf16>, vector<136x272xbf16>, vector<32x272xf32> -> vector<32x272xf32>
    %29 = arith.addf %24, %28 : vector<32x272xf32>
    %30 = vector.extract_strided_slice %3 {offsets = [2, 0], sizes = [32, 136], strides = [1, 1]} : vector<34x136xbf16> to vector<32x136xbf16>
    %c2_23 = arith.constant 2 : index
    %c0_24 = arith.constant 0 : index
    %c0_25 = arith.constant 0 : index
    %31 = vector.load %arg4[%c2_23, %c0_24, %c0_25] : memref<3x136x272xbf16, #tpu.memory_space<vmem>>, vector<1x136x272xbf16>
    %32 = vector.shape_cast %31 : vector<1x136x272xbf16> to vector<136x272xbf16>
    %cst_26 = arith.constant dense<0.000000e+00> : vector<32x272xf32>
    %33 = tpu.matmul %30, %32, %cst_26 {dimension_numbers = #tpu.dot_dimension_numbers<[1], [0], [0], [1], [0, 0, 1, 1], [], []>} : vector<32x136xbf16>, vector<136x272xbf16>, vector<32x272xf32> -> vector<32x272xf32>
    %34 = arith.addf %29, %33 : vector<32x272xf32>
    %c0_27 = arith.constant 0 : index
    %c0_28 = arith.constant 0 : index
    %35 = vector.load %arg6[%c0_27, %c0_28] : memref<1x272xf32, #tpu.memory_space<vmem>>, vector<1x272xf32>
    %36 = vector.broadcast %35 : vector<1x272xf32> to vector<32x272xf32>
    %37 = arith.addf %34, %36 : vector<32x272xf32>
    %cst_29 = arith.constant 0.000000e+00 : f32
    %38 = vector.broadcast %cst_29 : f32 to vector<32x272xf32>
    %39 = arith.maximumf %37, %38 : vector<32x272xf32>
    %cst_30 = arith.constant 0.000000e+00 : f32
    %40 = vector.broadcast %cst_30 : f32 to vector<34x272xf32>
    %c0_31 = arith.constant 0 : index
    %c0_32 = arith.constant 0 : index
    %41 = vector.load %arg9[%c0_31, %c0_32] : memref<34x272xf32, #tpu.memory_space<vmem>>, vector<34x272xf32>
    tpu.vector_store %arg9[%c0_31, %c0_32], %40 {strides = array<i32>} : memref<34x272xf32, #tpu.memory_space<vmem>>, vector<34x272xf32>,
    %c1_33 = arith.constant 1 : index
    %c0_34 = arith.constant 0 : index
    %42 = vector.load %arg9[%c1_33, %c0_34] : memref<34x272xf32, #tpu.memory_space<vmem>>, vector<32x272xf32>
    tpu.vector_store %arg9[%c1_33, %c0_34], %39 {strides = array<i32>} : memref<34x272xf32, #tpu.memory_space<vmem>>, vector<32x272xf32>,
    %c0_35 = arith.constant 0 : index
    %c0_36 = arith.constant 0 : index
    %43 = vector.load %arg9[%c0_35, %c0_36] : memref<34x272xf32, #tpu.memory_space<vmem>>, vector<34x272xf32>
    %cst_37 = arith.constant 0.000000e+00 : f32
    %44 = vector.broadcast %cst_37 : f32 to vector<32x256xf32>
    %45 = vector.extract_strided_slice %43 {offsets = [0, 0], sizes = [32, 272], strides = [1, 1]} : vector<34x272xf32> to vector<32x272xf32>
    %46 = arith.truncf %45 : vector<32x272xf32> to vector<32x272xbf16>
    %c0_38 = arith.constant 0 : index
    %c0_39 = arith.constant 0 : index
    %c0_40 = arith.constant 0 : index
    %47 = vector.load %arg5[%c0_38, %c0_39, %c0_40] : memref<3x272x256xbf16, #tpu.memory_space<vmem>>, vector<1x272x256xbf16>
    %48 = vector.shape_cast %47 : vector<1x272x256xbf16> to vector<272x256xbf16>
    %cst_41 = arith.constant dense<0.000000e+00> : vector<32x256xf32>
    %49 = tpu.matmul %46, %48, %cst_41 {dimension_numbers = #tpu.dot_dimension_numbers<[1], [0], [0], [1], [0, 0, 1, 1], [], []>} : vector<32x272xbf16>, vector<272x256xbf16>, vector<32x256xf32> -> vector<32x256xf32>
    %50 = arith.addf %44, %49 : vector<32x256xf32>
    %51 = vector.extract_strided_slice %43 {offsets = [1, 0], sizes = [32, 272], strides = [1, 1]} : vector<34x272xf32> to vector<32x272xf32>
    %52 = arith.truncf %51 : vector<32x272xf32> to vector<32x272xbf16>
    %c1_42 = arith.constant 1 : index
    %c0_43 = arith.constant 0 : index
    %c0_44 = arith.constant 0 : index
    %53 = vector.load %arg5[%c1_42, %c0_43, %c0_44] : memref<3x272x256xbf16, #tpu.memory_space<vmem>>, vector<1x272x256xbf16>
    %54 = vector.shape_cast %53 : vector<1x272x256xbf16> to vector<272x256xbf16>
    %cst_45 = arith.constant dense<0.000000e+00> : vector<32x256xf32>
    %55 = tpu.matmul %52, %54, %cst_45 {dimension_numbers = #tpu.dot_dimension_numbers<[1], [0], [0], [1], [0, 0, 1, 1], [], []>} : vector<32x272xbf16>, vector<272x256xbf16>, vector<32x256xf32> -> vector<32x256xf32>
    %56 = arith.addf %50, %55 : vector<32x256xf32>
    %57 = vector.extract_strided_slice %43 {offsets = [2, 0], sizes = [32, 272], strides = [1, 1]} : vector<34x272xf32> to vector<32x272xf32>
    %58 = arith.truncf %57 : vector<32x272xf32> to vector<32x272xbf16>
    %c2_46 = arith.constant 2 : index
    %c0_47 = arith.constant 0 : index
    %c0_48 = arith.constant 0 : index
    %59 = vector.load %arg5[%c2_46, %c0_47, %c0_48] : memref<3x272x256xbf16, #tpu.memory_space<vmem>>, vector<1x272x256xbf16>
    %60 = vector.shape_cast %59 : vector<1x272x256xbf16> to vector<272x256xbf16>
    %cst_49 = arith.constant dense<0.000000e+00> : vector<32x256xf32>
    %61 = tpu.matmul %58, %60, %cst_49 {dimension_numbers = #tpu.dot_dimension_numbers<[1], [0], [0], [1], [0, 0, 1, 1], [], []>} : vector<32x272xbf16>, vector<272x256xbf16>, vector<32x256xf32> -> vector<32x256xf32>
    %62 = arith.addf %56, %61 : vector<32x256xf32>
    %c0_50 = arith.constant 0 : index
    %c0_51 = arith.constant 0 : index
    %63 = vector.load %arg7[%c0_50, %c0_51] : memref<1x256xf32, #tpu.memory_space<vmem>>, vector<1x256xf32>
    %64 = vector.broadcast %63 : vector<1x256xf32> to vector<32x256xf32>
    %65 = arith.addf %62, %64 : vector<32x256xf32>
    %cst_52 = arith.constant 0.000000e+00 : f32
    %66 = vector.broadcast %cst_52 : f32 to vector<32x256xf32>
    %67 = arith.maximumf %65, %66 : vector<32x256xf32>
    %c0_53 = arith.constant 0 : index
    %c0_54 = arith.constant 0 : index
    %c0_55 = arith.constant 0 : index
    %68 = vector.load %arg8[%c0_53, %c0_54, %c0_55] : memref<1x32x256xf32, #tpu.memory_space<vmem>>, vector<1x32x256xf32>
    %69 = vector.shape_cast %68 : vector<1x32x256xf32> to vector<32x256xf32>
    %70 = vector.shape_cast %67 : vector<32x256xf32> to vector<1x32x256xf32>
    tpu.vector_store %arg8[%c0_53, %c0_54, %c0_55], %70 {strides = array<i32>} : memref<1x32x256xf32, #tpu.memory_space<vmem>>, vector<1x32x256xf32>,
    return
  }
  func.func @transform_0(%arg0: i32) -> (i32, i32, i32) {
    %c0_i32 = arith.constant 0 : i32
    %c0_i32_0 = arith.constant 0 : i32
    %c0_i32_1 = arith.constant 0 : i32
    return %arg0, %c0_i32, %c0_i32_0 : i32, i32, i32
  }
  func.func @transform_1(%arg0: i32) -> (i32, i32, i32) {
    %c0_i32 = arith.constant 0 : i32
    %c0_i32_0 = arith.constant 0 : i32
    %c0_i32_1 = arith.constant 0 : i32
    return %arg0, %c0_i32, %c0_i32_0 : i32, i32, i32
  }
  func.func @transform_2(%arg0: i32) -> (i32, i32, i32) {
    %c0_i32 = arith.constant 0 : i32
    %c0_i32_0 = arith.constant 0 : i32
    %c0_i32_1 = arith.constant 0 : i32
    %c0_i32_2 = arith.constant 0 : i32
    return %c0_i32, %c0_i32_0, %c0_i32_1 : i32, i32, i32
  }
  func.func @transform_3(%arg0: i32) -> (i32, i32, i32) {
    %c0_i32 = arith.constant 0 : i32
    %c0_i32_0 = arith.constant 0 : i32
    %c0_i32_1 = arith.constant 0 : i32
    %c0_i32_2 = arith.constant 0 : i32
    return %c0_i32, %c0_i32_0, %c0_i32_1 : i32, i32, i32
  }
  func.func @transform_4(%arg0: i32) -> (i32, i32, i32) {
    %c0_i32 = arith.constant 0 : i32
    %c0_i32_0 = arith.constant 0 : i32
    %c0_i32_1 = arith.constant 0 : i32
    %c0_i32_2 = arith.constant 0 : i32
    return %c0_i32, %c0_i32_0, %c0_i32_1 : i32, i32, i32
  }
  func.func @transform_5(%arg0: i32) -> (i32, i32) {
    %c0_i32 = arith.constant 0 : i32
    %c0_i32_0 = arith.constant 0 : i32
    %c0_i32_1 = arith.constant 0 : i32
    return %c0_i32, %c0_i32_0 : i32, i32
  }
  func.func @transform_6(%arg0: i32) -> (i32, i32) {
    %c0_i32 = arith.constant 0 : i32
    %c0_i32_0 = arith.constant 0 : i32
    %c0_i32_1 = arith.constant 0 : i32
    return %c0_i32, %c0_i32_0 : i32, i32
  }
  func.func @transform_7(%arg0: i32) -> (i32, i32, i32) {
    %c0_i32 = arith.constant 0 : i32
    %c0_i32_0 = arith.constant 0 : i32
    %c0_i32_1 = arith.constant 0 : i32
    return %arg0, %c0_i32, %c0_i32_0 : i32, i32, i32
  }
}

</mosaic_0001>

<llo_original>
// kernel: tile.13
$region0: #{tile.13}
  #allocation0 [shape = 's32[1]{0}', space=sflag, size = 0x4, scoped, tag = 'scoped memory for tile.13']
  %s0 = inlined_call_operand.vmem [shape: f32[8], index: 0, kind: input, shape index: {}]
  %s1 = inlined_call_operand.vmem [shape: f32[32,8], index: 1, kind: output, shape index: {}]
  // Predicated region
  $region2: #{tile.13} parent=0 // pred_check
    _
  $region3: #{tile.13} parent=0 // pred_check_branch
    %3 = sbr.rel (0) target = $region5
  $region4: #{tile.13} parent=0 // pred_region
    _
  $region5: #{tile.13} parent=0 // pred_fallthru
    _
  %v4 = vld [vmem:[%s0] ss:$0 sm:$0xff]
  %5 = vst [vmem:[%s1] sm:$0xff] %v4
  %s6 = scalar_lea.vmem %s1, 8
  %7 = vst [vmem:[%s6] sm:$0xff] %v4
  %s8 = scalar_lea.vmem %s1, 16
  %9 = vst [vmem:[%s8] sm:$0xff] %v4
  %s10 = scalar_lea.vmem %s1, 24
  %11 = vst [vmem:[%s10] sm:$0xff] %v4

// kernel: tile.14
$region0: #{tile.14}
  %s0 = inlined_call_operand.vmem [shape: f32[32,8], index: 0, kind: input, shape index: {}]
  %s1 = inlined_call_operand.vmem [shape: f32[256], index: 1, kind: output, shape index: {}]
  $region1: #{tile.14} parent=0
    #allocation0 [shape = 'u8[4096]{0}', space=vmem, size = 0x1000, scoped, tag = 'scoped mem for output reshape']
    %s2 = smov 3
    %v3 = vld [vmem:[%s0] ss:$16 sm:%s2]
    %vm4 = vcmask 64512
    %5 = vst.msk [vmem:[#allocation0] sm:$0x3] %vm4, %v3
    %s6 = scalar_lea.vmem %s0, 15
    %s7 = smov 3
    %v8 = vld [vmem:[%s6] ss:$16 sm:%s7]
    %9 = vrot.lane.b32.xlu0 %v8, 120
    %v10 = vpop.permute.xlu0 %9
    %vm11 = vcmask 1048512
    %12 = vst.msk [vmem:[#allocation0] sm:$0x3] %vm11, %v10
    %s13 = scalar_lea.vmem %s0, 14
    %s14 = smov 3
    %v15 = vld [vmem:[%s13] ss:$16 sm:%s14]
    %16 = vrot.lane.b32.xlu0 %v15, 112
    %v17 = vpop.permute.xlu0 %16
    %vm18 = vcmask 982912
    %19 = vst.msk [vmem:[#allocation0] sm:$0x3] %vm18, %v17
    %s20 = scalar_lea.vmem %s0, 13
    %s21 = smov 3
    %v22 = vld [vmem:[%s20] ss:$16 sm:%s21]
    %23 = vrot.lane.b32.xlu0 %v22, 104
    %v24 = vpop.permute.xlu0 %23
    %vm25 = vcmask 917312
    %26 = vst.msk [vmem:[#allocation0] sm:$0x3] %vm25, %v24
    %s27 = scalar_lea.vmem %s0, 12
    %s28 = smov 3
    %v29 = vld [vmem:[%s27] ss:$16 sm:%s28]
    %30 = vrot.lane.b32.xlu0 %v29, 96
    %v31 = vpop.permute.xlu0 %30
    %vm32 = vcmask 851712
    %33 = vst.msk [vmem:[#allocation0] sm:$0x3] %vm32, %v31
    %s34 = scalar_lea.vmem %s0, 11
    %s35 = smov 3
    %v36 = vld [vmem:[%s34] ss:$16 sm:%s35]
    %37 = vrot.lane.b32.xlu0 %v36, 88
    %v38 = vpop.permute.xlu0 %37
    %vm39 = vcmask 786112
    %40 = vst.msk [vmem:[#allocation0] sm:$0x3] %vm39, %v38
    %s41 = scalar_lea.vmem %s0, 10
    %s42 = smov 3
    %v43 = vld [vmem:[%s41] ss:$16 sm:%s42]
    %44 = vrot.lane.b32.xlu0 %v43, 80
    %v45 = vpop.permute.xlu0 %44
    %vm46 = vcmask 720512
    %47 = vst.msk [vmem:[#allocation0] sm:$0x3] %vm46, %v45
    %s48 = scalar_lea.vmem %s0, 9
    %s49 = smov 3
    %v50 = vld [vmem:[%s48] ss:$16 sm:%s49]
    %51 = vrot.lane.b32.xlu0 %v50, 72
    %v52 = vpop.permute.xlu0 %51
    %vm53 = vcmask 654912
    %54 = vst.msk [vmem:[#allocation0] sm:$0x3] %vm53, %v52
    %s55 = scalar_lea.vmem %s0, 8
    %s56 = smov 3
    %v57 = vld [vmem:[%s55] ss:$16 sm:%s56]
    %58 = vrot.lane.b32.xlu0 %v57, 64
    %v59 = vpop.permute.xlu0 %58
    %vm60 = vcmask 589312
    %61 = vst.msk [vmem:[#allocation0] sm:$0x3] %vm60, %v59
    %s62 = scalar_lea.vmem %s0, 7
    %s63 = smov 3
    %v64 = vld [vmem:[%s62] ss:$16 sm:%s63]
    %65 = vrot.lane.b32.xlu0 %v64, 56
    %v66 = vpop.permute.xlu0 %65
    %vm67 = vcmask 523712
    %68 = vst.msk [vmem:[#allocation0] sm:$0x3] %vm67, %v66
    %s69 = scalar_lea.vmem %s0, 6
    %s70 = smov 3
    %v71 = vld [vmem:[%s69] ss:$16 sm:%s70]
    %72 = vrot.lane.b32.xlu0 %v71, 48
    %v73 = vpop.permute.xlu0 %72
    %vm74 = vcmask 458112
    %75 = vst.msk [vmem:[#allocation0] sm:$0x3] %vm74, %v73
    %s76 = scalar_lea.vmem %s0, 5
    %s77 = smov 3
    %v78 = vld [vmem:[%s76] ss:$16 sm:%s77]
    %79 = vrot.lane.b32.xlu0 %v78, 40
    %v80 = vpop.permute.xlu0 %79
    %vm81 = vcmask 392512
    %82 = vst.msk [vmem:[#allocation0] sm:$0x3] %vm81, %v80
    %s83 = scalar_lea.vmem %s0, 4
    %s84 = smov 3
    %v85 = vld [vmem:[%s83] ss:$16 sm:%s84]
    %86 = vrot.lane.b32.xlu0 %v85, 32
    %v87 = vpop.permute.xlu0 %86
    %vm88 = vcmask 326912
    %89 = vst.msk [vmem:[#allocation0] sm:$0x3] %vm88, %v87
    %s90 = scalar_lea.vmem %s0, 3
    %s91 = smov 3
    %v92 = vld [vmem:[%s90] ss:$16 sm:%s91]
    %93 = vrot.lane.b32.xlu0 %v92, 24
    %v94 = vpop.permute.xlu0 %93
    %vm95 = vcmask 261312
    %96 = vst.msk [vmem:[#allocation0] sm:$0x3] %vm95, %v94
    %s97 = scalar_lea.vmem %s0, 2
    %s98 = smov 3
    %v99 = vld [vmem:[%s97] ss:$16 sm:%s98]
    %100 = vrot.lane.b32.xlu0 %v99, 16
    %v101 = vpop.permute.xlu0 %100
    %vm102 = vcmask 195712
    %103 = vst.msk [vmem:[#allocation0] sm:$0x3] %vm102, %v101
    %s104 = scalar_lea.vmem %s0, 1
    %s105 = smov 3
    %v106 = vld [vmem:[%s104] ss:$16 sm:%s105]
    %107 = vrot.lane.b32.xlu0 %v106, 8
    %v108 = vpop.permute.xlu0 %107
    %vm109 = vcmask 130112
    %110 = vst.msk [vmem:[#allocation0] sm:$0x3] %vm109, %v108
    %s112 = sshllo.u32 0, 2
    %v114 = vld [vmem:[#allocation0] sm:%s112]
    %s115 = sshllo.u32 0, 2
    %116 = vst [vmem:[%s1] sm:%s115] %v114

// kernel: tile.19
$region0: #{tile.19}
  %s0 = inlined_call_operand.vmem [shape: f32[32,8], index: 0, kind: input, shape index: {}]
  %s1 = inlined_call_operand.hbm [shape: f32[1,256], index: 1, kind: output, shape index: {}]
  $region1: #{tile.19} parent=0
    #allocation0 [shape = 'u8[1024]{0}', space=vmem, size = 0x400, scoped, tag = 'operand span for operand 1']
    #allocation1 [shape = 's32[1]{0}', space=sflag, size = 0x4, scoped, tag = 'scoped memory for tile.19']
    #allocation2 [shape = 'u8[8192]{0}', space=vmem, size = 0x2000, scoped, tag = 'scoped mem for output reshape']
    %2 = vsyncpa [#allocation1], 0
    %s3 = smov 3
    %v4 = vld [vmem:[%s0] ss:$16 sm:%s3]
    %vm5 = vcmask 64512
    %6 = vst.msk [vmem:[#allocation2] ss:$8 sm:$0x3] %vm5, %v4
    %s7 = scalar_lea.vmem %s0, 15
    %s8 = smov 3
    %v9 = vld [vmem:[%s7] ss:$16 sm:%s8]
    %10 = vrot.lane.b32.xlu0 %v9, 120
    %v11 = vpop.permute.xlu0 %10
    %vm12 = vcmask 1048512
    %13 = vst.msk [vmem:[#allocation2] ss:$8 sm:$0x3] %vm12, %v11
    %s14 = scalar_lea.vmem %s0, 14
    %s15 = smov 3
    %v16 = vld [vmem:[%s14] ss:$16 sm:%s15]
    %17 = vrot.lane.b32.xlu0 %v16, 112
    %v18 = vpop.permute.xlu0 %17
    %vm19 = vcmask 982912
    %20 = vst.msk [vmem:[#allocation2] ss:$8 sm:$0x3] %vm19, %v18
    %s21 = scalar_lea.vmem %s0, 13
    %s22 = smov 3
    %v23 = vld [vmem:[%s21] ss:$16 sm:%s22]
    %24 = vrot.lane.b32.xlu0 %v23, 104
    %v25 = vpop.permute.xlu0 %24
    %vm26 = vcmask 917312
    %27 = vst.msk [vmem:[#allocation2] ss:$8 sm:$0x3] %vm26, %v25
    %s28 = scalar_lea.vmem %s0, 12
    %s29 = smov 3
    %v30 = vld [vmem:[%s28] ss:$16 sm:%s29]
    %31 = vrot.lane.b32.xlu0 %v30, 96
    %v32 = vpop.permute.xlu0 %31
    %vm33 = vcmask 851712
    %34 = vst.msk [vmem:[#allocation2] ss:$8 sm:$0x3] %vm33, %v32
    %s35 = scalar_lea.vmem %s0, 11
    %s36 = smov 3
    %v37 = vld [vmem:[%s35] ss:$16 sm:%s36]
    %38 = vrot.lane.b32.xlu0 %v37, 88
    %v39 = vpop.permute.xlu0 %38
    %vm40 = vcmask 786112
    %41 = vst.msk [vmem:[#allocation2] ss:$8 sm:$0x3] %vm40, %v39
    %s42 = scalar_lea.vmem %s0, 10
    %s43 = smov 3
    %v44 = vld [vmem:[%s42] ss:$16 sm:%s43]
    %45 = vrot.lane.b32.xlu0 %v44, 80
    %v46 = vpop.permute.xlu0 %45
    %vm47 = vcmask 720512
    %48 = vst.msk [vmem:[#allocation2] ss:$8 sm:$0x3] %vm47, %v46
    %s49 = scalar_lea.vmem %s0, 9
    %s50 = smov 3
    %v51 = vld [vmem:[%s49] ss:$16 sm:%s50]
    %52 = vrot.lane.b32.xlu0 %v51, 72
    %v53 = vpop.permute.xlu0 %52
    %vm54 = vcmask 654912
    %55 = vst.msk [vmem:[#allocation2] ss:$8 sm:$0x3] %vm54, %v53
    %s56 = scalar_lea.vmem %s0, 8
    %s57 = smov 3
    %v58 = vld [vmem:[%s56] ss:$16 sm:%s57]
    %59 = vrot.lane.b32.xlu0 %v58, 64
    %v60 = vpop.permute.xlu0 %59
    %vm61 = vcmask 589312
    %62 = vst.msk [vmem:[#allocation2] ss:$8 sm:$0x3] %vm61, %v60
    %s63 = scalar_lea.vmem %s0, 7
    %s64 = smov 3
    %v65 = vld [vmem:[%s63] ss:$16 sm:%s64]
    %66 = vrot.lane.b32.xlu0 %v65, 56
    %v67 = vpop.permute.xlu0 %66
    %vm68 = vcmask 523712
    %69 = vst.msk [vmem:[#allocation2] ss:$8 sm:$0x3] %vm68, %v67
    %s70 = scalar_lea.vmem %s0, 6
    %s71 = smov 3
    %v72 = vld [vmem:[%s70] ss:$16 sm:%s71]
    %73 = vrot.lane.b32.xlu0 %v72, 48
    %v74 = vpop.permute.xlu0 %73
    %vm75 = vcmask 458112
    %76 = vst.msk [vmem:[#allocation2] ss:$8 sm:$0x3] %vm75, %v74
    %s77 = scalar_lea.vmem %s0, 5
    %s78 = smov 3
    %v79 = vld [vmem:[%s77] ss:$16 sm:%s78]
    %80 = vrot.lane.b32.xlu0 %v79, 40
    %v81 = vpop.permute.xlu0 %80
    %vm82 = vcmask 392512
    %83 = vst.msk [vmem:[#allocation2] ss:$8 sm:$0x3] %vm82, %v81
    %s84 = scalar_lea.vmem %s0, 4
    %s85 = smov 3
    %v86 = vld [vmem:[%s84] ss:$16 sm:%s85]
    %87 = vrot.lane.b32.xlu0 %v86, 32
    %v88 = vpop.permute.xlu0 %87
    %vm89 = vcmask 326912
    %90 = vst.msk [vmem:[#allocation2] ss:$8 sm:$0x3] %vm89, %v88
    %s91 = scalar_lea.vmem %s0, 3
    %s92 = smov 3
    %v93 = vld [vmem:[%s91] ss:$16 sm:%s92]
    %94 = vrot.lane.b32.xlu0 %v93, 24
    %v95 = vpop.permute.xlu0 %94
    %vm96 = vcmask 261312
    %97 = vst.msk [vmem:[#allocation2] ss:$8 sm:$0x3] %vm96, %v95
    %s98 = scalar_lea.vmem %s0, 2
    %s99 = smov 3
    %v100 = vld [vmem:[%s98] ss:$16 sm:%s99]
    %101 = vrot.lane.b32.xlu0 %v100, 16
    %v102 = vpop.permute.xlu0 %101
    %vm103 = vcmask 195712
    %104 = vst.msk [vmem:[#allocation2] ss:$8 sm:$0x3] %vm103, %v102
    %s105 = scalar_lea.vmem %s0, 1
    %s106 = smov 3
    %v107 = vld [vmem:[%s105] ss:$16 sm:%s106]
    %108 = vrot.lane.b32.xlu0 %v107, 8
    %v109 = vpop.permute.xlu0 %108
    %vm110 = vcmask 130112
    %111 = vst.msk [vmem:[#allocation2] ss:$8 sm:$0x3] %vm110, %v109
    %s113 = sshllo.u32 0, 1
    %v115 = vld [vmem:[#allocation2] sm:%s113]
    %s116 = sshllo.u32 0, 1
    %117 = vst [vmem:[#allocation0] sm:%s116] %v115
    %s118 = scalar_lea.vmem [#allocation2], 8
    %v119 = vld [vmem:[%s118] sm:%s113]
    %s120 = sshllo.u32 0, 1
    %s121 = scalar_lea.vmem [#allocation0], 1
    %122 = vst [vmem:[%s121] sm:%s120] %v119
    %s124 = ssub.s32 32, 32
    %125 = vsyncadd [#allocation1], %s124
    %s127 = sshll.u32 [#allocation0], 4
    %s128 = int_to_ptr.vmem [resolvable:$true] %s127
    %130 = dma.vmem_to_hbm [thread:$0]  %s128, 32, %s1, [#allocation1]
    %131 = dma.done [#allocation1], 32
    %132 = vsyncpa [#allocation1], 1

// kernel: decoder_block_forward.1
$region0: #{decoder_block_forward.1}
  #allocation0 [shape = 'u32[]', space=smem, size = 0x4, offset = 0x4, fixed_abs, tag = 'smem constant byte address 0x4 - core index']
  #allocation1 [shape = 'u32[144,128]{1,0:T(1,128)}', space=vmem, size = 0x12000, scoped, tag = 'internal scratch']
  #allocation2 [shape = 'f32[34,272]{1,0:T(8,128)}', space=vmem, size = 0xf000, scoped, tag = 'scratch operand']
  %s0 = inlined_call_operand.hbm [shape: bf16[2,34,136], index: 0, kind: input, shape index: {}]
  %s1 = inlined_call_operand.hbm [shape: bf16[2,34,136], index: 1, kind: input, shape index: {}]
  %s2 = inlined_call_operand.hbm [shape: bf16[3,136,272], index: 2, kind: input, shape index: {}]
  %s3 = inlined_call_operand.hbm [shape: bf16[3,136,272], index: 3, kind: input, shape index: {}]
  %s4 = inlined_call_operand.hbm [shape: bf16[3,272,256], index: 4, kind: input, shape index: {}]
  %s5 = inlined_call_operand.hbm [shape: f32[1,272], index: 5, kind: input, shape index: {}]
  %s6 = inlined_call_operand.hbm [shape: f32[1,256], index: 6, kind: input, shape index: {}]
  %s7 = inlined_call_operand.hbm [shape: f32[2,32,256], index: 7, kind: output, shape index: {}]
  %s8 = sld [smem:[#allocation0]]
  $region89: #{decoder_block_forward.1} parent=0
    _
  %s10 = ssub.s32 1, %s8
  %s11 = scalar_select 0, %s10, %s8
  $region1: #{decoder_block_forward.1} parent=0
    #allocation3 [shape = 'u8[40960]{0}', space=vmem, size = 0xa000, scoped, tag = 'input window, operand 0']
    #allocation4 [shape = 's32[2]{0}', space=sflag, size = 0x8, scoped, tag = 'scoped memory for decoder_block_forward.1']
    #allocation5 [shape = 's32[2]{0}', space=sflag, size = 0x8, scoped, tag = 'scoped memory for decoder_block_forward.1']
    #allocation6 [shape = 'u8[40960]{0}', space=vmem, size = 0xa000, scoped, tag = 'input window, operand 1']
    #allocation7 [shape = 's32[2]{0}', space=sflag, size = 0x8, scoped, tag = 'scoped memory for decoder_block_forward.1']
    #allocation8 [shape = 'u8[313344]{0}', space=vmem, size = 0x4c800, scoped, tag = 'input window, operand 2, single buffered']
    #allocation9 [shape = 'u8[313344]{0}', space=vmem, size = 0x4c800, scoped, tag = 'input window, operand 3, single buffered']
    #allocation10 [shape = 's32[1]{0}', space=sflag, size = 0x4, scoped, tag = 'scoped memory for decoder_block_forward.1']
    #allocation11 [shape = 'u8[417792]{0}', space=vmem, size = 0x66000, scoped, tag = 'input window, operand 4, single buffered']
    #allocation12 [shape = 'u8[1536]{0}', space=vmem, size = 0x800, scoped, tag = 'input window, operand 5, single buffered']
    #allocation13 [shape = 's32[1]{0}', space=sflag, size = 0x4, scoped, tag = 'scoped memory for decoder_block_forward.1']
    #allocation14 [shape = 'u8[1024]{0}', space=vmem, size = 0x400, scoped, tag = 'input window, operand 6, single buffered']
    #allocation15 [shape = 'u8[65536]{0}', space=vmem, size = 0x10000, scoped, tag = 'output window, operand 0']
    %12 = vsyncpa [#allocation4], 0
    %s13 = scalar_lea.sflag [#allocation4], 1
    %14 = vsyncpa %s13, 0
    %15 = vsyncpa [#allocation7], 0
    %s16 = scalar_lea.sflag [#allocation7], 1
    %17 = vsyncpa %s16, 0
    %18 = vsyncpa [#allocation10], 0
    %19 = vsyncpa [#allocation13], 0
    %20 = vsyncpa [#allocation5], 0
    %s21 = scalar_lea.sflag [#allocation5], 1
    %22 = vsyncpa %s21, 0
    loop: start=0, step=1, limit=4
    $region2: #{decoder_block_forward.1} parent=1 // loop_pre_header
      _
    $region3: #{decoder_block_forward.1} parent=1 // loop_header
      %s24 = sphi 0, %s28
      %p25 = scmp.ge.s32.totalorder %s24, 4
      %s34 = sphi 0, %s36
      %s37 = sphi 0, %s34
      %s38 = sphi 0, %s37
      %s54 = sphi 0, %s38
      %s60 = sphi 0, %s62
      %s63 = sphi 0, %s60
      %s64 = sphi 0, %s63
      %s80 = sphi 0, %s64
      %s84 = sphi 0, %s84
      %s86 = sphi 0, %s84
      %s87 = sphi 0, %s86
      %s101 = sphi 0, %s87
      %s105 = sphi 0, %s105
      %s107 = sphi 0, %s105
      %s108 = sphi 0, %s107
      %s122 = sphi 0, %s108
      %s126 = sphi 0, %s126
      %s128 = sphi 0, %s126
      %s129 = sphi 0, %s128
      %s143 = sphi 0, %s129
      %s147 = sphi 0, %s147
      %s149 = sphi 0, %s147
      %s150 = sphi 0, %s149
      %s164 = sphi 0, %s150
      %s168 = sphi 0, %s168
      %s170 = sphi 0, %s168
      %s171 = sphi 0, %s170
      %s185 = sphi 0, %s171
      %s191 = sphi 0, %s193
      %s194 = sphi 0, %s191
      %s195 = sphi 0, %s194
      %s211 = sphi 0, %s195
    $region4: #{decoder_block_forward.1} parent=1 // loop_header_branch
      %27 = sbr.rel (%p25) target = $region8
    $region5: #{decoder_block_forward.1} parent=1 // loop_body
      %s29 = ssub.s32 %s24, 1
      %s30 = ssub.s32 %s24, 2
      %s31 = sadd.s32 %s24, 1
      %s32 = ssub.s32 %s24, %s31
      %p33 = scmp.eq.s32.totalorder %s32, 0
      %s35 = sadd.s32 %s34, 1
      %s36 = scalar_select %p33, %s34, %s35
      %p39 = pneg %p33
      %p40 = scmp.eq.s32.totalorder %s24, 1
      %p41 = por %p39, %p40
      %p42 = scmp.ne.s32.totalorder %s34, %s37
      %p43 = scmp.eq.s32.totalorder %s24, 0
      %p44 = por %p42, %p43
      %p45 = scmp.ne.s32.totalorder %s34, %s37
      %p46 = scmp.eq.s32.totalorder %s29, 1
      %p47 = por %p45, %p46
      %p48 = scmp.ne.s32.totalorder %s37, %s38
      %p49 = scmp.eq.s32.totalorder %s29, 0
      %p50 = por %p48, %p49
      %p51 = scmp.ne.s32.totalorder %s37, %s38
      %p52 = scmp.eq.s32.totalorder %s30, 1
      %p53 = por %p51, %p52
      %p55 = scmp.ne.s32.totalorder %s38, %s54
      %p56 = scmp.eq.s32.totalorder %s30, 0
      %p57 = por %p55, %p56
      %s58 = ssub.s32 %s24, %s31
      %p59 = scmp.eq.s32.totalorder %s58, 0
      %s61 = sadd.s32 %s60, 1
      %s62 = scalar_select %p59, %s60, %s61
      %p65 = pneg %p59
      %p66 = scmp.eq.s32.totalorder %s24, 1
      %p67 = por %p65, %p66
      %p68 = scmp.ne.s32.totalorder %s60, %s63
      %p69 = scmp.eq.s32.totalorder %s24, 0
      %p70 = por %p68, %p69
      %p71 = scmp.ne.s32.totalorder %s60, %s63
      %p72 = scmp.eq.s32.totalorder %s29, 1
      %p73 = por %p71, %p72
      %p74 = scmp.ne.s32.totalorder %s63, %s64
      %p75 = scmp.eq.s32.totalorder %s29, 0
      %p76 = por %p74, %p75
      %p77 = scmp.ne.s32.totalorder %s63, %s64
      %p78 = scmp.eq.s32.totalorder %s30, 1
      %p79 = por %p77, %p78
      %p81 = scmp.ne.s32.totalorder %s64, %s80
      %p82 = scmp.eq.s32.totalorder %s30, 0
      %p83 = por %p81, %p82
      %s85 = sadd.s32 %s84, 1
      %p88 = scmp.eq.s32.totalorder %s24, 1
      %p89 = scmp.ne.s32.totalorder %s84, %s86
      %p90 = scmp.eq.s32.totalorder %s24, 0
      %p91 = por %p89, %p90
      %p92 = scmp.ne.s32.totalorder %s84, %s86
      %p93 = scmp.eq.s32.totalorder %s29, 1
      %p94 = por %p92, %p93
      %p95 = scmp.ne.s32.totalorder %s86, %s87
      %p96 = scmp.eq.s32.totalorder %s29, 0
      %p97 = por %p95, %p96
      %p98 = scmp.ne.s32.totalorder %s86, %s87
      %p99 = scmp.eq.s32.totalorder %s30, 1
      %p100 = por %p98, %p99
      %p102 = scmp.ne.s32.totalorder %s87, %s101
      %p103 = scmp.eq.s32.totalorder %s30, 0
      %p104 = por %p102, %p103
      %s106 = sadd.s32 %s105, 1
      %p109 = scmp.eq.s32.totalorder %s24, 1
      %p110 = scmp.ne.s32.totalorder %s105, %s107
      %p111 = scmp.eq.s32.totalorder %s24, 0
      %p112 = por %p110, %p111
      %p113 = scmp.ne.s32.totalorder %s105, %s107
      %p114 = scmp.eq.s32.totalorder %s29, 1
      %p115 = por %p113, %p114
      %p116 = scmp.ne.s32.totalorder %s107, %s108
      %p117 = scmp.eq.s32.totalorder %s29, 0
      %p118 = por %p116, %p117
      %p119 = scmp.ne.s32.totalorder %s107, %s108
      %p120 = scmp.eq.s32.totalorder %s30, 1
      %p121 = por %p119, %p120
      %p123 = scmp.ne.s32.totalorder %s108, %s122
      %p124 = scmp.eq.s32.totalorder %s30, 0
      %p125 = por %p123, %p124
      %s127 = sadd.s32 %s126, 1
      %p130 = scmp.eq.s32.totalorder %s24, 1
      %p131 = scmp.ne.s32.totalorder %s126, %s128
      %p132 = scmp.eq.s32.totalorder %s24, 0
      %p133 = por %p131, %p132
      %p134 = scmp.ne.s32.totalorder %s126, %s128
      %p135 = scmp.eq.s32.totalorder %s29, 1
      %p136 = por %p134, %p135
      %p137 = scmp.ne.s32.totalorder %s128, %s129
      %p138 = scmp.eq.s32.totalorder %s29, 0
      %p139 = por %p137, %p138
      %p140 = scmp.ne.s32.totalorder %s128, %s129
      %p141 = scmp.eq.s32.totalorder %s30, 1
      %p142 = por %p140, %p141
      %p144 = scmp.ne.s32.totalorder %s129, %s143
      %p145 = scmp.eq.s32.totalorder %s30, 0
      %p146 = por %p144, %p145
      %s148 = sadd.s32 %s147, 1
      %p151 = scmp.eq.s32.totalorder %s24, 1
      %p152 = scmp.ne.s32.totalorder %s147, %s149
      %p153 = scmp.eq.s32.totalorder %s24, 0
      %p154 = por %p152, %p153
      %p155 = scmp.ne.s32.totalorder %s147, %s149
      %p156 = scmp.eq.s32.totalorder %s29, 1
      %p157 = por %p155, %p156
      %p158 = scmp.ne.s32.totalorder %s149, %s150
      %p159 = scmp.eq.s32.totalorder %s29, 0
      %p160 = por %p158, %p159
      %p161 = scmp.ne.s32.totalorder %s149, %s150
      %p162 = scmp.eq.s32.totalorder %s30, 1
      %p163 = por %p161, %p162
      %p165 = scmp.ne.s32.totalorder %s150, %s164
      %p166 = scmp.eq.s32.totalorder %s30, 0
      %p167 = por %p165, %p166
      %s169 = sadd.s32 %s168, 1
      %p172 = scmp.eq.s32.totalorder %s24, 1
      %p173 = scmp.ne.s32.totalorder %s168, %s170
      %p174 = scmp.eq.s32.totalorder %s24, 0
      %p175 = por %p173, %p174
      %p176 = scmp.ne.s32.totalorder %s168, %s170
      %p177 = scmp.eq.s32.totalorder %s29, 1
      %p178 = por %p176, %p177
      %p179 = scmp.ne.s32.totalorder %s170, %s171
      %p180 = scmp.eq.s32.totalorder %s29, 0
      %p181 = por %p179, %p180
      %p182 = scmp.ne.s32.totalorder %s170, %s171
      %p183 = scmp.eq.s32.totalorder %s30, 1
      %p184 = por %p182, %p183
      %p186 = scmp.ne.s32.totalorder %s171, %s185
      %p187 = scmp.eq.s32.totalorder %s30, 0
      %p188 = por %p186, %p187
      %s189 = ssub.s32 %s24, %s31
      %p190 = scmp.eq.s32.totalorder %s189, 0
      %s192 = sadd.s32 %s191, 1
      %s193 = scalar_select %p190, %s191, %s192
      %p196 = pneg %p190
      %p197 = scmp.eq.s32.totalorder %s24, 1
      %p198 = por %p196, %p197
      %p199 = scmp.ne.s32.totalorder %s191, %s194
      %p200 = scmp.eq.s32.totalorder %s24, 0
      %p201 = por %p199, %p200
      %p202 = scmp.ne.s32.totalorder %s191, %s194
      %p203 = scmp.eq.s32.totalorder %s29, 1
      %p204 = por %p202, %p203
      %p205 = scmp.ne.s32.totalorder %s194, %s195
      %p206 = scmp.eq.s32.totalorder %s29, 0
      %p207 = por %p205, %p206
      %p208 = scmp.ne.s32.totalorder %s194, %s195
      %p209 = scmp.eq.s32.totalorder %s30, 1
      %p210 = por %p208, %p209
      %p212 = scmp.ne.s32.totalorder %s195, %s211
      %p213 = scmp.eq.s32.totalorder %s30, 0
      %p214 = por %p212, %p213
      %p215 = scmp.le.s32.totalorder 1, %s24
      %p216 = scmp.lt.s32.totalorder %s24, 3
      %p217 = pnand %p215, %p216
      %p218 = pneg %p217
      // Predicated region
      $region9: #{decoder_block_forward.1} parent=5 // pred_check
        _
      $region10: #{decoder_block_forward.1} parent=5 // pred_check_branch
        %220 = sbr.rel (%p217) target = $region12
      $region11: #{decoder_block_forward.1} parent=5 // pred_region
        %s221 = ssub.s32 %s24, 1
        // Predicated region
        $region13: #{decoder_block_forward.1} parent=11 // pred_check
          %p222 = pneg %p97
        $region14: #{decoder_block_forward.1} parent=11 // pred_check_branch
          %224 = sbr.rel (%p222) target = $region16
        $region15: #{decoder_block_forward.1} parent=11 // pred_region
          %s226 = ssub.s32 9792, 9792
          %227 = vsyncadd [#allocation7], %s226
          %s228 = sshll.u32 [#allocation8], 4
          %s229 = int_to_ptr.vmem [resolvable:$true] %s228
          %234 = dma.hbm_to_vmem [thread:$0]  %s2, 9792, %s229, [#allocation7], 192, 192, 12
        $region16: #{decoder_block_forward.1} parent=11 // pred_fallthru
          _
        // Predicated region
        $region17: #{decoder_block_forward.1} parent=11 // pred_check
          %p235 = pneg %p118
        $region18: #{decoder_block_forward.1} parent=11 // pred_check_branch
          %237 = sbr.rel (%p235) target = $region20
        $region19: #{decoder_block_forward.1} parent=11 // pred_region
          %s239 = ssub.s32 9792, 9792
          %240 = vsyncadd [#allocation10], %s239
          %s241 = sshll.u32 [#allocation9], 4
          %s242 = int_to_ptr.vmem [resolvable:$true] %s241
          %247 = dma.hbm_to_vmem [thread:$0]  %s3, 9792, %s242, [#allocation10], 192, 192, 12
        $region20: #{decoder_block_forward.1} parent=11 // pred_fallthru
          _
        // Predicated region
        $region21: #{decoder_block_forward.1} parent=11 // pred_check
          %p248 = pneg %p139
        $region22: #{decoder_block_forward.1} parent=11 // pred_check_branch
          %250 = sbr.rel (%p248) target = $region24
        $region23: #{decoder_block_forward.1} parent=11 // pred_region
          %s252 = ssub.s32 13056, 13056
          %253 = vsyncadd [#allocation10], %s252
          %s254 = sshll.u32 [#allocation11], 4
          %s255 = int_to_ptr.vmem [resolvable:$true] %s254
          %260 = dma.hbm_to_vmem [thread:$0]  %s4, 13056, %s255, [#allocation10], 128, 128, 8
        $region24: #{decoder_block_forward.1} parent=11 // pred_fallthru
          _
        // Predicated region
        $region25: #{decoder_block_forward.1} parent=11 // pred_check
          %p261 = pneg %p160
        $region26: #{decoder_block_forward.1} parent=11 // pred_check_branch
          %263 = sbr.rel (%p261) target = $region28
        $region27: #{decoder_block_forward.1} parent=11 // pred_region
          %s265 = ssub.s32 48, 48
          %266 = vsyncadd [#allocation13], %s265
          %s268 = sshll.u32 [#allocation12], 4
          %s269 = int_to_ptr.vmem [resolvable:$true] %s268
          %271 = dma.hbm_to_vmem [thread:$0]  %s5, 48, %s269, [#allocation13]
        $region28: #{decoder_block_forward.1} parent=11 // pred_fallthru
          _
        // Predicated region
        $region29: #{decoder_block_forward.1} parent=11 // pred_check
          %p272 = pneg %p181
        $region30: #{decoder_block_forward.1} parent=11 // pred_check_branch
          %274 = sbr.rel (%p272) target = $region32
        $region31: #{decoder_block_forward.1} parent=11 // pred_region
          %s276 = ssub.s32 32, 32
          %277 = vsyncadd [#allocation13], %s276
          %s279 = sshll.u32 [#allocation14], 4
          %s280 = int_to_ptr.vmem [resolvable:$true] %s279
          %282 = dma.hbm_to_vmem [thread:$0]  %s6, 32, %s280, [#allocation13]
        $region32: #{decoder_block_forward.1} parent=11 // pred_fallthru
          _
      $region12: #{decoder_block_forward.1} parent=5 // pred_fallthru
        _
      %p283 = scmp.lt.s32.totalorder %s24, 2
      // Predicated region
      $region33: #{decoder_block_forward.1} parent=5 // pred_check
        %p284 = pneg %p283
      $region34: #{decoder_block_forward.1} parent=5 // pred_check_branch
        %286 = sbr.rel (%p284) target = $region36
      $region35: #{decoder_block_forward.1} parent=5 // pred_region
        // Predicated region
        $region37: #{decoder_block_forward.1} parent=35 // pred_check
          %p287 = pneg %p44
        $region38: #{decoder_block_forward.1} parent=35 // pred_check_branch
          %289 = sbr.rel (%p287) target = $region40
        $region39: #{decoder_block_forward.1} parent=35 // pred_region
          %s290 = sand.u32 %s34, 1
          %s291 = scalar_lea.sflag [#allocation4], %s290
          %s292 = sand.u32 %s34, 1
          %s293 = smul.addr %s292, 40
          %s294 = scalar_lea.vmem [#allocation3], %s293
          %s296 = ssub.s32 640, 640
          %297 = vsyncadd %s291, %s296
          %s298 = smul.addr %s24, 10
          %s299 = smul.addr %s298, 64
          %s300 = scalar_lea.hbm %s0, %s299
          %s301 = sshll.u32 %s294, 4
          %s302 = int_to_ptr.vmem [resolvable:$true] %s301
          %307 = dma.hbm_to_vmem [thread:$0]  %s300, 640, %s302, %s291, 128, 128, 8
        $region40: #{decoder_block_forward.1} parent=35 // pred_fallthru
          _
        // Predicated region
        $region41: #{decoder_block_forward.1} parent=35 // pred_check
          %p308 = pneg %p70
        $region42: #{decoder_block_forward.1} parent=35 // pred_check_branch
          %310 = sbr.rel (%p308) target = $region44
        $region43: #{decoder_block_forward.1} parent=35 // pred_region
          %s311 = sand.u32 %s24, 1
          %s312 = scalar_lea.sflag [#allocation7], %s311
          %s313 = sand.u32 %s60, 1
          %s314 = smul.addr %s313, 40
          %s315 = scalar_lea.vmem [#allocation6], %s314
          %s317 = ssub.s32 640, 640
          %318 = vsyncadd %s312, %s317
          %s319 = smul.addr %s24, 10
          %s320 = smul.addr %s319, 64
          %s321 = scalar_lea.hbm %s1, %s320
          %s322 = sshll.u32 %s315, 4
          %s323 = int_to_ptr.vmem [resolvable:$true] %s322
          %328 = dma.hbm_to_vmem [thread:$0]  %s321, 640, %s323, %s312, 128, 128, 8
        $region44: #{decoder_block_forward.1} parent=35 // pred_fallthru
          _
      $region36: #{decoder_block_forward.1} parent=5 // pred_fallthru
        _
      %p329 = scmp.le.s32.totalorder 1, %s24
      %p330 = scmp.lt.s32.totalorder %s24, 3
      %p331 = pnand %p329, %p330
      %p332 = pneg %p331
      // Predicated region
      $region45: #{decoder_block_forward.1} parent=5 // pred_check
        _
      $region46: #{decoder_block_forward.1} parent=5 // pred_check_branch
        %334 = sbr.rel (%p331) target = $region48
      $region47: #{decoder_block_forward.1} parent=5 // pred_region
        %s335 = ssub.s32 %s24, 1
        %s336 = sand.u32 %s37, 1
        %s337 = scalar_lea.sflag [#allocation4], %s336
        %s338 = sand.u32 %s37, 1
        %s339 = smul.addr %s338, 40
        %s340 = scalar_lea.vmem [#allocation3], %s339
        // Predicated region
        $region49: #{decoder_block_forward.1} parent=47 // pred_check
          %p341 = pneg %p50
        $region50: #{decoder_block_forward.1} parent=47 // pred_check_branch
          %343 = sbr.rel (%p341) target = $region52
        $region51: #{decoder_block_forward.1} parent=47 // pred_region
          %344 = dma.done %s337, 640
        $region52: #{decoder_block_forward.1} parent=47 // pred_fallthru
          _
        %s345 = sand.u32 %s29, 1
        %s346 = scalar_lea.sflag [#allocation7], %s345
        %s347 = sand.u32 %s63, 1
        %s348 = smul.addr %s347, 40
        %s349 = scalar_lea.vmem [#allocation6], %s348
        // Predicated region
        $region53: #{decoder_block_forward.1} parent=47 // pred_check
          %p350 = pneg %p76
        $region54: #{decoder_block_forward.1} parent=47 // pred_check_branch
          %352 = sbr.rel (%p350) target = $region56
        $region55: #{decoder_block_forward.1} parent=47 // pred_region
          %353 = dma.done %s346, 640
        $region56: #{decoder_block_forward.1} parent=47 // pred_fallthru
          _
        // Predicated region
        $region57: #{decoder_block_forward.1} parent=47 // pred_check
          %p354 = pneg %p97
        $region58: #{decoder_block_forward.1} parent=47 // pred_check_branch
          %356 = sbr.rel (%p354) target = $region60
        $region59: #{decoder_block_forward.1} parent=47 // pred_region
          %357 = dma.done [#allocation7], 9792
        $region60: #{decoder_block_forward.1} parent=47 // pred_fallthru
          _
        // Predicated region
        $region61: #{decoder_block_forward.1} parent=47 // pred_check
          %p358 = pneg %p118
        $region62: #{decoder_block_forward.1} parent=47 // pred_check_branch
          %360 = sbr.rel (%p358) target = $region64
        $region63: #{decoder_block_forward.1} parent=47 // pred_region
          %361 = dma.done [#allocation10], 9792
        $region64: #{decoder_block_forward.1} parent=47 // pred_fallthru
          _
        // Predicated region
        $region65: #{decoder_block_forward.1} parent=47 // pred_check
          %p362 = pneg %p139
        $region66: #{decoder_block_forward.1} parent=47 // pred_check_branch
          %364 = sbr.rel (%p362) target = $region68
        $region67: #{decoder_block_forward.1} parent=47 // pred_region
          %365 = dma.done [#allocation10], 13056
        $region68: #{decoder_block_forward.1} parent=47 // pred_fallthru
          _
        // Predicated region
        $region69: #{decoder_block_forward.1} parent=47 // pred_check
          %p366 = pneg %p160
        $region70: #{decoder_block_forward.1} parent=47 // pred_check_branch
          %368 = sbr.rel (%p366) target = $region72
        $region71: #{decoder_block_forward.1} parent=47 // pred_region
          %369 = dma.done [#allocation13], 48
        $region72: #{decoder_block_forward.1} parent=47 // pred_fallthru
          _
        // Predicated region
        $region73: #{decoder_block_forward.1} parent=47 // pred_check
          %p370 = pneg %p181
        $region74: #{decoder_block_forward.1} parent=47 // pred_check_branch
          %372 = sbr.rel (%p370) target = $region76
        $region75: #{decoder_block_forward.1} parent=47 // pred_region
          %373 = dma.done [#allocation13], 32
        $region76: #{decoder_block_forward.1} parent=47 // pred_fallthru
          _
        %s374 = sand.u32 %s37, 1
        %s375 = scalar_lea.sflag [#allocation4], %s374
        %s376 = sand.u32 %s37, 1
        %s377 = smul.addr %s376, 40
        %s378 = scalar_lea.vmem [#allocation3], %s377
        %p379 = pneg %p50
        %p380 = pneg %p47
        %s381 = sand.u32 %s29, 1
        %s382 = scalar_lea.sflag [#allocation7], %s381
        %s383 = sand.u32 %s63, 1
        %s384 = smul.addr %s383, 40
        %s385 = scalar_lea.vmem [#allocation6], %s384
        %p386 = pneg %p76
        %p387 = pneg %p73
        %p388 = pneg %p97
        %p389 = pneg %p94
        %p390 = pneg %p118
        %p391 = pneg %p115
        %p392 = pneg %p139
        %p393 = pneg %p136
        %p394 = pneg %p160
        %p395 = pneg %p157
        %p396 = pneg %p181
        %p397 = pneg %p178
        %p398 = pneg %p207
        %p399 = pneg %p204
        %s400 = sand.u32 %s194, 1
        %s401 = scalar_lea.sflag [#allocation5], %s400
        %s402 = sand.u32 %s194, 1
        %s403 = smul.addr %s402, 64
        %s404 = scalar_lea.vmem [#allocation15], %s403
        %v406 = vld [vmem:[%s340] sm:$0xff]
        %v407 = vld [vmem:[%s340 + $0x8] sm:$0xff]
        %v408 = vld [vmem:[%s340 + $0x10] sm:$0xff]
        %v409 = vld [vmem:[%s340 + $0x18] sm:$0xff]
        %v410 = vld [vmem:[%s340 + $0x20] sm:$0x11]
        %v411 = vld [vmem:[%s349] sm:$0xff]
        %v412 = vld [vmem:[%s349 + $0x8] sm:$0xff]
        %v413 = vld [vmem:[%s349 + $0x10] sm:$0xff]
        %v414 = vld [vmem:[%s349 + $0x18] sm:$0xff]
        %v415 = vld [vmem:[%s349 + $0x20] sm:$0x11]
        %v416 = vld [vmem:[#allocation8] sm:$0xff]
        %v417 = vld [vmem:[#allocation8 + $0x8] sm:$0xf]
        %v418 = vld [vmem:[#allocation8 + $0xc] sm:$0xff]
        %v419 = vld [vmem:[#allocation8 + $0x14] sm:$0xf]
        %v420 = vld [vmem:[#allocation8 + $0x18] sm:$0xff]
        %v421 = vld [vmem:[#allocation8 + $0x20] sm:$0xf]
        %v422 = vld [vmem:[#allocation8 + $0x24] sm:$0xff]
        %v423 = vld [vmem:[#allocation8 + $0x2c] sm:$0xf]
        %v424 = vld [vmem:[#allocation8 + $0x30] sm:$0xff]
        %v425 = vld [vmem:[#allocation8 + $0x38] sm:$0xf]
        %v426 = vld [vmem:[#allocation8 + $0x3c] sm:$0xff]
        %v427 = vld [vmem:[#allocation8 + $0x44] sm:$0xf]
        %v428 = vld [vmem:[#allocation8 + $0x48] sm:$0xff]
        %v429 = vld [vmem:[#allocation8 + $0x50] sm:$0xf]
        %v430 = vld [vmem:[#allocation8 + $0x54] sm:$0xff]
        %v431 = vld [vmem:[#allocation8 + $0x5c] sm:$0xf]
        %v432 = vld [vmem:[#allocation8 + $0x60] sm:$0xff]
        %v433 = vld [vmem:[#allocation8 + $0x68] sm:$0xf]
        %v434 = vld [vmem:[#allocation8 + $0x6c] sm:$0xff]
        %v435 = vld [vmem:[#allocation8 + $0x74] sm:$0xf]
        %v436 = vld [vmem:[#allocation8 + $0x78] sm:$0xff]
        %v437 = vld [vmem:[#allocation8 + $0x80] sm:$0xf]
        %v438 = vld [vmem:[#allocation8 + $0x84] sm:$0xff]
        %v439 = vld [vmem:[#allocation8 + $0x8c] sm:$0xf]
        %v440 = vld [vmem:[#allocation8 + $0x90] sm:$0xff]
        %v441 = vld [vmem:[#allocation8 + $0x98] sm:$0xf]
        %v442 = vld [vmem:[#allocation8 + $0x9c] sm:$0xff]
        %v443 = vld [vmem:[#allocation8 + $0xa4] sm:$0xf]
        %v444 = vld [vmem:[#allocation8 + $0xa8] sm:$0xff]
        %v445 = vld [vmem:[#allocation8 + $0xb0] sm:$0xf]
        %v446 = vld [vmem:[#allocation8 + $0xb4] sm:$0xff]
        %v447 = vld [vmem:[#allocation8 + $0xbc] sm:$0xf]
        %v448 = vld [vmem:[#allocation8 + $0xc0] sm:$0xff]
        %v449 = vld [vmem:[#allocation8 + $0xc8] sm:$0xf]
        %v450 = vld [vmem:[#allocation9] sm:$0xff]
        %v451 = vld [vmem:[#allocation9 + $0x8] sm:$0xf]
        %v452 = vld [vmem:[#allocation9 + $0xc] sm:$0xff]
        %v453 = vld [vmem:[#allocation9 + $0x14] sm:$0xf]
        %v454 = vld [vmem:[#allocation9 + $0x18] sm:$0xff]
        %v455 = vld [vmem:[#allocation9 + $0x20] sm:$0xf]
        %v456 = vld [vmem:[#allocation9 + $0x24] sm:$0xff]
        %v457 = vld [vmem:[#allocation9 + $0x2c] sm:$0xf]
        %v458 = vld [vmem:[#allocation9 + $0x30] sm:$0xff]
        %v459 = vld [vmem:[#allocation9 + $0x38] sm:$0xf]
        %v460 = vld [vmem:[#allocation9 + $0x3c] sm:$0xff]
        %v461 = vld [vmem:[#allocation9 + $0x44] sm:$0xf]
        %v462 = vld [vmem:[#allocation9 + $0x48] sm:$0xff]
        %v463 = vld [vmem:[#allocation9 + $0x50] sm:$0xf]
        %v464 = vld [vmem:[#allocation9 + $0x54] sm:$0xff]
        %v465 = vld [vmem:[#allocation9 + $0x5c] sm:$0xf]
        %v466 = vld [vmem:[#allocation9 + $0x60] sm:$0xff]
        %v467 = vld [vmem:[#allocation9 + $0x68] sm:$0xf]
        %v468 = vld [vmem:[#allocation9 + $0x6c] sm:$0xff]
        %v469 = vld [vmem:[#allocation9 + $0x74] sm:$0xf]
        %v470 = vld [vmem:[#allocation9 + $0x78] sm:$0xff]
        %v471 = vld [vmem:[#allocation9 + $0x80] sm:$0xf]
        %v472 = vld [vmem:[#allocation9 + $0x84] sm:$0xff]
        %v473 = vld [vmem:[#allocation9 + $0x8c] sm:$0xf]
        %v474 = vld [vmem:[#allocation9 + $0x90] sm:$0xff]
        %v475 = vld [vmem:[#allocation9 + $0x98] sm:$0xf]
        %v476 = vld [vmem:[#allocation9 + $0x9c] sm:$0xff]
        %v477 = vld [vmem:[#allocation9 + $0xa4] sm:$0xf]
        %v478 = vld [vmem:[#allocation9 + $0xa8] sm:$0xff]
        %v479 = vld [vmem:[#allocation9 + $0xb0] sm:$0xf]
        %v480 = vld [vmem:[#allocation9 + $0xb4] sm:$0xff]
        %v481 = vld [vmem:[#allocation9 + $0xbc] sm:$0xf]
        %v482 = vld [vmem:[#allocation9 + $0xc0] sm:$0xff]
        %v483 = vld [vmem:[#allocation9 + $0xc8] sm:$0xf]
        %v488 = vunpack.c.l.b16 %v411
        %v489 = vunpack.c.h.b16 %v411
        %v490 = vunpack.c.l.b16 %v412
        %v491 = vunpack.c.h.b16 %v412
        %v492 = vunpack.c.l.b16 %v413
        %v493 = vunpack.c.h.b16 %v413
        %v494 = vunpack.c.l.b16 %v414
        %v495 = vunpack.c.h.b16 %v414
        %v496 = vpack.c.b16 %v490, %v488
        %v497 = vpack.c.b16 %v491, %v489
        %v498 = vpack.c.b16 %v494, %v492
        %v499 = vpack.c.b16 %v495, %v493
        %v536 = vunpack.c.l.b16 %v450
        %v537 = vunpack.c.h.b16 %v450
        %v538 = vunpack.c.l.b16 %v451
        %v539 = vunpack.c.l.b16 %v452
        %v540 = vunpack.c.h.b16 %v452
        %v541 = vunpack.c.l.b16 %v453
        %v542 = vunpack.c.l.b16 %v454
        %v543 = vunpack.c.h.b16 %v454
        %v544 = vunpack.c.l.b16 %v455
        %v545 = vunpack.c.l.b16 %v456
        %v546 = vunpack.c.h.b16 %v456
        %v547 = vunpack.c.l.b16 %v457
        %v548 = vunpack.c.l.b16 %v458
        %v549 = vunpack.c.h.b16 %v458
        %v550 = vunpack.c.l.b16 %v459
        %v551 = vunpack.c.l.b16 %v460
        %v552 = vunpack.c.h.b16 %v460
        %v553 = vunpack.c.l.b16 %v461
        %v554 = vunpack.c.l.b16 %v462
        %v555 = vunpack.c.h.b16 %v462
        %v556 = vunpack.c.l.b16 %v463
        %v557 = vunpack.c.l.b16 %v464
        %v558 = vunpack.c.h.b16 %v464
        %v559 = vunpack.c.l.b16 %v465
        %v560 = vunpack.c.l.b16 %v466
        %v561 = vunpack.c.h.b16 %v466
        %v562 = vunpack.c.l.b16 %v467
        %v563 = vunpack.c.l.b16 %v468
        %v564 = vunpack.c.h.b16 %v468
        %v565 = vunpack.c.l.b16 %v469
        %v566 = vunpack.c.l.b16 %v470
        %v567 = vunpack.c.h.b16 %v470
        %v568 = vunpack.c.l.b16 %v471
        %v569 = vunpack.c.l.b16 %v472
        %v570 = vunpack.c.h.b16 %v472
        %v571 = vunpack.c.l.b16 %v473
        %v572 = vunpack.c.l.b16 %v474
        %v573 = vunpack.c.h.b16 %v474
        %v574 = vunpack.c.l.b16 %v475
        %v575 = vunpack.c.l.b16 %v476
        %v576 = vunpack.c.h.b16 %v476
        %v577 = vunpack.c.l.b16 %v477
        %v578 = vunpack.c.l.b16 %v478
        %v579 = vunpack.c.h.b16 %v478
        %v580 = vunpack.c.l.b16 %v479
        %v581 = vunpack.c.l.b16 %v480
        %v582 = vunpack.c.h.b16 %v480
        %v583 = vunpack.c.l.b16 %v481
        %v584 = vunpack.c.l.b16 %v482
        %v585 = vunpack.c.h.b16 %v482
        %v586 = vunpack.c.l.b16 %v483
        %v587 = vpack.c.b16 %v539, %v536
        %v588 = vpack.c.b16 %v540, %v537
        %v589 = vpack.c.b16 %v541, %v538
        %v590 = vpack.c.b16 %v545, %v542
        %v591 = vpack.c.b16 %v546, %v543
        %v592 = vpack.c.b16 %v547, %v544
        %v593 = vpack.c.b16 %v551, %v548
        %v594 = vpack.c.b16 %v552, %v549
        %v595 = vpack.c.b16 %v553, %v550
        %v596 = vpack.c.b16 %v557, %v554
        %v597 = vpack.c.b16 %v558, %v555
        %v598 = vpack.c.b16 %v559, %v556
        %v599 = vpack.c.b16 %v563, %v560
        %v600 = vpack.c.b16 %v564, %v561
        %v601 = vpack.c.b16 %v565, %v562
        %v602 = vpack.c.b16 %v569, %v566
        %v603 = vpack.c.b16 %v570, %v567
        %v604 = vpack.c.b16 %v571, %v568
        %v605 = vpack.c.b16 %v575, %v572
        %v606 = vpack.c.b16 %v576, %v573
        %v607 = vpack.c.b16 %v577, %v574
        %v608 = vpack.c.b16 %v581, %v578
        %v609 = vpack.c.b16 %v582, %v579
        %v610 = vpack.c.b16 %v583, %v580
        %v611 = vpack.c.b16 %v584, %v584
        %v612 = vpack.c.b16 %v585, %v585
        %v613 = vpack.c.b16 %v586, %v586
        %vm638 = vcmask 64512
        %v640 = vsel %vm638, %v497, 0
        %v643 = vsel %vm638, %v499, 0
        %vm645 = vcmask 1043456
        %v647 = vsel %vm645, %v611, 0
        %v650 = vsel %vm645, %v612, 0
        %v653 = vsel %vm645, %v613, 0
        %655 = vmatprep.subr.bf16.mxu0 %v588
        %656 = vmatpush1.bf16.msra.mxu0 %v587
        %657 = vmatprep.subr.bf16.mxu0 %v591
        %658 = vmatpush1.bf16.msra.mxu0 %v590
        %659 = vmatprep.subr.bf16.mxu0 %v594
        %660 = vmatpush1.bf16.msra.mxu0 %v593
        %661 = vmatprep.subr.bf16.mxu0 %v597
        %662 = vmatpush1.bf16.msra.mxu0 %v596
        %663 = vmatprep.subr.bf16.mxu0 %v600
        %664 = vmatpush1.bf16.msra.mxu0 %v599
        %665 = vmatprep.subr.bf16.mxu0 %v603
        %666 = vmatpush1.bf16.msra.mxu0 %v602
        %667 = vmatprep.subr.bf16.mxu0 %v606
        %668 = vmatpush1.bf16.msra.mxu0 %v605
        %669 = vmatprep.subr.bf16.mxu0 %v609
        %670 = vmatpush1.bf16.msra.mxu0 %v608
        %671 = vmatprep.subr.bf16.mxu0 %v650
        %672 = vmatpush1.bf16.msra.mxu0 %v647
        %673 = vmatprep.subr.bf16.mxu0 0
        %674 = vmatpush1.bf16.msra.mxu0 0
        %675 = vmatprep.subr.bf16.mxu0 0
        %676 = vmatpush1.bf16.msra.mxu0 0
        %677 = vmatprep.subr.bf16.mxu0 0
        %678 = vmatpush1.bf16.msra.mxu0 0
        %679 = vmatprep.subr.bf16.mxu0 0
        %680 = vmatpush1.bf16.msra.mxu0 0
        %681 = vmatprep.subr.bf16.mxu0 0
        %682 = vmatpush1.bf16.msra.mxu0 0
        %683 = vmatprep.subr.bf16.mxu0 0
        %684 = vmatpush1.bf16.msra.mxu0 0
        %685 = vmatprep.subr.bf16.mxu0 0
        %686 = vmatpush1.bf16.msra.mxu0 0
        %687 = vmatprep.mubr.bf16.mxu0 %v640
        %688 = vmatmul.mubr.bf16.gmra.mrb[0].mxu0 %v496
        %v689 = vpop.f32.mrb[0].mxu0
        %v690 = vadd.f32 0.0, %v689
        %v691 = vpop.f32.mrb[0].mxu0
        %v692 = vadd.f32 0.0, %v691
        %v693 = vpop.f32.mrb[0].mxu0
        %v694 = vadd.f32 0.0, %v693
        %v695 = vpop.f32.mrb[0].mxu0
        %v696 = vadd.f32 0.0, %v695
        %697 = vmatprep.mubr.bf16.mxu0 %v643
        %698 = vmatmul.mubr.bf16.gmra.mrb[0].mxu0 %v498
        %v699 = vpop.f32.mrb[0].mxu0
        %v700 = vadd.f32 0.0, %v699
        %v701 = vpop.f32.mrb[0].mxu0
        %v702 = vadd.f32 0.0, %v701
        %v703 = vpop.f32.mrb[0].mxu0
        %v704 = vadd.f32 0.0, %v703
        %v705 = vpop.f32.mrb[0].mxu0
        %v706 = vadd.f32 0.0, %v705
        %707 = vdwg.mxu0
        %708 = vmatprep.subr.bf16.mxu0 0
        %709 = vmatpush1.bf16.msra.mxu0 %v589
        %710 = vmatprep.subr.bf16.mxu0 0
        %711 = vmatpush1.bf16.msra.mxu0 %v592
        %712 = vmatprep.subr.bf16.mxu0 0
        %713 = vmatpush1.bf16.msra.mxu0 %v595
        %714 = vmatprep.subr.bf16.mxu0 0
        %715 = vmatpush1.bf16.msra.mxu0 %v598
        %716 = vmatprep.subr.bf16.mxu0 0
        %717 = vmatpush1.bf16.msra.mxu0 %v601
        %718 = vmatprep.subr.bf16.mxu0 0
        %719 = vmatpush1.bf16.msra.mxu0 %v604
        %720 = vmatprep.subr.bf16.mxu0 0
        %721 = vmatpush1.bf16.msra.mxu0 %v607
        %722 = vmatprep.subr.bf16.mxu0 0
        %723 = vmatpush1.bf16.msra.mxu0 %v610
        %724 = vmatprep.subr.bf16.mxu0 0
        %725 = vmatpush1.bf16.msra.mxu0 %v653
        %726 = vmatprep.subr.bf16.mxu0 0
        %727 = vmatpush1.bf16.msra.mxu0 0
        %728 = vmatprep.subr.bf16.mxu0 0
        %729 = vmatpush1.bf16.msra.mxu0 0
        %730 = vmatprep.subr.bf16.mxu0 0
        %731 = vmatpush1.bf16.msra.mxu0 0
        %732 = vmatprep.subr.bf16.mxu0 0
        %733 = vmatpush1.bf16.msra.mxu0 0
        %734 = vmatprep.subr.bf16.mxu0 0
        %735 = vmatpush1.bf16.msra.mxu0 0
        %736 = vmatprep.subr.bf16.mxu0 0
        %737 = vmatpush1.bf16.msra.mxu0 0
        %738 = vmatprep.subr.bf16.mxu0 0
        %739 = vmatpush1.bf16.msra.mxu0 0
        %740 = vmatprep.mubr.bf16.mxu0 %v640
        %741 = vmatmul.mubr.bf16.gmra.mrb[0].mxu0 %v496
        %v742 = vpop.f32.mrb[0].mxu0
        %v743 = vadd.f32 0.0, %v742
        %v744 = vpop.f32.mrb[0].mxu0
        %v745 = vpop.f32.mrb[0].mxu0
        %v746 = vadd.f32 0.0, %v745
        %v747 = vpop.f32.mrb[0].mxu0
        %748 = vmatprep.mubr.bf16.mxu0 %v643
        %749 = vmatmul.mubr.bf16.gmra.mrb[0].mxu0 %v498
        %v750 = vpop.f32.mrb[0].mxu0
        %v751 = vadd.f32 0.0, %v750
        %v752 = vpop.f32.mrb[0].mxu0
        %v753 = vpop.f32.mrb[0].mxu0
        %v754 = vadd.f32 0.0, %v753
        %v755 = vpop.f32.mrb[0].mxu0
        %756 = vdwg.mxu0
        %v761 = vunpack.c.l.b16 %v406
        %v762 = vunpack.c.h.b16 %v406
        %v763 = vunpack.c.l.b16 %v407
        %v764 = vunpack.c.h.b16 %v407
        %v765 = vunpack.c.l.b16 %v408
        %v766 = vunpack.c.h.b16 %v408
        %v767 = vunpack.c.l.b16 %v409
        %v768 = vunpack.c.h.b16 %v409
        %v769 = vpack.c.b16 %v763, %v761
        %v770 = vpack.c.b16 %v764, %v762
        %v771 = vpack.c.b16 %v767, %v765
        %v772 = vpack.c.b16 %v768, %v766
        %v809 = vunpack.c.l.b16 %v416
        %v810 = vunpack.c.h.b16 %v416
        %v811 = vunpack.c.l.b16 %v417
        %v812 = vunpack.c.l.b16 %v418
        %v813 = vunpack.c.h.b16 %v418
        %v814 = vunpack.c.l.b16 %v419
        %v815 = vunpack.c.l.b16 %v420
        %v816 = vunpack.c.h.b16 %v420
        %v817 = vunpack.c.l.b16 %v421
        %v818 = vunpack.c.l.b16 %v422
        %v819 = vunpack.c.h.b16 %v422
        %v820 = vunpack.c.l.b16 %v423
        %v821 = vunpack.c.l.b16 %v424
        %v822 = vunpack.c.h.b16 %v424
        %v823 = vunpack.c.l.b16 %v425
        %v824 = vunpack.c.l.b16 %v426
        %v825 = vunpack.c.h.b16 %v426
        %v826 = vunpack.c.l.b16 %v427
        %v827 = vunpack.c.l.b16 %v428
        %v828 = vunpack.c.h.b16 %v428
        %v829 = vunpack.c.l.b16 %v429
        %v830 = vunpack.c.l.b16 %v430
        %v831 = vunpack.c.h.b16 %v430
        %v832 = vunpack.c.l.b16 %v431
        %v833 = vunpack.c.l.b16 %v432
        %v834 = vunpack.c.h.b16 %v432
        %v835 = vunpack.c.l.b16 %v433
        %v836 = vunpack.c.l.b16 %v434
        %v837 = vunpack.c.h.b16 %v434
        %v838 = vunpack.c.l.b16 %v435
        %v839 = vunpack.c.l.b16 %v436
        %v840 = vunpack.c.h.b16 %v436
        %v841 = vunpack.c.l.b16 %v437
        %v842 = vunpack.c.l.b16 %v438
        %v843 = vunpack.c.h.b16 %v438
        %v844 = vunpack.c.l.b16 %v439
        %v845 = vunpack.c.l.b16 %v440
        %v846 = vunpack.c.h.b16 %v440
        %v847 = vunpack.c.l.b16 %v441
        %v848 = vunpack.c.l.b16 %v442
        %v849 = vunpack.c.h.b16 %v442
        %v850 = vunpack.c.l.b16 %v443
        %v851 = vunpack.c.l.b16 %v444
        %v852 = vunpack.c.h.b16 %v444
        %v853 = vunpack.c.l.b16 %v445
        %v854 = vunpack.c.l.b16 %v446
        %v855 = vunpack.c.h.b16 %v446
        %v856 = vunpack.c.l.b16 %v447
        %v857 = vunpack.c.l.b16 %v448
        %v858 = vunpack.c.h.b16 %v448
        %v859 = vunpack.c.l.b16 %v449
        %v860 = vpack.c.b16 %v812, %v809
        %v861 = vpack.c.b16 %v813, %v810
        %v862 = vpack.c.b16 %v814, %v811
        %v863 = vpack.c.b16 %v818, %v815
        %v864 = vpack.c.b16 %v819, %v816
        %v865 = vpack.c.b16 %v820, %v817
        %v866 = vpack.c.b16 %v824, %v821
        %v867 = vpack.c.b16 %v825, %v822
        %v868 = vpack.c.b16 %v826, %v823
        %v869 = vpack.c.b16 %v830, %v827
        %v870 = vpack.c.b16 %v831, %v828
        %v871 = vpack.c.b16 %v832, %v829
        %v872 = vpack.c.b16 %v836, %v833
        %v873 = vpack.c.b16 %v837, %v834
        %v874 = vpack.c.b16 %v838, %v835
        %v875 = vpack.c.b16 %v842, %v839
        %v876 = vpack.c.b16 %v843, %v840
        %v877 = vpack.c.b16 %v844, %v841
        %v878 = vpack.c.b16 %v848, %v845
        %v879 = vpack.c.b16 %v849, %v846
        %v880 = vpack.c.b16 %v850, %v847
        %v881 = vpack.c.b16 %v854, %v851
        %v882 = vpack.c.b16 %v855, %v852
        %v883 = vpack.c.b16 %v856, %v853
        %v884 = vpack.c.b16 %v857, %v857
        %v885 = vpack.c.b16 %v858, %v858
        %v886 = vpack.c.b16 %v859, %v859
        %v912 = vsel %vm638, %v770, 0
        %v915 = vsel %vm638, %v772, 0
        %v918 = vsel %vm645, %v884, 0
        %v921 = vsel %vm645, %v885, 0
        %v924 = vsel %vm645, %v886, 0
        %926 = vmatprep.subr.bf16.mxu0 %v861
        %927 = vmatpush1.bf16.msra.mxu0 %v860
        %928 = vmatprep.subr.bf16.mxu0 %v864
        %929 = vmatpush1.bf16.msra.mxu0 %v863
        %930 = vmatprep.subr.bf16.mxu0 %v867
        %931 = vmatpush1.bf16.msra.mxu0 %v866
        %932 = vmatprep.subr.bf16.mxu0 %v870
        %933 = vmatpush1.bf16.msra.mxu0 %v869
        %934 = vmatprep.subr.bf16.mxu0 %v873
        %935 = vmatpush1.bf16.msra.mxu0 %v872
        %936 = vmatprep.subr.bf16.mxu0 %v876
        %937 = vmatpush1.bf16.msra.mxu0 %v875
        %938 = vmatprep.subr.bf16.mxu0 %v879
        %939 = vmatpush1.bf16.msra.mxu0 %v878
        %940 = vmatprep.subr.bf16.mxu0 %v882
        %941 = vmatpush1.bf16.msra.mxu0 %v881
        %942 = vmatprep.subr.bf16.mxu0 %v921
        %943 = vmatpush1.bf16.msra.mxu0 %v918
        %944 = vmatprep.subr.bf16.mxu0 0
        %945 = vmatpush1.bf16.msra.mxu0 0
        %946 = vmatprep.subr.bf16.mxu0 0
        %947 = vmatpush1.bf16.msra.mxu0 0
        %948 = vmatprep.subr.bf16.mxu0 0
        %949 = vmatpush1.bf16.msra.mxu0 0
        %950 = vmatprep.subr.bf16.mxu0 0
        %951 = vmatpush1.bf16.msra.mxu0 0
        %952 = vmatprep.subr.bf16.mxu0 0
        %953 = vmatpush1.bf16.msra.mxu0 0
        %954 = vmatprep.subr.bf16.mxu0 0
        %955 = vmatpush1.bf16.msra.mxu0 0
        %956 = vmatprep.subr.bf16.mxu0 0
        %957 = vmatpush1.bf16.msra.mxu0 0
        %958 = vmatprep.mubr.bf16.mxu0 %v912
        %959 = vmatmul.mubr.bf16.gmra.mrb[0].mxu0 %v769
        %v960 = vpop.f32.mrb[0].mxu0
        %v961 = vadd.f32 %v690, %v960
        %v962 = vpop.f32.mrb[0].mxu0
        %v963 = vadd.f32 %v692, %v962
        %v964 = vpop.f32.mrb[0].mxu0
        %v965 = vadd.f32 %v694, %v964
        %v966 = vpop.f32.mrb[0].mxu0
        %v967 = vadd.f32 %v696, %v966
        %968 = vmatprep.mubr.bf16.mxu0 %v915
        %969 = vmatmul.mubr.bf16.gmra.mrb[0].mxu0 %v771
        %v970 = vpop.f32.mrb[0].mxu0
        %v971 = vadd.f32 %v700, %v970
        %v972 = vpop.f32.mrb[0].mxu0
        %v973 = vadd.f32 %v702, %v972
        %v974 = vpop.f32.mrb[0].mxu0
        %v975 = vadd.f32 %v704, %v974
        %v976 = vpop.f32.mrb[0].mxu0
        %v977 = vadd.f32 %v706, %v976
        %978 = vdwg.mxu0
        %979 = vmatprep.subr.bf16.mxu0 0
        %980 = vmatpush1.bf16.msra.mxu0 %v862
        %981 = vmatprep.subr.bf16.mxu0 0
        %982 = vmatpush1.bf16.msra.mxu0 %v865
        %983 = vmatprep.subr.bf16.mxu0 0
        %984 = vmatpush1.bf16.msra.mxu0 %v868
        %985 = vmatprep.subr.bf16.mxu0 0
        %986 = vmatpush1.bf16.msra.mxu0 %v871
        %987 = vmatprep.subr.bf16.mxu0 0
        %988 = vmatpush1.bf16.msra.mxu0 %v874
        %989 = vmatprep.subr.bf16.mxu0 0
        %990 = vmatpush1.bf16.msra.mxu0 %v877
        %991 = vmatprep.subr.bf16.mxu0 0
        %992 = vmatpush1.bf16.msra.mxu0 %v880
        %993 = vmatprep.subr.bf16.mxu0 0
        %994 = vmatpush1.bf16.msra.mxu0 %v883
        %995 = vmatprep.subr.bf16.mxu0 0
        %996 = vmatpush1.bf16.msra.mxu0 %v924
        %997 = vmatprep.subr.bf16.mxu0 0
        %998 = vmatpush1.bf16.msra.mxu0 0
        %999 = vmatprep.subr.bf16.mxu0 0
        %1000 = vmatpush1.bf16.msra.mxu0 0
        %1001 = vmatprep.subr.bf16.mxu0 0
        %1002 = vmatpush1.bf16.msra.mxu0 0
        %1003 = vmatprep.subr.bf16.mxu0 0
        %1004 = vmatpush1.bf16.msra.mxu0 0
        %1005 = vmatprep.subr.bf16.mxu0 0
        %1006 = vmatpush1.bf16.msra.mxu0 0
        %1007 = vmatprep.subr.bf16.mxu0 0
        %1008 = vmatpush1.bf16.msra.mxu0 0
        %1009 = vmatprep.subr.bf16.mxu0 0
        %1010 = vmatpush1.bf16.msra.mxu0 0
        %1011 = vmatprep.mubr.bf16.mxu0 %v912
        %1012 = vmatmul.mubr.bf16.gmra.mrb[0].mxu0 %v769
        %v1013 = vpop.f32.mrb[0].mxu0
        %v1014 = vadd.f32 %v743, %v1013
        %v1015 = vpop.f32.mrb[0].mxu0
        %v1016 = vpop.f32.mrb[0].mxu0
        %v1017 = vadd.f32 %v746, %v1016
        %v1018 = vpop.f32.mrb[0].mxu0
        %1019 = vmatprep.mubr.bf16.mxu0 %v915
        %1020 = vmatmul.mubr.bf16.gmra.mrb[0].mxu0 %v771
        %v1021 = vpop.f32.mrb[0].mxu0
        %v1022 = vadd.f32 %v751, %v1021
        %v1023 = vpop.f32.mrb[0].mxu0
        %v1024 = vpop.f32.mrb[0].mxu0
        %v1025 = vadd.f32 %v754, %v1024
        %v1026 = vpop.f32.mrb[0].mxu0
        %1027 = vdwg.mxu0
        %s1028 = scalar_lea.vmem [#allocation8], 204
        %v1029 = vld [vmem:[%s1028] sm:$0xff]
        %v1030 = vld [vmem:[%s1028 + $0x8] sm:$0xf]
        %v1031 = vld [vmem:[%s1028 + $0xc] sm:$0xff]
        %v1032 = vld [vmem:[%s1028 + $0x14] sm:$0xf]
        %v1033 = vld [vmem:[%s1028 + $0x18] sm:$0xff]
        %v1034 = vld [vmem:[%s1028 + $0x20] sm:$0xf]
        %v1035 = vld [vmem:[%s1028 + $0x24] sm:$0xff]
        %v1036 = vld [vmem:[%s1028 + $0x2c] sm:$0xf]
        %v1037 = vld [vmem:[%s1028 + $0x30] sm:$0xff]
        %v1038 = vld [vmem:[%s1028 + $0x38] sm:$0xf]
        %v1039 = vld [vmem:[%s1028 + $0x3c] sm:$0xff]
        %v1040 = vld [vmem:[%s1028 + $0x44] sm:$0xf]
        %v1041 = vld [vmem:[%s1028 + $0x48] sm:$0xff]
        %v1042 = vld [vmem:[%s1028 + $0x50] sm:$0xf]
        %v1043 = vld [vmem:[%s1028 + $0x54] sm:$0xff]
        %v1044 = vld [vmem:[%s1028 + $0x5c] sm:$0xf]
        %v1045 = vld [vmem:[%s1028 + $0x60] sm:$0xff]
        %v1046 = vld [vmem:[%s1028 + $0x68] sm:$0xf]
        %v1047 = vld [vmem:[%s1028 + $0x6c] sm:$0xff]
        %v1048 = vld [vmem:[%s1028 + $0x74] sm:$0xf]
        %v1049 = vld [vmem:[%s1028 + $0x78] sm:$0xff]
        %v1050 = vld [vmem:[%s1028 + $0x80] sm:$0xf]
        %v1051 = vld [vmem:[%s1028 + $0x84] sm:$0xff]
        %v1052 = vld [vmem:[%s1028 + $0x8c] sm:$0xf]
        %v1053 = vld [vmem:[%s1028 + $0x90] sm:$0xff]
        %v1054 = vld [vmem:[%s1028 + $0x98] sm:$0xf]
        %v1055 = vld [vmem:[%s1028 + $0x9c] sm:$0xff]
        %v1056 = vld [vmem:[%s1028 + $0xa4] sm:$0xf]
        %v1057 = vld [vmem:[%s1028 + $0xa8] sm:$0xff]
        %v1058 = vld [vmem:[%s1028 + $0xb0] sm:$0xf]
        %v1059 = vld [vmem:[%s1028 + $0xb4] sm:$0xff]
        %v1060 = vld [vmem:[%s1028 + $0xbc] sm:$0xf]
        %v1061 = vld [vmem:[%s1028 + $0xc0] sm:$0xff]
        %v1062 = vld [vmem:[%s1028 + $0xc8] sm:$0xf]
        %v1064 = vunpack.c.l.b16 %v410
        %v1065 = vunpack.c.h.b16 %v410
        %v1066 = vpack.c.b16 %v1064, %v1064
        %v1067 = vpack.c.b16 %v1065, %v1065
        %vm1068 = vsmask.f32 7424
        %v1070 = vshrl.u32 %v769, 16
        %v1072 = vshll.u32 %v769, 16
        %v1074 = vrot.slane %v1072, 1
        %v1075 = vor.u32 %v1070, %v1074
        %v1077 = vshll.u32 %v771, 16
        %v1079 = vrot.slane %v1077, 1
        %v1080 = vsel %vm1068, %v1075, %v1079
        %v1081 = vshrl.u32 %v770, 16
        %v1083 = vshll.u32 %v770, 16
        %v1085 = vrot.slane %v1083, 1
        %v1086 = vor.u32 %v1081, %v1085
        %v1087 = vshll.u32 %v772, 16
        %v1089 = vrot.slane %v1087, 1
        %v1090 = vsel %vm1068, %v1086, %v1089
        %v1091 = vshrl.u32 %v771, 16
        %v1093 = vor.u32 %v1091, %v1079
        %v1095 = vshll.u32 %v1066, 16
        %v1097 = vrot.slane %v1095, 1
        %v1098 = vsel %vm1068, %v1093, %v1097
        %v1099 = vshrl.u32 %v772, 16
        %v1101 = vor.u32 %v1099, %v1089
        %v1103 = vshll.u32 %v1067, 16
        %v1105 = vrot.slane %v1103, 1
        %v1106 = vsel %vm1068, %v1101, %v1105
        %v1143 = vunpack.c.l.b16 %v1029
        %v1144 = vunpack.c.h.b16 %v1029
        %v1145 = vunpack.c.l.b16 %v1030
        %v1146 = vunpack.c.l.b16 %v1031
        %v1147 = vunpack.c.h.b16 %v1031
        %v1148 = vunpack.c.l.b16 %v1032
        %v1149 = vunpack.c.l.b16 %v1033
        %v1150 = vunpack.c.h.b16 %v1033
        %v1151 = vunpack.c.l.b16 %v1034
        %v1152 = vunpack.c.l.b16 %v1035
        %v1153 = vunpack.c.h.b16 %v1035
        %v1154 = vunpack.c.l.b16 %v1036
        %v1155 = vunpack.c.l.b16 %v1037
        %v1156 = vunpack.c.h.b16 %v1037
        %v1157 = vunpack.c.l.b16 %v1038
        %v1158 = vunpack.c.l.b16 %v1039
        %v1159 = vunpack.c.h.b16 %v1039
        %v1160 = vunpack.c.l.b16 %v1040
        %v1161 = vunpack.c.l.b16 %v1041
        %v1162 = vunpack.c.h.b16 %v1041
        %v1163 = vunpack.c.l.b16 %v1042
        %v1164 = vunpack.c.l.b16 %v1043
        %v1165 = vunpack.c.h.b16 %v1043
        %v1166 = vunpack.c.l.b16 %v1044
        %v1167 = vunpack.c.l.b16 %v1045
        %v1168 = vunpack.c.h.b16 %v1045
        %v1169 = vunpack.c.l.b16 %v1046
        %v1170 = vunpack.c.l.b16 %v1047
        %v1171 = vunpack.c.h.b16 %v1047
        %v1172 = vunpack.c.l.b16 %v1048
        %v1173 = vunpack.c.l.b16 %v1049
        %v1174 = vunpack.c.h.b16 %v1049
        %v1175 = vunpack.c.l.b16 %v1050
        %v1176 = vunpack.c.l.b16 %v1051
        %v1177 = vunpack.c.h.b16 %v1051
        %v1178 = vunpack.c.l.b16 %v1052
        %v1179 = vunpack.c.l.b16 %v1053
        %v1180 = vunpack.c.h.b16 %v1053
        %v1181 = vunpack.c.l.b16 %v1054
        %v1182 = vunpack.c.l.b16 %v1055
        %v1183 = vunpack.c.h.b16 %v1055
        %v1184 = vunpack.c.l.b16 %v1056
        %v1185 = vunpack.c.l.b16 %v1057
        %v1186 = vunpack.c.h.b16 %v1057
        %v1187 = vunpack.c.l.b16 %v1058
        %v1188 = vunpack.c.l.b16 %v1059
        %v1189 = vunpack.c.h.b16 %v1059
        %v1190 = vunpack.c.l.b16 %v1060
        %v1191 = vunpack.c.l.b16 %v1061
        %v1192 = vunpack.c.h.b16 %v1061
        %v1193 = vunpack.c.l.b16 %v1062
        %v1194 = vpack.c.b16 %v1146, %v1143
        %v1195 = vpack.c.b16 %v1147, %v1144
        %v1196 = vpack.c.b16 %v1148, %v1145
        %v1197 = vpack.c.b16 %v1152, %v1149
        %v1198 = vpack.c.b16 %v1153, %v1150
        %v1199 = vpack.c.b16 %v1154, %v1151
        %v1200 = vpack.c.b16 %v1158, %v1155
        %v1201 = vpack.c.b16 %v1159, %v1156
        %v1202 = vpack.c.b16 %v1160, %v1157
        %v1203 = vpack.c.b16 %v1164, %v1161
        %v1204 = vpack.c.b16 %v1165, %v1162
        %v1205 = vpack.c.b16 %v1166, %v1163
        %v1206 = vpack.c.b16 %v1170, %v1167
        %v1207 = vpack.c.b16 %v1171, %v1168
        %v1208 = vpack.c.b16 %v1172, %v1169
        %v1209 = vpack.c.b16 %v1176, %v1173
        %v1210 = vpack.c.b16 %v1177, %v1174
        %v1211 = vpack.c.b16 %v1178, %v1175
        %v1212 = vpack.c.b16 %v1182, %v1179
        %v1213 = vpack.c.b16 %v1183, %v1180
        %v1214 = vpack.c.b16 %v1184, %v1181
        %v1215 = vpack.c.b16 %v1188, %v1185
        %v1216 = vpack.c.b16 %v1189, %v1186
        %v1217 = vpack.c.b16 %v1190, %v1187
        %v1218 = vpack.c.b16 %v1191, %v1191
        %v1219 = vpack.c.b16 %v1192, %v1192
        %v1220 = vpack.c.b16 %v1193, %v1193
        %v1246 = vsel %vm638, %v1090, 0
        %v1249 = vsel %vm638, %v1106, 0
        %v1252 = vsel %vm645, %v1218, 0
        %v1255 = vsel %vm645, %v1219, 0
        %v1258 = vsel %vm645, %v1220, 0
        %1260 = vmatprep.subr.bf16.mxu0 %v1195
        %1261 = vmatpush1.bf16.msra.mxu0 %v1194
        %1262 = vmatprep.subr.bf16.mxu0 %v1198
        %1263 = vmatpush1.bf16.msra.mxu0 %v1197
        %1264 = vmatprep.subr.bf16.mxu0 %v1201
        %1265 = vmatpush1.bf16.msra.mxu0 %v1200
        %1266 = vmatprep.subr.bf16.mxu0 %v1204
        %1267 = vmatpush1.bf16.msra.mxu0 %v1203
        %1268 = vmatprep.subr.bf16.mxu0 %v1207
        %1269 = vmatpush1.bf16.msra.mxu0 %v1206
        %1270 = vmatprep.subr.bf16.mxu0 %v1210
        %1271 = vmatpush1.bf16.msra.mxu0 %v1209
        %1272 = vmatprep.subr.bf16.mxu0 %v1213
        %1273 = vmatpush1.bf16.msra.mxu0 %v1212
        %1274 = vmatprep.subr.bf16.mxu0 %v1216
        %1275 = vmatpush1.bf16.msra.mxu0 %v1215
        %1276 = vmatprep.subr.bf16.mxu0 %v1255
        %1277 = vmatpush1.bf16.msra.mxu0 %v1252
        %1278 = vmatprep.subr.bf16.mxu0 0
        %1279 = vmatpush1.bf16.msra.mxu0 0
        %1280 = vmatprep.subr.bf16.mxu0 0
        %1281 = vmatpush1.bf16.msra.mxu0 0
        %1282 = vmatprep.subr.bf16.mxu0 0
        %1283 = vmatpush1.bf16.msra.mxu0 0
        %1284 = vmatprep.subr.bf16.mxu0 0
        %1285 = vmatpush1.bf16.msra.mxu0 0
        %1286 = vmatprep.subr.bf16.mxu0 0
        %1287 = vmatpush1.bf16.msra.mxu0 0
        %1288 = vmatprep.subr.bf16.mxu0 0
        %1289 = vmatpush1.bf16.msra.mxu0 0
        %1290 = vmatprep.subr.bf16.mxu0 0
        %1291 = vmatpush1.bf16.msra.mxu0 0
        %1292 = vmatprep.mubr.bf16.mxu0 %v1246
        %1293 = vmatmul.mubr.bf16.gmra.mrb[0].mxu0 %v1080
        %v1294 = vpop.f32.mrb[0].mxu0
        %v1295 = vadd.f32 0.0, %v1294
        %v1296 = vpop.f32.mrb[0].mxu0
        %v1297 = vadd.f32 0.0, %v1296
        %v1298 = vpop.f32.mrb[0].mxu0
        %v1299 = vadd.f32 0.0, %v1298
        %v1300 = vpop.f32.mrb[0].mxu0
        %v1301 = vadd.f32 0.0, %v1300
        %1302 = vmatprep.mubr.bf16.mxu0 %v1249
        %1303 = vmatmul.mubr.bf16.gmra.mrb[0].mxu0 %v1098
        %v1304 = vpop.f32.mrb[0].mxu0
        %v1305 = vadd.f32 0.0, %v1304
        %v1306 = vpop.f32.mrb[0].mxu0
        %v1307 = vadd.f32 0.0, %v1306
        %v1308 = vpop.f32.mrb[0].mxu0
        %v1309 = vadd.f32 0.0, %v1308
        %v1310 = vpop.f32.mrb[0].mxu0
        %v1311 = vadd.f32 0.0, %v1310
        %1312 = vdwg.mxu0
        %1313 = vmatprep.subr.bf16.mxu0 0
        %1314 = vmatpush1.bf16.msra.mxu0 %v1196
        %1315 = vmatprep.subr.bf16.mxu0 0
        %1316 = vmatpush1.bf16.msra.mxu0 %v1199
        %1317 = vmatprep.subr.bf16.mxu0 0
        %1318 = vmatpush1.bf16.msra.mxu0 %v1202
        %1319 = vmatprep.subr.bf16.mxu0 0
        %1320 = vmatpush1.bf16.msra.mxu0 %v1205
        %1321 = vmatprep.subr.bf16.mxu0 0
        %1322 = vmatpush1.bf16.msra.mxu0 %v1208
        %1323 = vmatprep.subr.bf16.mxu0 0
        %1324 = vmatpush1.bf16.msra.mxu0 %v1211
        %1325 = vmatprep.subr.bf16.mxu0 0
        %1326 = vmatpush1.bf16.msra.mxu0 %v1214
        %1327 = vmatprep.subr.bf16.mxu0 0
        %1328 = vmatpush1.bf16.msra.mxu0 %v1217
        %1329 = vmatprep.subr.bf16.mxu0 0
        %1330 = vmatpush1.bf16.msra.mxu0 %v1258
        %1331 = vmatprep.subr.bf16.mxu0 0
        %1332 = vmatpush1.bf16.msra.mxu0 0
        %1333 = vmatprep.subr.bf16.mxu0 0
        %1334 = vmatpush1.bf16.msra.mxu0 0
        %1335 = vmatprep.subr.bf16.mxu0 0
        %1336 = vmatpush1.bf16.msra.mxu0 0
        %1337 = vmatprep.subr.bf16.mxu0 0
        %1338 = vmatpush1.bf16.msra.mxu0 0
        %1339 = vmatprep.subr.bf16.mxu0 0
        %1340 = vmatpush1.bf16.msra.mxu0 0
        %1341 = vmatprep.subr.bf16.mxu0 0
        %1342 = vmatpush1.bf16.msra.mxu0 0
        %1343 = vmatprep.subr.bf16.mxu0 0
        %1344 = vmatpush1.bf16.msra.mxu0 0
        %1345 = vmatprep.mubr.bf16.mxu0 %v1246
        %1346 = vmatmul.mubr.bf16.gmra.mrb[0].mxu0 %v1080
        %v1347 = vpop.f32.mrb[0].mxu0
        %v1348 = vadd.f32 0.0, %v1347
        %v1349 = vpop.f32.mrb[0].mxu0
        %v1350 = vpop.f32.mrb[0].mxu0
        %v1351 = vadd.f32 0.0, %v1350
        %v1352 = vpop.f32.mrb[0].mxu0
        %1353 = vmatprep.mubr.bf16.mxu0 %v1249
        %1354 = vmatmul.mubr.bf16.gmra.mrb[0].mxu0 %v1098
        %v1355 = vpop.f32.mrb[0].mxu0
        %v1356 = vadd.f32 0.0, %v1355
        %v1357 = vpop.f32.mrb[0].mxu0
        %v1358 = vpop.f32.mrb[0].mxu0
        %v1359 = vadd.f32 0.0, %v1358
        %v1360 = vpop.f32.mrb[0].mxu0
        %1361 = vdwg.mxu0
        %v1362 = vadd.f32 %v961, %v1295
        %v1363 = vadd.f32 %v963, %v1297
        %v1364 = vadd.f32 %v1014, %v1348
        %v1365 = vadd.f32 %v965, %v1299
        %v1366 = vadd.f32 %v967, %v1301
        %v1367 = vadd.f32 %v1017, %v1351
        %v1368 = vadd.f32 %v971, %v1305
        %v1369 = vadd.f32 %v973, %v1307
        %v1370 = vadd.f32 %v1022, %v1356
        %v1371 = vadd.f32 %v975, %v1309
        %v1372 = vadd.f32 %v977, %v1311
        %v1373 = vadd.f32 %v1025, %v1359
        %s1374 = scalar_lea.vmem [#allocation9], 204
        %v1375 = vld [vmem:[%s1374] sm:$0xff]
        %v1376 = vld [vmem:[%s1374 + $0x8] sm:$0xf]
        %v1377 = vld [vmem:[%s1374 + $0xc] sm:$0xff]
        %v1378 = vld [vmem:[%s1374 + $0x14] sm:$0xf]
        %v1379 = vld [vmem:[%s1374 + $0x18] sm:$0xff]
        %v1380 = vld [vmem:[%s1374 + $0x20] sm:$0xf]
        %v1381 = vld [vmem:[%s1374 + $0x24] sm:$0xff]
        %v1382 = vld [vmem:[%s1374 + $0x2c] sm:$0xf]
        %v1383 = vld [vmem:[%s1374 + $0x30] sm:$0xff]
        %v1384 = vld [vmem:[%s1374 + $0x38] sm:$0xf]
        %v1385 = vld [vmem:[%s1374 + $0x3c] sm:$0xff]
        %v1386 = vld [vmem:[%s1374 + $0x44] sm:$0xf]
        %v1387 = vld [vmem:[%s1374 + $0x48] sm:$0xff]
        %v1388 = vld [vmem:[%s1374 + $0x50] sm:$0xf]
        %v1389 = vld [vmem:[%s1374 + $0x54] sm:$0xff]
        %v1390 = vld [vmem:[%s1374 + $0x5c] sm:$0xf]
        %v1391 = vld [vmem:[%s1374 + $0x60] sm:$0xff]
        %v1392 = vld [vmem:[%s1374 + $0x68] sm:$0xf]
        %v1393 = vld [vmem:[%s1374 + $0x6c] sm:$0xff]
        %v1394 = vld [vmem:[%s1374 + $0x74] sm:$0xf]
        %v1395 = vld [vmem:[%s1374 + $0x78] sm:$0xff]
        %v1396 = vld [vmem:[%s1374 + $0x80] sm:$0xf]
        %v1397 = vld [vmem:[%s1374 + $0x84] sm:$0xff]
        %v1398 = vld [vmem:[%s1374 + $0x8c] sm:$0xf]
        %v1399 = vld [vmem:[%s1374 + $0x90] sm:$0xff]
        %v1400 = vld [vmem:[%s1374 + $0x98] sm:$0xf]
        %v1401 = vld [vmem:[%s1374 + $0x9c] sm:$0xff]
        %v1402 = vld [vmem:[%s1374 + $0xa4] sm:$0xf]
        %v1403 = vld [vmem:[%s1374 + $0xa8] sm:$0xff]
        %v1404 = vld [vmem:[%s1374 + $0xb0] sm:$0xf]
        %v1405 = vld [vmem:[%s1374 + $0xb4] sm:$0xff]
        %v1406 = vld [vmem:[%s1374 + $0xbc] sm:$0xf]
        %v1407 = vld [vmem:[%s1374 + $0xc0] sm:$0xff]
        %v1408 = vld [vmem:[%s1374 + $0xc8] sm:$0xf]
        %v1410 = vunpack.c.l.b16 %v415
        %v1411 = vunpack.c.h.b16 %v415
        %v1412 = vpack.c.b16 %v1410, %v1410
        %v1413 = vpack.c.b16 %v1411, %v1411
        %v1415 = vshrl.u32 %v496, 16
        %v1417 = vshll.u32 %v496, 16
        %v1419 = vrot.slane %v1417, 1
        %v1420 = vor.u32 %v1415, %v1419
        %v1422 = vshll.u32 %v498, 16
        %v1424 = vrot.slane %v1422, 1
        %v1425 = vsel %vm1068, %v1420, %v1424
        %v1426 = vshrl.u32 %v497, 16
        %v1428 = vshll.u32 %v497, 16
        %v1430 = vrot.slane %v1428, 1
        %v1431 = vor.u32 %v1426, %v1430
        %v1432 = vshll.u32 %v499, 16
        %v1434 = vrot.slane %v1432, 1
        %v1435 = vsel %vm1068, %v1431, %v1434
        %v1436 = vshrl.u32 %v498, 16
        %v1438 = vor.u32 %v1436, %v1424
        %v1440 = vshll.u32 %v1412, 16
        %v1442 = vrot.slane %v1440, 1
        %v1443 = vsel %vm1068, %v1438, %v1442
        %v1444 = vshrl.u32 %v499, 16
        %v1446 = vor.u32 %v1444, %v1434
        %v1448 = vshll.u32 %v1413, 16
        %v1450 = vrot.slane %v1448, 1
        %v1451 = vsel %vm1068, %v1446, %v1450
        %v1488 = vunpack.c.l.b16 %v1375
        %v1489 = vunpack.c.h.b16 %v1375
        %v1490 = vunpack.c.l.b16 %v1376
        %v1491 = vunpack.c.l.b16 %v1377
        %v1492 = vunpack.c.h.b16 %v1377
        %v1493 = vunpack.c.l.b16 %v1378
        %v1494 = vunpack.c.l.b16 %v1379
        %v1495 = vunpack.c.h.b16 %v1379
        %v1496 = vunpack.c.l.b16 %v1380
        %v1497 = vunpack.c.l.b16 %v1381
        %v1498 = vunpack.c.h.b16 %v1381
        %v1499 = vunpack.c.l.b16 %v1382
        %v1500 = vunpack.c.l.b16 %v1383
        %v1501 = vunpack.c.h.b16 %v1383
        %v1502 = vunpack.c.l.b16 %v1384
        %v1503 = vunpack.c.l.b16 %v1385
        %v1504 = vunpack.c.h.b16 %v1385
        %v1505 = vunpack.c.l.b16 %v1386
        %v1506 = vunpack.c.l.b16 %v1387
        %v1507 = vunpack.c.h.b16 %v1387
        %v1508 = vunpack.c.l.b16 %v1388
        %v1509 = vunpack.c.l.b16 %v1389
        %v1510 = vunpack.c.h.b16 %v1389
        %v1511 = vunpack.c.l.b16 %v1390
        %v1512 = vunpack.c.l.b16 %v1391
        %v1513 = vunpack.c.h.b16 %v1391
        %v1514 = vunpack.c.l.b16 %v1392
        %v1515 = vunpack.c.l.b16 %v1393
        %v1516 = vunpack.c.h.b16 %v1393
        %v1517 = vunpack.c.l.b16 %v1394
        %v1518 = vunpack.c.l.b16 %v1395
        %v1519 = vunpack.c.h.b16 %v1395
        %v1520 = vunpack.c.l.b16 %v1396
        %v1521 = vunpack.c.l.b16 %v1397
        %v1522 = vunpack.c.h.b16 %v1397
        %v1523 = vunpack.c.l.b16 %v1398
        %v1524 = vunpack.c.l.b16 %v1399
        %v1525 = vunpack.c.h.b16 %v1399
        %v1526 = vunpack.c.l.b16 %v1400
        %v1527 = vunpack.c.l.b16 %v1401
        %v1528 = vunpack.c.h.b16 %v1401
        %v1529 = vunpack.c.l.b16 %v1402
        %v1530 = vunpack.c.l.b16 %v1403
        %v1531 = vunpack.c.h.b16 %v1403
        %v1532 = vunpack.c.l.b16 %v1404
        %v1533 = vunpack.c.l.b16 %v1405
        %v1534 = vunpack.c.h.b16 %v1405
        %v1535 = vunpack.c.l.b16 %v1406
        %v1536 = vunpack.c.l.b16 %v1407
        %v1537 = vunpack.c.h.b16 %v1407
        %v1538 = vunpack.c.l.b16 %v1408
        %v1539 = vpack.c.b16 %v1491, %v1488
        %v1540 = vpack.c.b16 %v1492, %v1489
        %v1541 = vpack.c.b16 %v1493, %v1490
        %v1542 = vpack.c.b16 %v1497, %v1494
        %v1543 = vpack.c.b16 %v1498, %v1495
        %v1544 = vpack.c.b16 %v1499, %v1496
        %v1545 = vpack.c.b16 %v1503, %v1500
        %v1546 = vpack.c.b16 %v1504, %v1501
        %v1547 = vpack.c.b16 %v1505, %v1502
        %v1548 = vpack.c.b16 %v1509, %v1506
        %v1549 = vpack.c.b16 %v1510, %v1507
        %v1550 = vpack.c.b16 %v1511, %v1508
        %v1551 = vpack.c.b16 %v1515, %v1512
        %v1552 = vpack.c.b16 %v1516, %v1513
        %v1553 = vpack.c.b16 %v1517, %v1514
        %v1554 = vpack.c.b16 %v1521, %v1518
        %v1555 = vpack.c.b16 %v1522, %v1519
        %v1556 = vpack.c.b16 %v1523, %v1520
        %v1557 = vpack.c.b16 %v1527, %v1524
        %v1558 = vpack.c.b16 %v1528, %v1525
        %v1559 = vpack.c.b16 %v1529, %v1526
        %v1560 = vpack.c.b16 %v1533, %v1530
        %v1561 = vpack.c.b16 %v1534, %v1531
        %v1562 = vpack.c.b16 %v1535, %v1532
        %v1563 = vpack.c.b16 %v1536, %v1536
        %v1564 = vpack.c.b16 %v1537, %v1537
        %v1565 = vpack.c.b16 %v1538, %v1538
        %v1591 = vsel %vm638, %v1435, 0
        %v1594 = vsel %vm638, %v1451, 0
        %v1597 = vsel %vm645, %v1563, 0
        %v1600 = vsel %vm645, %v1564, 0
        %v1603 = vsel %vm645, %v1565, 0
        %1605 = vmatprep.subr.bf16.mxu0 %v1540
        %1606 = vmatpush1.bf16.msra.mxu0 %v1539
        %1607 = vmatprep.subr.bf16.mxu0 %v1543
        %1608 = vmatpush1.bf16.msra.mxu0 %v1542
        %1609 = vmatprep.subr.bf16.mxu0 %v1546
        %1610 = vmatpush1.bf16.msra.mxu0 %v1545
        %1611 = vmatprep.subr.bf16.mxu0 %v1549
        %1612 = vmatpush1.bf16.msra.mxu0 %v1548
        %1613 = vmatprep.subr.bf16.mxu0 %v1552
        %1614 = vmatpush1.bf16.msra.mxu0 %v1551
        %1615 = vmatprep.subr.bf16.mxu0 %v1555
        %1616 = vmatpush1.bf16.msra.mxu0 %v1554
        %1617 = vmatprep.subr.bf16.mxu0 %v1558
        %1618 = vmatpush1.bf16.msra.mxu0 %v1557
        %1619 = vmatprep.subr.bf16.mxu0 %v1561
        %1620 = vmatpush1.bf16.msra.mxu0 %v1560
        %1621 = vmatprep.subr.bf16.mxu0 %v1600
        %1622 = vmatpush1.bf16.msra.mxu0 %v1597
        %1623 = vmatprep.subr.bf16.mxu0 0
        %1624 = vmatpush1.bf16.msra.mxu0 0
        %1625 = vmatprep.subr.bf16.mxu0 0
        %1626 = vmatpush1.bf16.msra.mxu0 0
        %1627 = vmatprep.subr.bf16.mxu0 0
        %1628 = vmatpush1.bf16.msra.mxu0 0
        %1629 = vmatprep.subr.bf16.mxu0 0
        %1630 = vmatpush1.bf16.msra.mxu0 0
        %1631 = vmatprep.subr.bf16.mxu0 0
        %1632 = vmatpush1.bf16.msra.mxu0 0
        %1633 = vmatprep.subr.bf16.mxu0 0
        %1634 = vmatpush1.bf16.msra.mxu0 0
        %1635 = vmatprep.subr.bf16.mxu0 0
        %1636 = vmatpush1.bf16.msra.mxu0 0
        %1637 = vmatprep.mubr.bf16.mxu0 %v1591
        %1638 = vmatmul.mubr.bf16.gmra.mrb[0].mxu0 %v1425
        %v1639 = vpop.f32.mrb[0].mxu0
        %v1640 = vadd.f32 0.0, %v1639
        %v1641 = vpop.f32.mrb[0].mxu0
        %v1642 = vadd.f32 0.0, %v1641
        %v1643 = vpop.f32.mrb[0].mxu0
        %v1644 = vadd.f32 0.0, %v1643
        %v1645 = vpop.f32.mrb[0].mxu0
        %v1646 = vadd.f32 0.0, %v1645
        %1647 = vmatprep.mubr.bf16.mxu0 %v1594
        %1648 = vmatmul.mubr.bf16.gmra.mrb[0].mxu0 %v1443
        %v1649 = vpop.f32.mrb[0].mxu0
        %v1650 = vadd.f32 0.0, %v1649
        %v1651 = vpop.f32.mrb[0].mxu0
        %v1652 = vadd.f32 0.0, %v1651
        %v1653 = vpop.f32.mrb[0].mxu0
        %v1654 = vadd.f32 0.0, %v1653
        %v1655 = vpop.f32.mrb[0].mxu0
        %v1656 = vadd.f32 0.0, %v1655
        %1657 = vdwg.mxu0
        %1658 = vmatprep.subr.bf16.mxu0 0
        %1659 = vmatpush1.bf16.msra.mxu0 %v1541
        %1660 = vmatprep.subr.bf16.mxu0 0
        %1661 = vmatpush1.bf16.msra.mxu0 %v1544
        %1662 = vmatprep.subr.bf16.mxu0 0
        %1663 = vmatpush1.bf16.msra.mxu0 %v1547
        %1664 = vmatprep.subr.bf16.mxu0 0
        %1665 = vmatpush1.bf16.msra.mxu0 %v1550
        %1666 = vmatprep.subr.bf16.mxu0 0
        %1667 = vmatpush1.bf16.msra.mxu0 %v1553
        %1668 = vmatprep.subr.bf16.mxu0 0
        %1669 = vmatpush1.bf16.msra.mxu0 %v1556
        %1670 = vmatprep.subr.bf16.mxu0 0
        %1671 = vmatpush1.bf16.msra.mxu0 %v1559
        %1672 = vmatprep.subr.bf16.mxu0 0
        %1673 = vmatpush1.bf16.msra.mxu0 %v1562
        %1674 = vmatprep.subr.bf16.mxu0 0
        %1675 = vmatpush1.bf16.msra.mxu0 %v1603
        %1676 = vmatprep.subr.bf16.mxu0 0
        %1677 = vmatpush1.bf16.msra.mxu0 0
        %1678 = vmatprep.subr.bf16.mxu0 0
        %1679 = vmatpush1.bf16.msra.mxu0 0
        %1680 = vmatprep.subr.bf16.mxu0 0
        %1681 = vmatpush1.bf16.msra.mxu0 0
        %1682 = vmatprep.subr.bf16.mxu0 0
        %1683 = vmatpush1.bf16.msra.mxu0 0
        %1684 = vmatprep.subr.bf16.mxu0 0
        %1685 = vmatpush1.bf16.msra.mxu0 0
        %1686 = vmatprep.subr.bf16.mxu0 0
        %1687 = vmatpush1.bf16.msra.mxu0 0
        %1688 = vmatprep.subr.bf16.mxu0 0
        %1689 = vmatpush1.bf16.msra.mxu0 0
        %1690 = vmatprep.mubr.bf16.mxu0 %v1591
        %1691 = vmatmul.mubr.bf16.gmra.mrb[0].mxu0 %v1425
        %v1692 = vpop.f32.mrb[0].mxu0
        %v1693 = vadd.f32 0.0, %v1692
        %v1694 = vpop.f32.mrb[0].mxu0
        %v1695 = vpop.f32.mrb[0].mxu0
        %v1696 = vadd.f32 0.0, %v1695
        %v1697 = vpop.f32.mrb[0].mxu0
        %1698 = vmatprep.mubr.bf16.mxu0 %v1594
        %1699 = vmatmul.mubr.bf16.gmra.mrb[0].mxu0 %v1443
        %v1700 = vpop.f32.mrb[0].mxu0
        %v1701 = vadd.f32 0.0, %v1700
        %v1702 = vpop.f32.mrb[0].mxu0
        %v1703 = vpop.f32.mrb[0].mxu0
        %v1704 = vadd.f32 0.0, %v1703
        %v1705 = vpop.f32.mrb[0].mxu0
        %1706 = vdwg.mxu0
        %v1707 = vadd.f32 %v1362, %v1640
        %v1708 = vadd.f32 %v1363, %v1642
        %v1709 = vadd.f32 %v1364, %v1693
        %v1710 = vadd.f32 %v1365, %v1644
        %v1711 = vadd.f32 %v1366, %v1646
        %v1712 = vadd.f32 %v1367, %v1696
        %v1713 = vadd.f32 %v1368, %v1650
        %v1714 = vadd.f32 %v1369, %v1652
        %v1715 = vadd.f32 %v1370, %v1701
        %v1716 = vadd.f32 %v1371, %v1654
        %v1717 = vadd.f32 %v1372, %v1656
        %v1718 = vadd.f32 %v1373, %v1704
        %s1719 = scalar_lea.vmem [#allocation8], 408
        %v1720 = vld [vmem:[%s1719] sm:$0xff]
        %v1721 = vld [vmem:[%s1719 + $0x8] sm:$0xf]
        %v1722 = vld [vmem:[%s1719 + $0xc] sm:$0xff]
        %v1723 = vld [vmem:[%s1719 + $0x14] sm:$0xf]
        %v1724 = vld [vmem:[%s1719 + $0x18] sm:$0xff]
        %v1725 = vld [vmem:[%s1719 + $0x20] sm:$0xf]
        %v1726 = vld [vmem:[%s1719 + $0x24] sm:$0xff]
        %v1727 = vld [vmem:[%s1719 + $0x2c] sm:$0xf]
        %v1728 = vld [vmem:[%s1719 + $0x30] sm:$0xff]
        %v1729 = vld [vmem:[%s1719 + $0x38] sm:$0xf]
        %v1730 = vld [vmem:[%s1719 + $0x3c] sm:$0xff]
        %v1731 = vld [vmem:[%s1719 + $0x44] sm:$0xf]
        %v1732 = vld [vmem:[%s1719 + $0x48] sm:$0xff]
        %v1733 = vld [vmem:[%s1719 + $0x50] sm:$0xf]
        %v1734 = vld [vmem:[%s1719 + $0x54] sm:$0xff]
        %v1735 = vld [vmem:[%s1719 + $0x5c] sm:$0xf]
        %v1736 = vld [vmem:[%s1719 + $0x60] sm:$0xff]
        %v1737 = vld [vmem:[%s1719 + $0x68] sm:$0xf]
        %v1738 = vld [vmem:[%s1719 + $0x6c] sm:$0xff]
        %v1739 = vld [vmem:[%s1719 + $0x74] sm:$0xf]
        %v1740 = vld [vmem:[%s1719 + $0x78] sm:$0xff]
        %v1741 = vld [vmem:[%s1719 + $0x80] sm:$0xf]
        %v1742 = vld [vmem:[%s1719 + $0x84] sm:$0xff]
        %v1743 = vld [vmem:[%s1719 + $0x8c] sm:$0xf]
        %v1744 = vld [vmem:[%s1719 + $0x90] sm:$0xff]
        %v1745 = vld [vmem:[%s1719 + $0x98] sm:$0xf]
        %v1746 = vld [vmem:[%s1719 + $0x9c] sm:$0xff]
        %v1747 = vld [vmem:[%s1719 + $0xa4] sm:$0xf]
        %v1748 = vld [vmem:[%s1719 + $0xa8] sm:$0xff]
        %v1749 = vld [vmem:[%s1719 + $0xb0] sm:$0xf]
        %v1750 = vld [vmem:[%s1719 + $0xb4] sm:$0xff]
        %v1751 = vld [vmem:[%s1719 + $0xbc] sm:$0xf]
        %v1752 = vld [vmem:[%s1719 + $0xc0] sm:$0xff]
        %v1753 = vld [vmem:[%s1719 + $0xc8] sm:$0xf]
        %vm1754 = vcmask 1046528
        %v1755 = vrot.slane %v769, 1
        %v1756 = vrot.slane %v771, 1
        %v1757 = vsel %vm1754, %v1755, %v1756
        %v1758 = vrot.slane %v770, 1
        %v1759 = vrot.slane %v772, 1
        %v1760 = vsel %vm1754, %v1758, %v1759
        %v1761 = vrot.slane %v1066, 1
        %v1762 = vsel %vm1754, %v1756, %v1761
        %v1763 = vrot.slane %v1067, 1
        %v1764 = vsel %vm1754, %v1759, %v1763
        %v1801 = vunpack.c.l.b16 %v1720
        %v1802 = vunpack.c.h.b16 %v1720
        %v1803 = vunpack.c.l.b16 %v1721
        %v1804 = vunpack.c.l.b16 %v1722
        %v1805 = vunpack.c.h.b16 %v1722
        %v1806 = vunpack.c.l.b16 %v1723
        %v1807 = vunpack.c.l.b16 %v1724
        %v1808 = vunpack.c.h.b16 %v1724
        %v1809 = vunpack.c.l.b16 %v1725
        %v1810 = vunpack.c.l.b16 %v1726
        %v1811 = vunpack.c.h.b16 %v1726
        %v1812 = vunpack.c.l.b16 %v1727
        %v1813 = vunpack.c.l.b16 %v1728
        %v1814 = vunpack.c.h.b16 %v1728
        %v1815 = vunpack.c.l.b16 %v1729
        %v1816 = vunpack.c.l.b16 %v1730
        %v1817 = vunpack.c.h.b16 %v1730
        %v1818 = vunpack.c.l.b16 %v1731
        %v1819 = vunpack.c.l.b16 %v1732
        %v1820 = vunpack.c.h.b16 %v1732
        %v1821 = vunpack.c.l.b16 %v1733
        %v1822 = vunpack.c.l.b16 %v1734
        %v1823 = vunpack.c.h.b16 %v1734
        %v1824 = vunpack.c.l.b16 %v1735
        %v1825 = vunpack.c.l.b16 %v1736
        %v1826 = vunpack.c.h.b16 %v1736
        %v1827 = vunpack.c.l.b16 %v1737
        %v1828 = vunpack.c.l.b16 %v1738
        %v1829 = vunpack.c.h.b16 %v1738
        %v1830 = vunpack.c.l.b16 %v1739
        %v1831 = vunpack.c.l.b16 %v1740
        %v1832 = vunpack.c.h.b16 %v1740
        %v1833 = vunpack.c.l.b16 %v1741
        %v1834 = vunpack.c.l.b16 %v1742
        %v1835 = vunpack.c.h.b16 %v1742
        %v1836 = vunpack.c.l.b16 %v1743
        %v1837 = vunpack.c.l.b16 %v1744
        %v1838 = vunpack.c.h.b16 %v1744
        %v1839 = vunpack.c.l.b16 %v1745
        %v1840 = vunpack.c.l.b16 %v1746
        %v1841 = vunpack.c.h.b16 %v1746
        %v1842 = vunpack.c.l.b16 %v1747
        %v1843 = vunpack.c.l.b16 %v1748
        %v1844 = vunpack.c.h.b16 %v1748
        %v1845 = vunpack.c.l.b16 %v1749
        %v1846 = vunpack.c.l.b16 %v1750
        %v1847 = vunpack.c.h.b16 %v1750
        %v1848 = vunpack.c.l.b16 %v1751
        %v1849 = vunpack.c.l.b16 %v1752
        %v1850 = vunpack.c.h.b16 %v1752
        %v1851 = vunpack.c.l.b16 %v1753
        %v1852 = vpack.c.b16 %v1804, %v1801
        %v1853 = vpack.c.b16 %v1805, %v1802
        %v1854 = vpack.c.b16 %v1806, %v1803
        %v1855 = vpack.c.b16 %v1810, %v1807
        %v1856 = vpack.c.b16 %v1811, %v1808
        %v1857 = vpack.c.b16 %v1812, %v1809
        %v1858 = vpack.c.b16 %v1816, %v1813
        %v1859 = vpack.c.b16 %v1817, %v1814
        %v1860 = vpack.c.b16 %v1818, %v1815
        %v1861 = vpack.c.b16 %v1822, %v1819
        %v1862 = vpack.c.b16 %v1823, %v1820
        %v1863 = vpack.c.b16 %v1824, %v1821
        %v1864 = vpack.c.b16 %v1828, %v1825
        %v1865 = vpack.c.b16 %v1829, %v1826
        %v1866 = vpack.c.b16 %v1830, %v1827
        %v1867 = vpack.c.b16 %v1834, %v1831
        %v1868 = vpack.c.b16 %v1835, %v1832
        %v1869 = vpack.c.b16 %v1836, %v1833
        %v1870 = vpack.c.b16 %v1840, %v1837
        %v1871 = vpack.c.b16 %v1841, %v1838
        %v1872 = vpack.c.b16 %v1842, %v1839
        %v1873 = vpack.c.b16 %v1846, %v1843
        %v1874 = vpack.c.b16 %v1847, %v1844
        %v1875 = vpack.c.b16 %v1848, %v1845
        %v1876 = vpack.c.b16 %v1849, %v1849
        %v1877 = vpack.c.b16 %v1850, %v1850
        %v1878 = vpack.c.b16 %v1851, %v1851
        %v1904 = vsel %vm638, %v1760, 0
        %v1907 = vsel %vm638, %v1764, 0
        %v1910 = vsel %vm645, %v1876, 0
        %v1913 = vsel %vm645, %v1877, 0
        %v1916 = vsel %vm645, %v1878, 0
        %1918 = vmatprep.subr.bf16.mxu0 %v1853
        %1919 = vmatpush1.bf16.msra.mxu0 %v1852
        %1920 = vmatprep.subr.bf16.mxu0 %v1856
        %1921 = vmatpush1.bf16.msra.mxu0 %v1855
        %1922 = vmatprep.subr.bf16.mxu0 %v1859
        %1923 = vmatpush1.bf16.msra.mxu0 %v1858
        %1924 = vmatprep.subr.bf16.mxu0 %v1862
        %1925 = vmatpush1.bf16.msra.mxu0 %v1861
        %1926 = vmatprep.subr.bf16.mxu0 %v1865
        %1927 = vmatpush1.bf16.msra.mxu0 %v1864
        %1928 = vmatprep.subr.bf16.mxu0 %v1868
        %1929 = vmatpush1.bf16.msra.mxu0 %v1867
        %1930 = vmatprep.subr.bf16.mxu0 %v1871
        %1931 = vmatpush1.bf16.msra.mxu0 %v1870
        %1932 = vmatprep.subr.bf16.mxu0 %v1874
        %1933 = vmatpush1.bf16.msra.mxu0 %v1873
        %1934 = vmatprep.subr.bf16.mxu0 %v1913
        %1935 = vmatpush1.bf16.msra.mxu0 %v1910
        %1936 = vmatprep.subr.bf16.mxu0 0
        %1937 = vmatpush1.bf16.msra.mxu0 0
        %1938 = vmatprep.subr.bf16.mxu0 0
        %1939 = vmatpush1.bf16.msra.mxu0 0
        %1940 = vmatprep.subr.bf16.mxu0 0
        %1941 = vmatpush1.bf16.msra.mxu0 0
        %1942 = vmatprep.subr.bf16.mxu0 0
        %1943 = vmatpush1.bf16.msra.mxu0 0
        %1944 = vmatprep.subr.bf16.mxu0 0
        %1945 = vmatpush1.bf16.msra.mxu0 0
        %1946 = vmatprep.subr.bf16.mxu0 0
        %1947 = vmatpush1.bf16.msra.mxu0 0
        %1948 = vmatprep.subr.bf16.mxu0 0
        %1949 = vmatpush1.bf16.msra.mxu0 0
        %1950 = vmatprep.mubr.bf16.mxu0 %v1904
        %1951 = vmatmul.mubr.bf16.gmra.mrb[0].mxu0 %v1757
        %v1952 = vpop.f32.mrb[0].mxu0
        %v1953 = vadd.f32 0.0, %v1952
        %v1954 = vpop.f32.mrb[0].mxu0
        %v1955 = vadd.f32 0.0, %v1954
        %v1956 = vpop.f32.mrb[0].mxu0
        %v1957 = vadd.f32 0.0, %v1956
        %v1958 = vpop.f32.mrb[0].mxu0
        %v1959 = vadd.f32 0.0, %v1958
        %1960 = vmatprep.mubr.bf16.mxu0 %v1907
        %1961 = vmatmul.mubr.bf16.gmra.mrb[0].mxu0 %v1762
        %v1962 = vpop.f32.mrb[0].mxu0
        %v1963 = vadd.f32 0.0, %v1962
        %v1964 = vpop.f32.mrb[0].mxu0
        %v1965 = vadd.f32 0.0, %v1964
        %v1966 = vpop.f32.mrb[0].mxu0
        %v1967 = vadd.f32 0.0, %v1966
        %v1968 = vpop.f32.mrb[0].mxu0
        %v1969 = vadd.f32 0.0, %v1968
        %1970 = vdwg.mxu0
        %1971 = vmatprep.subr.bf16.mxu0 0
        %1972 = vmatpush1.bf16.msra.mxu0 %v1854
        %1973 = vmatprep.subr.bf16.mxu0 0
        %1974 = vmatpush1.bf16.msra.mxu0 %v1857
        %1975 = vmatprep.subr.bf16.mxu0 0
        %1976 = vmatpush1.bf16.msra.mxu0 %v1860
        %1977 = vmatprep.subr.bf16.mxu0 0
        %1978 = vmatpush1.bf16.msra.mxu0 %v1863
        %1979 = vmatprep.subr.bf16.mxu0 0
        %1980 = vmatpush1.bf16.msra.mxu0 %v1866
        %1981 = vmatprep.subr.bf16.mxu0 0
        %1982 = vmatpush1.bf16.msra.mxu0 %v1869
        %1983 = vmatprep.subr.bf16.mxu0 0
        %1984 = vmatpush1.bf16.msra.mxu0 %v1872
        %1985 = vmatprep.subr.bf16.mxu0 0
        %1986 = vmatpush1.bf16.msra.mxu0 %v1875
        %1987 = vmatprep.subr.bf16.mxu0 0
        %1988 = vmatpush1.bf16.msra.mxu0 %v1916
        %1989 = vmatprep.subr.bf16.mxu0 0
        %1990 = vmatpush1.bf16.msra.mxu0 0
        %1991 = vmatprep.subr.bf16.mxu0 0
        %1992 = vmatpush1.bf16.msra.mxu0 0
        %1993 = vmatprep.subr.bf16.mxu0 0
        %1994 = vmatpush1.bf16.msra.mxu0 0
        %1995 = vmatprep.subr.bf16.mxu0 0
        %1996 = vmatpush1.bf16.msra.mxu0 0
        %1997 = vmatprep.subr.bf16.mxu0 0
        %1998 = vmatpush1.bf16.msra.mxu0 0
        %1999 = vmatprep.subr.bf16.mxu0 0
        %2000 = vmatpush1.bf16.msra.mxu0 0
        %2001 = vmatprep.subr.bf16.mxu0 0
        %2002 = vmatpush1.bf16.msra.mxu0 0
        %2003 = vmatprep.mubr.bf16.mxu0 %v1904
        %2004 = vmatmul.mubr.bf16.gmra.mrb[0].mxu0 %v1757
        %v2005 = vpop.f32.mrb[0].mxu0
        %v2006 = vadd.f32 0.0, %v2005
        %v2007 = vpop.f32.mrb[0].mxu0
        %v2008 = vpop.f32.mrb[0].mxu0
        %v2009 = vadd.f32 0.0, %v2008
        %v2010 = vpop.f32.mrb[0].mxu0
        %2011 = vmatprep.mubr.bf16.mxu0 %v1907
        %2012 = vmatmul.mubr.bf16.gmra.mrb[0].mxu0 %v1762
        %v2013 = vpop.f32.mrb[0].mxu0
        %v2014 = vadd.f32 0.0, %v2013
        %v2015 = vpop.f32.mrb[0].mxu0
        %v2016 = vpop.f32.mrb[0].mxu0
        %v2017 = vadd.f32 0.0, %v2016
        %v2018 = vpop.f32.mrb[0].mxu0
        %2019 = vdwg.mxu0
        %v2020 = vadd.f32 %v1707, %v1953
        %v2021 = vadd.f32 %v1708, %v1955
        %v2022 = vadd.f32 %v1709, %v2006
        %v2023 = vadd.f32 %v1710, %v1957
        %v2024 = vadd.f32 %v1711, %v1959
        %v2025 = vadd.f32 %v1712, %v2009
        %v2026 = vadd.f32 %v1713, %v1963
        %v2027 = vadd.f32 %v1714, %v1965
        %v2028 = vadd.f32 %v1715, %v2014
        %v2029 = vadd.f32 %v1716, %v1967
        %v2030 = vadd.f32 %v1717, %v1969
        %v2031 = vadd.f32 %v1718, %v2017
        %s2032 = scalar_lea.vmem [#allocation9], 408
        %v2033 = vld [vmem:[%s2032] sm:$0xff]
        %v2034 = vld [vmem:[%s2032 + $0x8] sm:$0xf]
        %v2035 = vld [vmem:[%s2032 + $0xc] sm:$0xff]
        %v2036 = vld [vmem:[%s2032 + $0x14] sm:$0xf]
        %v2037 = vld [vmem:[%s2032 + $0x18] sm:$0xff]
        %v2038 = vld [vmem:[%s2032 + $0x20] sm:$0xf]
        %v2039 = vld [vmem:[%s2032 + $0x24] sm:$0xff]
        %v2040 = vld [vmem:[%s2032 + $0x2c] sm:$0xf]
        %v2041 = vld [vmem:[%s2032 + $0x30] sm:$0xff]
        %v2042 = vld [vmem:[%s2032 + $0x38] sm:$0xf]
        %v2043 = vld [vmem:[%s2032 + $0x3c] sm:$0xff]
        %v2044 = vld [vmem:[%s2032 + $0x44] sm:$0xf]
        %v2045 = vld [vmem:[%s2032 + $0x48] sm:$0xff]
        %v2046 = vld [vmem:[%s2032 + $0x50] sm:$0xf]
        %v2047 = vld [vmem:[%s2032 + $0x54] sm:$0xff]
        %v2048 = vld [vmem:[%s2032 + $0x5c] sm:$0xf]
        %v2049 = vld [vmem:[%s2032 + $0x60] sm:$0xff]
        %v2050 = vld [vmem:[%s2032 + $0x68] sm:$0xf]
        %v2051 = vld [vmem:[%s2032 + $0x6c] sm:$0xff]
        %v2052 = vld [vmem:[%s2032 + $0x74] sm:$0xf]
        %v2053 = vld [vmem:[%s2032 + $0x78] sm:$0xff]
        %v2054 = vld [vmem:[%s2032 + $0x80] sm:$0xf]
        %v2055 = vld [vmem:[%s2032 + $0x84] sm:$0xff]
        %v2056 = vld [vmem:[%s2032 + $0x8c] sm:$0xf]
        %v2057 = vld [vmem:[%s2032 + $0x90] sm:$0xff]
        %v2058 = vld [vmem:[%s2032 + $0x98] sm:$0xf]
        %v2059 = vld [vmem:[%s2032 + $0x9c] sm:$0xff]
        %v2060 = vld [vmem:[%s2032 + $0xa4] sm:$0xf]
        %v2061 = vld [vmem:[%s2032 + $0xa8] sm:$0xff]
        %v2062 = vld [vmem:[%s2032 + $0xb0] sm:$0xf]
        %v2063 = vld [vmem:[%s2032 + $0xb4] sm:$0xff]
        %v2064 = vld [vmem:[%s2032 + $0xbc] sm:$0xf]
        %v2065 = vld [vmem:[%s2032 + $0xc0] sm:$0xff]
        %v2066 = vld [vmem:[%s2032 + $0xc8] sm:$0xf]
        %v2067 = vrot.slane %v496, 1
        %v2068 = vrot.slane %v498, 1
        %v2069 = vsel %vm1754, %v2067, %v2068
        %v2070 = vrot.slane %v497, 1
        %v2071 = vrot.slane %v499, 1
        %v2072 = vsel %vm1754, %v2070, %v2071
        %v2073 = vrot.slane %v1412, 1
        %v2074 = vsel %vm1754, %v2068, %v2073
        %v2075 = vrot.slane %v1413, 1
        %v2076 = vsel %vm1754, %v2071, %v2075
        %v2113 = vunpack.c.l.b16 %v2033
        %v2114 = vunpack.c.h.b16 %v2033
        %v2115 = vunpack.c.l.b16 %v2034
        %v2116 = vunpack.c.l.b16 %v2035
        %v2117 = vunpack.c.h.b16 %v2035
        %v2118 = vunpack.c.l.b16 %v2036
        %v2119 = vunpack.c.l.b16 %v2037
        %v2120 = vunpack.c.h.b16 %v2037
        %v2121 = vunpack.c.l.b16 %v2038
        %v2122 = vunpack.c.l.b16 %v2039
        %v2123 = vunpack.c.h.b16 %v2039
        %v2124 = vunpack.c.l.b16 %v2040
        %v2125 = vunpack.c.l.b16 %v2041
        %v2126 = vunpack.c.h.b16 %v2041
        %v2127 = vunpack.c.l.b16 %v2042
        %v2128 = vunpack.c.l.b16 %v2043
        %v2129 = vunpack.c.h.b16 %v2043
        %v2130 = vunpack.c.l.b16 %v2044
        %v2131 = vunpack.c.l.b16 %v2045
        %v2132 = vunpack.c.h.b16 %v2045
        %v2133 = vunpack.c.l.b16 %v2046
        %v2134 = vunpack.c.l.b16 %v2047
        %v2135 = vunpack.c.h.b16 %v2047
        %v2136 = vunpack.c.l.b16 %v2048
        %v2137 = vunpack.c.l.b16 %v2049
        %v2138 = vunpack.c.h.b16 %v2049
        %v2139 = vunpack.c.l.b16 %v2050
        %v2140 = vunpack.c.l.b16 %v2051
        %v2141 = vunpack.c.h.b16 %v2051
        %v2142 = vunpack.c.l.b16 %v2052
        %v2143 = vunpack.c.l.b16 %v2053
        %v2144 = vunpack.c.h.b16 %v2053
        %v2145 = vunpack.c.l.b16 %v2054
        %v2146 = vunpack.c.l.b16 %v2055
        %v2147 = vunpack.c.h.b16 %v2055
        %v2148 = vunpack.c.l.b16 %v2056
        %v2149 = vunpack.c.l.b16 %v2057
        %v2150 = vunpack.c.h.b16 %v2057
        %v2151 = vunpack.c.l.b16 %v2058
        %v2152 = vunpack.c.l.b16 %v2059
        %v2153 = vunpack.c.h.b16 %v2059
        %v2154 = vunpack.c.l.b16 %v2060
        %v2155 = vunpack.c.l.b16 %v2061
        %v2156 = vunpack.c.h.b16 %v2061
        %v2157 = vunpack.c.l.b16 %v2062
        %v2158 = vunpack.c.l.b16 %v2063
        %v2159 = vunpack.c.h.b16 %v2063
        %v2160 = vunpack.c.l.b16 %v2064
        %v2161 = vunpack.c.l.b16 %v2065
        %v2162 = vunpack.c.h.b16 %v2065
        %v2163 = vunpack.c.l.b16 %v2066
        %v2164 = vpack.c.b16 %v2116, %v2113
        %v2165 = vpack.c.b16 %v2117, %v2114
        %v2166 = vpack.c.b16 %v2118, %v2115
        %v2167 = vpack.c.b16 %v2122, %v2119
        %v2168 = vpack.c.b16 %v2123, %v2120
        %v2169 = vpack.c.b16 %v2124, %v2121
        %v2170 = vpack.c.b16 %v2128, %v2125
        %v2171 = vpack.c.b16 %v2129, %v2126
        %v2172 = vpack.c.b16 %v2130, %v2127
        %v2173 = vpack.c.b16 %v2134, %v2131
        %v2174 = vpack.c.b16 %v2135, %v2132
        %v2175 = vpack.c.b16 %v2136, %v2133
        %v2176 = vpack.c.b16 %v2140, %v2137
        %v2177 = vpack.c.b16 %v2141, %v2138
        %v2178 = vpack.c.b16 %v2142, %v2139
        %v2179 = vpack.c.b16 %v2146, %v2143
        %v2180 = vpack.c.b16 %v2147, %v2144
        %v2181 = vpack.c.b16 %v2148, %v2145
        %v2182 = vpack.c.b16 %v2152, %v2149
        %v2183 = vpack.c.b16 %v2153, %v2150
        %v2184 = vpack.c.b16 %v2154, %v2151
        %v2185 = vpack.c.b16 %v2158, %v2155
        %v2186 = vpack.c.b16 %v2159, %v2156
        %v2187 = vpack.c.b16 %v2160, %v2157
        %v2188 = vpack.c.b16 %v2161, %v2161
        %v2189 = vpack.c.b16 %v2162, %v2162
        %v2190 = vpack.c.b16 %v2163, %v2163
        %v2216 = vsel %vm638, %v2072, 0
        %v2219 = vsel %vm638, %v2076, 0
        %v2222 = vsel %vm645, %v2188, 0
        %v2225 = vsel %vm645, %v2189, 0
        %v2228 = vsel %vm645, %v2190, 0
        %2230 = vmatprep.subr.bf16.mxu0 %v2165
        %2231 = vmatpush1.bf16.msra.mxu0 %v2164
        %2232 = vmatprep.subr.bf16.mxu0 %v2168
        %2233 = vmatpush1.bf16.msra.mxu0 %v2167
        %2234 = vmatprep.subr.bf16.mxu0 %v2171
        %2235 = vmatpush1.bf16.msra.mxu0 %v2170
        %2236 = vmatprep.subr.bf16.mxu0 %v2174
        %2237 = vmatpush1.bf16.msra.mxu0 %v2173
        %2238 = vmatprep.subr.bf16.mxu0 %v2177
        %2239 = vmatpush1.bf16.msra.mxu0 %v2176
        %2240 = vmatprep.subr.bf16.mxu0 %v2180
        %2241 = vmatpush1.bf16.msra.mxu0 %v2179
        %2242 = vmatprep.subr.bf16.mxu0 %v2183
        %2243 = vmatpush1.bf16.msra.mxu0 %v2182
        %2244 = vmatprep.subr.bf16.mxu0 %v2186
        %2245 = vmatpush1.bf16.msra.mxu0 %v2185
        %2246 = vmatprep.subr.bf16.mxu0 %v2225
        %2247 = vmatpush1.bf16.msra.mxu0 %v2222
        %2248 = vmatprep.subr.bf16.mxu0 0
        %2249 = vmatpush1.bf16.msra.mxu0 0
        %2250 = vmatprep.subr.bf16.mxu0 0
        %2251 = vmatpush1.bf16.msra.mxu0 0
        %2252 = vmatprep.subr.bf16.mxu0 0
        %2253 = vmatpush1.bf16.msra.mxu0 0
        %2254 = vmatprep.subr.bf16.mxu0 0
        %2255 = vmatpush1.bf16.msra.mxu0 0
        %2256 = vmatprep.subr.bf16.mxu0 0
        %2257 = vmatpush1.bf16.msra.mxu0 0
        %2258 = vmatprep.subr.bf16.mxu0 0
        %2259 = vmatpush1.bf16.msra.mxu0 0
        %2260 = vmatprep.subr.bf16.mxu0 0
        %2261 = vmatpush1.bf16.msra.mxu0 0
        %2262 = vmatprep.mubr.bf16.mxu0 %v2216
        %2263 = vmatmul.mubr.bf16.gmra.mrb[0].mxu0 %v2069
        %v2264 = vpop.f32.mrb[0].mxu0
        %v2265 = vadd.f32 0.0, %v2264
        %v2266 = vpop.f32.mrb[0].mxu0
        %v2267 = vadd.f32 0.0, %v2266
        %v2268 = vpop.f32.mrb[0].mxu0
        %v2269 = vadd.f32 0.0, %v2268
        %v2270 = vpop.f32.mrb[0].mxu0
        %v2271 = vadd.f32 0.0, %v2270
        %2272 = vmatprep.mubr.bf16.mxu0 %v2219
        %2273 = vmatmul.mubr.bf16.gmra.mrb[0].mxu0 %v2074
        %v2274 = vpop.f32.mrb[0].mxu0
        %v2275 = vadd.f32 0.0, %v2274
        %v2276 = vpop.f32.mrb[0].mxu0
        %v2277 = vadd.f32 0.0, %v2276
        %v2278 = vpop.f32.mrb[0].mxu0
        %v2279 = vadd.f32 0.0, %v2278
        %v2280 = vpop.f32.mrb[0].mxu0
        %v2281 = vadd.f32 0.0, %v2280
        %2282 = vdwg.mxu0
        %2283 = vmatprep.subr.bf16.mxu0 0
        %2284 = vmatpush1.bf16.msra.mxu0 %v2166
        %2285 = vmatprep.subr.bf16.mxu0 0
        %2286 = vmatpush1.bf16.msra.mxu0 %v2169
        %2287 = vmatprep.subr.bf16.mxu0 0
        %2288 = vmatpush1.bf16.msra.mxu0 %v2172
        %2289 = vmatprep.subr.bf16.mxu0 0
        %2290 = vmatpush1.bf16.msra.mxu0 %v2175
        %2291 = vmatprep.subr.bf16.mxu0 0
        %2292 = vmatpush1.bf16.msra.mxu0 %v2178
        %2293 = vmatprep.subr.bf16.mxu0 0
        %2294 = vmatpush1.bf16.msra.mxu0 %v2181
        %2295 = vmatprep.subr.bf16.mxu0 0
        %2296 = vmatpush1.bf16.msra.mxu0 %v2184
        %2297 = vmatprep.subr.bf16.mxu0 0
        %2298 = vmatpush1.bf16.msra.mxu0 %v2187
        %2299 = vmatprep.subr.bf16.mxu0 0
        %2300 = vmatpush1.bf16.msra.mxu0 %v2228
        %2301 = vmatprep.subr.bf16.mxu0 0
        %2302 = vmatpush1.bf16.msra.mxu0 0
        %2303 = vmatprep.subr.bf16.mxu0 0
        %2304 = vmatpush1.bf16.msra.mxu0 0
        %2305 = vmatprep.subr.bf16.mxu0 0
        %2306 = vmatpush1.bf16.msra.mxu0 0
        %2307 = vmatprep.subr.bf16.mxu0 0
        %2308 = vmatpush1.bf16.msra.mxu0 0
        %2309 = vmatprep.subr.bf16.mxu0 0
        %2310 = vmatpush1.bf16.msra.mxu0 0
        %2311 = vmatprep.subr.bf16.mxu0 0
        %2312 = vmatpush1.bf16.msra.mxu0 0
        %2313 = vmatprep.subr.bf16.mxu0 0
        %2314 = vmatpush1.bf16.msra.mxu0 0
        %2315 = vmatprep.mubr.bf16.mxu0 %v2216
        %2316 = vmatmul.mubr.bf16.gmra.mrb[0].mxu0 %v2069
        %v2317 = vpop.f32.mrb[0].mxu0
        %v2318 = vadd.f32 0.0, %v2317
        %v2319 = vpop.f32.mrb[0].mxu0
        %v2320 = vpop.f32.mrb[0].mxu0
        %v2321 = vadd.f32 0.0, %v2320
        %v2322 = vpop.f32.mrb[0].mxu0
        %2323 = vmatprep.mubr.bf16.mxu0 %v2219
        %2324 = vmatmul.mubr.bf16.gmra.mrb[0].mxu0 %v2074
        %v2325 = vpop.f32.mrb[0].mxu0
        %v2326 = vadd.f32 0.0, %v2325
        %v2327 = vpop.f32.mrb[0].mxu0
        %v2328 = vpop.f32.mrb[0].mxu0
        %v2329 = vadd.f32 0.0, %v2328
        %v2330 = vpop.f32.mrb[0].mxu0
        %2331 = vdwg.mxu0
        %v2332 = vadd.f32 %v2020, %v2265
        %v2333 = vadd.f32 %v2021, %v2267
        %v2334 = vadd.f32 %v2022, %v2318
        %v2335 = vadd.f32 %v2023, %v2269
        %v2336 = vadd.f32 %v2024, %v2271
        %v2337 = vadd.f32 %v2025, %v2321
        %v2338 = vadd.f32 %v2026, %v2275
        %v2339 = vadd.f32 %v2027, %v2277
        %v2340 = vadd.f32 %v2028, %v2326
        %v2341 = vadd.f32 %v2029, %v2279
        %v2342 = vadd.f32 %v2030, %v2281
        %v2343 = vadd.f32 %v2031, %v2329
        %v2344 = vld [vmem:[#allocation12] sm:$0x7]
        %v2346 = vlaneseq
        %v2347 = vshrl.u32 %v2346, 7
        %v2348 = vsub.s32 0, %v2347
        %v2349 = vrot.slane %v2344, %v2348
        %v2350 = vlaneseq
        %v2351 = vshrl.u32 %v2350, 7
        %v2352 = vsub.s32 1, %v2351
        %v2353 = vrot.slane %v2344, %v2352
        %v2354 = vlaneseq
        %v2355 = vshrl.u32 %v2354, 7
        %v2356 = vsub.s32 2, %v2355
        %v2357 = vrot.slane %v2344, %v2356
        %v2361 = vadd.f32 %v2332, %v2349
        %v2362 = vadd.f32 %v2333, %v2353
        %v2363 = vadd.f32 %v2334, %v2357
        %v2364 = vadd.f32 %v2335, %v2349
        %v2365 = vadd.f32 %v2336, %v2353
        %v2366 = vadd.f32 %v2337, %v2357
        %v2367 = vadd.f32 %v2338, %v2349
        %v2368 = vadd.f32 %v2339, %v2353
        %v2369 = vadd.f32 %v2340, %v2357
        %v2370 = vadd.f32 %v2341, %v2349
        %v2371 = vadd.f32 %v2342, %v2353
        %v2372 = vadd.f32 %v2343, %v2357
        %v2373 = vmax.f32 %v2361, 0.0
        %v2374 = vmax.f32 %v2362, 0.0
        %v2375 = vmax.f32 %v2363, 0.0
        %v2376 = vmax.f32 %v2364, 0.0
        %v2377 = vmax.f32 %v2365, 0.0
        %v2378 = vmax.f32 %v2366, 0.0
        %v2379 = vmax.f32 %v2367, 0.0
        %v2380 = vmax.f32 %v2368, 0.0
        %v2381 = vmax.f32 %v2369, 0.0
        %v2382 = vmax.f32 %v2370, 0.0
        %v2383 = vmax.f32 %v2371, 0.0
        %v2384 = vmax.f32 %v2372, 0.0
        %2385 = vst [vmem:[#allocation2] sm:$0xff] 0.0
        %2386 = vst [vmem:[#allocation2 + $0x8] sm:$0xff] 0.0
        %vm2387 = vcmask 130048
        %2388 = vst.msk [vmem:[#allocation2 + $0x10] sm:$0xff] %vm2387, 0.0
        %2389 = vst [vmem:[#allocation2 + $0x18] sm:$0xff] 0.0
        %2390 = vst [vmem:[#allocation2 + $0x20] sm:$0xff] 0.0
        %2391 = vst.msk [vmem:[#allocation2 + $0x28] sm:$0xff] %vm2387, 0.0
        %2392 = vst [vmem:[#allocation2 + $0x30] sm:$0xff] 0.0
        %2393 = vst [vmem:[#allocation2 + $0x38] sm:$0xff] 0.0
        %2394 = vst.msk [vmem:[#allocation2 + $0x40] sm:$0xff] %vm2387, 0.0
        %2395 = vst [vmem:[#allocation2 + $0x48] sm:$0xff] 0.0
        %2396 = vst [vmem:[#allocation2 + $0x50] sm:$0xff] 0.0
        %2397 = vst.msk [vmem:[#allocation2 + $0x58] sm:$0xff] %vm2387, 0.0
        %2398 = vst [vmem:[#allocation2 + $0x60] sm:$0x3] 0.0
        %2399 = vst [vmem:[#allocation2 + $0x68] sm:$0x3] 0.0
        %vm2400 = vcmask 123904
        %2401 = vst.msk [vmem:[#allocation2 + $0x70] sm:$0x3] %vm2400, 0.0
        %vm2414 = vcmask 1040384
        %v2415 = vrot.slane %v2373, 7
        %v2416 = vrot.slane %v2374, 7
        %v2417 = vrot.slane %v2375, 7
        %v2418 = vrot.slane %v2376, 7
        %v2419 = vsel %vm2414, %v2415, %v2418
        %v2420 = vrot.slane %v2377, 7
        %v2421 = vsel %vm2414, %v2416, %v2420
        %v2422 = vrot.slane %v2378, 7
        %v2423 = vsel %vm2414, %v2417, %v2422
        %v2424 = vrot.slane %v2379, 7
        %v2425 = vsel %vm2414, %v2418, %v2424
        %v2426 = vrot.slane %v2380, 7
        %v2427 = vsel %vm2414, %v2420, %v2426
        %v2428 = vrot.slane %v2381, 7
        %v2429 = vsel %vm2414, %v2422, %v2428
        %v2430 = vrot.slane %v2382, 7
        %v2431 = vsel %vm2414, %v2424, %v2430
        %v2432 = vrot.slane %v2383, 7
        %v2433 = vsel %vm2414, %v2426, %v2432
        %v2434 = vrot.slane %v2384, 7
        %v2435 = vsel %vm2414, %v2428, %v2434
        %2451 = vst [vmem:[#allocation2] sm:$0xfe] %v2415
        %2452 = vst [vmem:[#allocation2 + $0x8] sm:$0xfe] %v2416
        %vm2453 = vcmask 130049
        %2454 = vst.msk [vmem:[#allocation2 + $0x10] sm:$0xfe] %vm2453, %v2417
        %2455 = vst [vmem:[#allocation2 + $0x18] sm:$0xff] %v2419
        %2456 = vst [vmem:[#allocation2 + $0x20] sm:$0xff] %v2421
        %2457 = vst.msk [vmem:[#allocation2 + $0x28] sm:$0xff] %vm2387, %v2423
        %2458 = vst [vmem:[#allocation2 + $0x30] sm:$0xff] %v2425
        %2459 = vst [vmem:[#allocation2 + $0x38] sm:$0xff] %v2427
        %2460 = vst.msk [vmem:[#allocation2 + $0x40] sm:$0xff] %vm2387, %v2429
        %2461 = vst [vmem:[#allocation2 + $0x48] sm:$0xff] %v2431
        %2462 = vst [vmem:[#allocation2 + $0x50] sm:$0xff] %v2433
        %2463 = vst.msk [vmem:[#allocation2 + $0x58] sm:$0xff] %vm2387, %v2435
        %2464 = vst [vmem:[#allocation2 + $0x60] sm:$0x1] %v2430
        %2465 = vst [vmem:[#allocation2 + $0x68] sm:$0x1] %v2432
        %vm2466 = vcmask 122880
        %2467 = vst.msk [vmem:[#allocation2 + $0x70] sm:$0x1] %vm2466, %v2434
        %v2468 = vld [vmem:[#allocation2] sm:$0xff]
        %v2469 = vld [vmem:[#allocation2 + $0x8] sm:$0xff]
        %v2470 = vld [vmem:[#allocation2 + $0x10] sm:$0xff]
        %v2471 = vld [vmem:[#allocation2 + $0x18] sm:$0xff]
        %v2472 = vld [vmem:[#allocation2 + $0x20] sm:$0xff]
        %v2473 = vld [vmem:[#allocation2 + $0x28] sm:$0xff]
        %v2474 = vld [vmem:[#allocation2 + $0x30] sm:$0xff]
        %v2475 = vld [vmem:[#allocation2 + $0x38] sm:$0xff]
        %v2476 = vld [vmem:[#allocation2 + $0x40] sm:$0xff]
        %v2477 = vld [vmem:[#allocation2 + $0x48] sm:$0xff]
        %v2478 = vld [vmem:[#allocation2 + $0x50] sm:$0xff]
        %v2479 = vld [vmem:[#allocation2 + $0x58] sm:$0xff]
        %v2480 = vld [vmem:[#allocation2 + $0x60] sm:$0x3]
        %v2481 = vld [vmem:[#allocation2 + $0x68] sm:$0x3]
        %v2482 = vld [vmem:[#allocation2 + $0x70] sm:$0x3]
        %v2483 = vpack.c.bf16 %v2471, %v2468
        %v2484 = vpack.c.bf16 %v2472, %v2469
        %v2485 = vpack.c.bf16 %v2473, %v2470
        %v2486 = vpack.c.bf16 %v2477, %v2474
        %v2487 = vpack.c.bf16 %v2478, %v2475
        %v2488 = vpack.c.bf16 %v2479, %v2476
        %v2489 = vld [vmem:[#allocation11] sm:$0xff]
        %v2490 = vld [vmem:[#allocation11 + $0x8] sm:$0xff]
        %v2491 = vld [vmem:[#allocation11 + $0x10] sm:$0xff]
        %v2492 = vld [vmem:[#allocation11 + $0x18] sm:$0xff]
        %v2493 = vld [vmem:[#allocation11 + $0x20] sm:$0xff]
        %v2494 = vld [vmem:[#allocation11 + $0x28] sm:$0xff]
        %v2495 = vld [vmem:[#allocation11 + $0x30] sm:$0xff]
        %v2496 = vld [vmem:[#allocation11 + $0x38] sm:$0xff]
        %v2497 = vld [vmem:[#allocation11 + $0x40] sm:$0xff]
        %v2498 = vld [vmem:[#allocation11 + $0x48] sm:$0xff]
        %v2499 = vld [vmem:[#allocation11 + $0x50] sm:$0xff]
        %v2500 = vld [vmem:[#allocation11 + $0x58] sm:$0xff]
        %v2501 = vld [vmem:[#allocation11 + $0x60] sm:$0xff]
        %v2502 = vld [vmem:[#allocation11 + $0x68] sm:$0xff]
        %v2503 = vld [vmem:[#allocation11 + $0x70] sm:$0xff]
        %v2504 = vld [vmem:[#allocation11 + $0x78] sm:$0xff]
        %v2505 = vld [vmem:[#allocation11 + $0x80] sm:$0xff]
        %v2506 = vld [vmem:[#allocation11 + $0x88] sm:$0xff]
        %v2507 = vld [vmem:[#allocation11 + $0x90] sm:$0xff]
        %v2508 = vld [vmem:[#allocation11 + $0x98] sm:$0xff]
        %v2509 = vld [vmem:[#allocation11 + $0xa0] sm:$0xff]
        %v2510 = vld [vmem:[#allocation11 + $0xa8] sm:$0xff]
        %v2511 = vld [vmem:[#allocation11 + $0xb0] sm:$0xff]
        %v2512 = vld [vmem:[#allocation11 + $0xb8] sm:$0xff]
        %v2513 = vld [vmem:[#allocation11 + $0xc0] sm:$0xff]
        %v2514 = vld [vmem:[#allocation11 + $0xc8] sm:$0xff]
        %v2515 = vld [vmem:[#allocation11 + $0xd0] sm:$0xff]
        %v2516 = vld [vmem:[#allocation11 + $0xd8] sm:$0xff]
        %v2517 = vld [vmem:[#allocation11 + $0xe0] sm:$0xff]
        %v2518 = vld [vmem:[#allocation11 + $0xe8] sm:$0xff]
        %v2519 = vld [vmem:[#allocation11 + $0xf0] sm:$0xff]
        %v2520 = vld [vmem:[#allocation11 + $0xf8] sm:$0xff]
        %v2521 = vld [vmem:[#allocation11 + $0x100] sm:$0xff]
        %v2522 = vld [vmem:[#allocation11 + $0x108] sm:$0xff]
        %v2523 = vpack.c.bf16 %v2480, %v2480
        %v2524 = vpack.c.bf16 %v2481, %v2481
        %v2525 = vpack.c.bf16 %v2482, %v2482
        %s2526 = scalar_lea.vmem [#allocation11], 272
        %v2527 = vld [vmem:[%s2526] sm:$0xff]
        %v2528 = vld [vmem:[%s2526 + $0x8] sm:$0xff]
        %v2529 = vld [vmem:[%s2526 + $0x10] sm:$0xff]
        %v2530 = vld [vmem:[%s2526 + $0x18] sm:$0xff]
        %v2531 = vld [vmem:[%s2526 + $0x20] sm:$0xff]
        %v2532 = vld [vmem:[%s2526 + $0x28] sm:$0xff]
        %v2533 = vld [vmem:[%s2526 + $0x30] sm:$0xff]
        %v2534 = vld [vmem:[%s2526 + $0x38] sm:$0xff]
        %v2535 = vld [vmem:[%s2526 + $0x40] sm:$0xff]
        %v2536 = vld [vmem:[%s2526 + $0x48] sm:$0xff]
        %v2537 = vld [vmem:[%s2526 + $0x50] sm:$0xff]
        %v2538 = vld [vmem:[%s2526 + $0x58] sm:$0xff]
        %v2539 = vld [vmem:[%s2526 + $0x60] sm:$0xff]
        %v2540 = vld [vmem:[%s2526 + $0x68] sm:$0xff]
        %v2541 = vld [vmem:[%s2526 + $0x70] sm:$0xff]
        %v2542 = vld [vmem:[%s2526 + $0x78] sm:$0xff]
        %v2543 = vld [vmem:[%s2526 + $0x80] sm:$0xff]
        %v2544 = vld [vmem:[%s2526 + $0x88] sm:$0xff]
        %v2545 = vld [vmem:[%s2526 + $0x90] sm:$0xff]
        %v2546 = vld [vmem:[%s2526 + $0x98] sm:$0xff]
        %v2547 = vld [vmem:[%s2526 + $0xa0] sm:$0xff]
        %v2548 = vld [vmem:[%s2526 + $0xa8] sm:$0xff]
        %v2549 = vld [vmem:[%s2526 + $0xb0] sm:$0xff]
        %v2550 = vld [vmem:[%s2526 + $0xb8] sm:$0xff]
        %v2551 = vld [vmem:[%s2526 + $0xc0] sm:$0xff]
        %v2552 = vld [vmem:[%s2526 + $0xc8] sm:$0xff]
        %v2553 = vld [vmem:[%s2526 + $0xd0] sm:$0xff]
        %v2554 = vld [vmem:[%s2526 + $0xd8] sm:$0xff]
        %v2555 = vld [vmem:[%s2526 + $0xe0] sm:$0xff]
        %v2556 = vld [vmem:[%s2526 + $0xe8] sm:$0xff]
        %v2557 = vld [vmem:[%s2526 + $0xf0] sm:$0xff]
        %v2558 = vld [vmem:[%s2526 + $0xf8] sm:$0xff]
        %v2559 = vld [vmem:[%s2526 + $0x100] sm:$0xff]
        %v2560 = vld [vmem:[%s2526 + $0x108] sm:$0xff]
        %v2562 = vshrl.u32 %v2483, 16
        %v2564 = vshll.u32 %v2483, 16
        %v2566 = vrot.slane %v2564, 1
        %v2567 = vor.u32 %v2562, %v2566
        %v2569 = vshll.u32 %v2486, 16
        %v2571 = vrot.slane %v2569, 1
        %v2572 = vsel %vm1068, %v2567, %v2571
        %v2574 = vshrl.u32 %v2484, 16
        %v2576 = vshll.u32 %v2484, 16
        %v2578 = vrot.slane %v2576, 1
        %v2579 = vor.u32 %v2574, %v2578
        %v2581 = vshll.u32 %v2487, 16
        %v2583 = vrot.slane %v2581, 1
        %v2584 = vsel %vm1068, %v2579, %v2583
        %v2586 = vshrl.u32 %v2485, 16
        %v2588 = vshll.u32 %v2485, 16
        %v2590 = vrot.slane %v2588, 1
        %v2591 = vor.u32 %v2586, %v2590
        %v2593 = vshll.u32 %v2488, 16
        %v2595 = vrot.slane %v2593, 1
        %v2596 = vsel %vm1068, %v2591, %v2595
        %v2597 = vshrl.u32 %v2486, 16
        %v2599 = vor.u32 %v2597, %v2571
        %v2601 = vshll.u32 %v2523, 16
        %v2603 = vrot.slane %v2601, 1
        %v2604 = vsel %vm1068, %v2599, %v2603
        %v2605 = vshrl.u32 %v2487, 16
        %v2607 = vor.u32 %v2605, %v2583
        %v2609 = vshll.u32 %v2524, 16
        %v2611 = vrot.slane %v2609, 1
        %v2612 = vsel %vm1068, %v2607, %v2611
        %v2613 = vshrl.u32 %v2488, 16
        %v2615 = vor.u32 %v2613, %v2595
        %v2617 = vshll.u32 %v2525, 16
        %v2619 = vrot.slane %v2617, 1
        %v2620 = vsel %vm1068, %v2615, %v2619
        %v2659 = vunpack.c.l.b16 %v2527
        %v2660 = vunpack.c.h.b16 %v2527
        %v2661 = vunpack.c.l.b16 %v2528
        %v2662 = vunpack.c.h.b16 %v2528
        %v2663 = vunpack.c.l.b16 %v2529
        %v2664 = vunpack.c.h.b16 %v2529
        %v2665 = vunpack.c.l.b16 %v2530
        %v2666 = vunpack.c.h.b16 %v2530
        %v2667 = vunpack.c.l.b16 %v2531
        %v2668 = vunpack.c.h.b16 %v2531
        %v2669 = vunpack.c.l.b16 %v2532
        %v2670 = vunpack.c.h.b16 %v2532
        %v2671 = vunpack.c.l.b16 %v2533
        %v2672 = vunpack.c.h.b16 %v2533
        %v2673 = vunpack.c.l.b16 %v2534
        %v2674 = vunpack.c.h.b16 %v2534
        %v2675 = vunpack.c.l.b16 %v2535
        %v2676 = vunpack.c.h.b16 %v2535
        %v2677 = vunpack.c.l.b16 %v2536
        %v2678 = vunpack.c.h.b16 %v2536
        %v2679 = vunpack.c.l.b16 %v2537
        %v2680 = vunpack.c.h.b16 %v2537
        %v2681 = vunpack.c.l.b16 %v2538
        %v2682 = vunpack.c.h.b16 %v2538
        %v2683 = vunpack.c.l.b16 %v2539
        %v2684 = vunpack.c.h.b16 %v2539
        %v2685 = vunpack.c.l.b16 %v2540
        %v2686 = vunpack.c.h.b16 %v2540
        %v2687 = vunpack.c.l.b16 %v2541
        %v2688 = vunpack.c.h.b16 %v2541
        %v2689 = vunpack.c.l.b16 %v2542
        %v2690 = vunpack.c.h.b16 %v2542
        %v2691 = vunpack.c.l.b16 %v2543
        %v2692 = vunpack.c.h.b16 %v2543
        %v2693 = vunpack.c.l.b16 %v2544
        %v2694 = vunpack.c.h.b16 %v2544
        %v2695 = vunpack.c.l.b16 %v2545
        %v2696 = vunpack.c.h.b16 %v2545
        %v2697 = vunpack.c.l.b16 %v2546
        %v2698 = vunpack.c.h.b16 %v2546
        %v2699 = vunpack.c.l.b16 %v2547
        %v2700 = vunpack.c.h.b16 %v2547
        %v2701 = vunpack.c.l.b16 %v2548
        %v2702 = vunpack.c.h.b16 %v2548
        %v2703 = vunpack.c.l.b16 %v2549
        %v2704 = vunpack.c.h.b16 %v2549
        %v2705 = vunpack.c.l.b16 %v2550
        %v2706 = vunpack.c.h.b16 %v2550
        %v2707 = vunpack.c.l.b16 %v2551
        %v2708 = vunpack.c.h.b16 %v2551
        %v2709 = vunpack.c.l.b16 %v2552
        %v2710 = vunpack.c.h.b16 %v2552
        %v2711 = vunpack.c.l.b16 %v2553
        %v2712 = vunpack.c.h.b16 %v2553
        %v2713 = vunpack.c.l.b16 %v2554
        %v2714 = vunpack.c.h.b16 %v2554
        %v2715 = vunpack.c.l.b16 %v2555
        %v2716 = vunpack.c.h.b16 %v2555
        %v2717 = vunpack.c.l.b16 %v2556
        %v2718 = vunpack.c.h.b16 %v2556
        %v2719 = vunpack.c.l.b16 %v2557
        %v2720 = vunpack.c.h.b16 %v2557
        %v2721 = vunpack.c.l.b16 %v2558
        %v2722 = vunpack.c.h.b16 %v2558
        %v2723 = vunpack.c.l.b16 %v2559
        %v2724 = vunpack.c.h.b16 %v2559
        %v2725 = vunpack.c.l.b16 %v2560
        %v2726 = vunpack.c.h.b16 %v2560
        %v2727 = vpack.c.b16 %v2661, %v2659
        %v2728 = vpack.c.b16 %v2662, %v2660
        %v2729 = vpack.c.b16 %v2665, %v2663
        %v2730 = vpack.c.b16 %v2666, %v2664
        %v2731 = vpack.c.b16 %v2669, %v2667
        %v2732 = vpack.c.b16 %v2670, %v2668
        %v2733 = vpack.c.b16 %v2673, %v2671
        %v2734 = vpack.c.b16 %v2674, %v2672
        %v2735 = vpack.c.b16 %v2677, %v2675
        %v2736 = vpack.c.b16 %v2678, %v2676
        %v2737 = vpack.c.b16 %v2681, %v2679
        %v2738 = vpack.c.b16 %v2682, %v2680
        %v2739 = vpack.c.b16 %v2685, %v2683
        %v2740 = vpack.c.b16 %v2686, %v2684
        %v2741 = vpack.c.b16 %v2689, %v2687
        %v2742 = vpack.c.b16 %v2690, %v2688
        %v2743 = vpack.c.b16 %v2693, %v2691
        %v2744 = vpack.c.b16 %v2694, %v2692
        %v2745 = vpack.c.b16 %v2697, %v2695
        %v2746 = vpack.c.b16 %v2698, %v2696
        %v2747 = vpack.c.b16 %v2701, %v2699
        %v2748 = vpack.c.b16 %v2702, %v2700
        %v2749 = vpack.c.b16 %v2705, %v2703
        %v2750 = vpack.c.b16 %v2706, %v2704
        %v2751 = vpack.c.b16 %v2709, %v2707
        %v2752 = vpack.c.b16 %v2710, %v2708
        %v2753 = vpack.c.b16 %v2713, %v2711
        %v2754 = vpack.c.b16 %v2714, %v2712
        %v2755 = vpack.c.b16 %v2717, %v2715
        %v2756 = vpack.c.b16 %v2718, %v2716
        %v2757 = vpack.c.b16 %v2721, %v2719
        %v2758 = vpack.c.b16 %v2722, %v2720
        %v2759 = vpack.c.b16 %v2725, %v2723
        %v2760 = vpack.c.b16 %v2726, %v2724
        %v2796 = vsel %vm2387, %v2596, 0
        %v2799 = vsel %vm2387, %v2620, 0
        %2801 = vmatprep.subr.bf16.mxu0 %v2728
        %2802 = vmatpush1.bf16.msra.mxu0 %v2727
        %2803 = vmatprep.subr.bf16.mxu0 %v2730
        %2804 = vmatpush1.bf16.msra.mxu0 %v2729
        %2805 = vmatprep.subr.bf16.mxu0 %v2732
        %2806 = vmatpush1.bf16.msra.mxu0 %v2731
        %2807 = vmatprep.subr.bf16.mxu0 %v2734
        %2808 = vmatpush1.bf16.msra.mxu0 %v2733
        %2809 = vmatprep.subr.bf16.mxu0 %v2736
        %2810 = vmatpush1.bf16.msra.mxu0 %v2735
        %2811 = vmatprep.subr.bf16.mxu0 %v2738
        %2812 = vmatpush1.bf16.msra.mxu0 %v2737
        %2813 = vmatprep.subr.bf16.mxu0 %v2740
        %2814 = vmatpush1.bf16.msra.mxu0 %v2739
        %2815 = vmatprep.subr.bf16.mxu0 %v2742
        %2816 = vmatpush1.bf16.msra.mxu0 %v2741
        %2817 = vmatprep.subr.bf16.mxu0 %v2744
        %2818 = vmatpush1.bf16.msra.mxu0 %v2743
        %2819 = vmatprep.subr.bf16.mxu0 %v2746
        %2820 = vmatpush1.bf16.msra.mxu0 %v2745
        %2821 = vmatprep.subr.bf16.mxu0 %v2748
        %2822 = vmatpush1.bf16.msra.mxu0 %v2747
        %2823 = vmatprep.subr.bf16.mxu0 %v2750
        %2824 = vmatpush1.bf16.msra.mxu0 %v2749
        %2825 = vmatprep.subr.bf16.mxu0 %v2752
        %2826 = vmatpush1.bf16.msra.mxu0 %v2751
        %2827 = vmatprep.subr.bf16.mxu0 %v2754
        %2828 = vmatpush1.bf16.msra.mxu0 %v2753
        %2829 = vmatprep.subr.bf16.mxu0 %v2756
        %2830 = vmatpush1.bf16.msra.mxu0 %v2755
        %2831 = vmatprep.subr.bf16.mxu0 %v2758
        %2832 = vmatpush1.bf16.msra.mxu0 %v2757
        %2833 = vmatprep.mubr.bf16.mxu0 %v2584
        %2834 = vmatmul.mubr.bf16.gmra.mrb[0].mxu0 %v2572
        %v2835 = vpop.f32.mrb[0].mxu0
        %v2836 = vadd.f32 0.0, %v2835
        %v2837 = vpop.f32.mrb[0].mxu0
        %v2838 = vadd.f32 0.0, %v2837
        %v2839 = vpop.f32.mrb[0].mxu0
        %v2840 = vadd.f32 0.0, %v2839
        %v2841 = vpop.f32.mrb[0].mxu0
        %v2842 = vadd.f32 0.0, %v2841
        %2843 = vmatprep.mubr.bf16.mxu0 %v2612
        %2844 = vmatmul.mubr.bf16.gmra.mrb[0].mxu0 %v2604
        %v2845 = vpop.f32.mrb[0].mxu0
        %v2846 = vadd.f32 0.0, %v2845
        %v2847 = vpop.f32.mrb[0].mxu0
        %v2848 = vadd.f32 0.0, %v2847
        %v2849 = vpop.f32.mrb[0].mxu0
        %v2850 = vadd.f32 0.0, %v2849
        %v2851 = vpop.f32.mrb[0].mxu0
        %v2852 = vadd.f32 0.0, %v2851
        %2853 = vdwg.mxu0
        %2854 = vmatprep.subr.bf16.mxu0 %v2760
        %2855 = vmatpush1.bf16.msra.mxu0 %v2759
        %2856 = vmatprep.subr.bf16.mxu0 0
        %2857 = vmatpush1.bf16.msra.mxu0 0
        %2858 = vmatprep.subr.bf16.mxu0 0
        %2859 = vmatpush1.bf16.msra.mxu0 0
        %2860 = vmatprep.subr.bf16.mxu0 0
        %2861 = vmatpush1.bf16.msra.mxu0 0
        %2862 = vmatprep.subr.bf16.mxu0 0
        %2863 = vmatpush1.bf16.msra.mxu0 0
        %2864 = vmatprep.subr.bf16.mxu0 0
        %2865 = vmatpush1.bf16.msra.mxu0 0
        %2866 = vmatprep.subr.bf16.mxu0 0
        %2867 = vmatpush1.bf16.msra.mxu0 0
        %2868 = vmatprep.subr.bf16.mxu0 0
        %2869 = vmatpush1.bf16.msra.mxu0 0
        %2870 = vmatprep.subr.bf16.mxu0 0
        %2871 = vmatpush1.bf16.msra.mxu0 0
        %2872 = vmatprep.subr.bf16.mxu0 0
        %2873 = vmatpush1.bf16.msra.mxu0 0
        %2874 = vmatprep.subr.bf16.mxu0 0
        %2875 = vmatpush1.bf16.msra.mxu0 0
        %2876 = vmatprep.subr.bf16.mxu0 0
        %2877 = vmatpush1.bf16.msra.mxu0 0
        %2878 = vmatprep.subr.bf16.mxu0 0
        %2879 = vmatpush1.bf16.msra.mxu0 0
        %2880 = vmatprep.subr.bf16.mxu0 0
        %2881 = vmatpush1.bf16.msra.mxu0 0
        %2882 = vmatprep.subr.bf16.mxu0 0
        %2883 = vmatpush1.bf16.msra.mxu0 0
        %2884 = vmatprep.subr.bf16.mxu0 0
        %2885 = vmatpush1.bf16.msra.mxu0 0
        %2886 = vmatprep.mubr.bf16.mxu0 0
        %2887 = vmatmul.mubr.bf16.gmra.mrb[0].mxu0 %v2796
        %v2888 = vpop.f32.mrb[0].mxu0
        %v2889 = vadd.f32 %v2836, %v2888
        %v2890 = vpop.f32.mrb[0].mxu0
        %v2891 = vadd.f32 %v2838, %v2890
        %v2892 = vpop.f32.mrb[0].mxu0
        %v2893 = vadd.f32 %v2840, %v2892
        %v2894 = vpop.f32.mrb[0].mxu0
        %v2895 = vadd.f32 %v2842, %v2894
        %2896 = vmatprep.mubr.bf16.mxu0 0
        %2897 = vmatmul.mubr.bf16.gmra.mrb[0].mxu0 %v2799
        %v2898 = vpop.f32.mrb[0].mxu0
        %v2899 = vadd.f32 %v2846, %v2898
        %v2900 = vpop.f32.mrb[0].mxu0
        %v2901 = vadd.f32 %v2848, %v2900
        %v2902 = vpop.f32.mrb[0].mxu0
        %v2903 = vadd.f32 %v2850, %v2902
        %v2904 = vpop.f32.mrb[0].mxu0
        %v2905 = vadd.f32 %v2852, %v2904
        %2906 = vdwg.mxu0
        %v2941 = vunpack.c.l.b16 %v2489
        %v2942 = vunpack.c.h.b16 %v2489
        %v2943 = vunpack.c.l.b16 %v2490
        %v2944 = vunpack.c.h.b16 %v2490
        %v2945 = vunpack.c.l.b16 %v2491
        %v2946 = vunpack.c.h.b16 %v2491
        %v2947 = vunpack.c.l.b16 %v2492
        %v2948 = vunpack.c.h.b16 %v2492
        %v2949 = vunpack.c.l.b16 %v2493
        %v2950 = vunpack.c.h.b16 %v2493
        %v2951 = vunpack.c.l.b16 %v2494
        %v2952 = vunpack.c.h.b16 %v2494
        %v2953 = vunpack.c.l.b16 %v2495
        %v2954 = vunpack.c.h.b16 %v2495
        %v2955 = vunpack.c.l.b16 %v2496
        %v2956 = vunpack.c.h.b16 %v2496
        %v2957 = vunpack.c.l.b16 %v2497
        %v2958 = vunpack.c.h.b16 %v2497
        %v2959 = vunpack.c.l.b16 %v2498
        %v2960 = vunpack.c.h.b16 %v2498
        %v2961 = vunpack.c.l.b16 %v2499
        %v2962 = vunpack.c.h.b16 %v2499
        %v2963 = vunpack.c.l.b16 %v2500
        %v2964 = vunpack.c.h.b16 %v2500
        %v2965 = vunpack.c.l.b16 %v2501
        %v2966 = vunpack.c.h.b16 %v2501
        %v2967 = vunpack.c.l.b16 %v2502
        %v2968 = vunpack.c.h.b16 %v2502
        %v2969 = vunpack.c.l.b16 %v2503
        %v2970 = vunpack.c.h.b16 %v2503
        %v2971 = vunpack.c.l.b16 %v2504
        %v2972 = vunpack.c.h.b16 %v2504
        %v2973 = vunpack.c.l.b16 %v2505
        %v2974 = vunpack.c.h.b16 %v2505
        %v2975 = vunpack.c.l.b16 %v2506
        %v2976 = vunpack.c.h.b16 %v2506
        %v2977 = vunpack.c.l.b16 %v2507
        %v2978 = vunpack.c.h.b16 %v2507
        %v2979 = vunpack.c.l.b16 %v2508
        %v2980 = vunpack.c.h.b16 %v2508
        %v2981 = vunpack.c.l.b16 %v2509
        %v2982 = vunpack.c.h.b16 %v2509
        %v2983 = vunpack.c.l.b16 %v2510
        %v2984 = vunpack.c.h.b16 %v2510
        %v2985 = vunpack.c.l.b16 %v2511
        %v2986 = vunpack.c.h.b16 %v2511
        %v2987 = vunpack.c.l.b16 %v2512
        %v2988 = vunpack.c.h.b16 %v2512
        %v2989 = vunpack.c.l.b16 %v2513
        %v2990 = vunpack.c.h.b16 %v2513
        %v2991 = vunpack.c.l.b16 %v2514
        %v2992 = vunpack.c.h.b16 %v2514
        %v2993 = vunpack.c.l.b16 %v2515
        %v2994 = vunpack.c.h.b16 %v2515
        %v2995 = vunpack.c.l.b16 %v2516
        %v2996 = vunpack.c.h.b16 %v2516
        %v2997 = vunpack.c.l.b16 %v2517
        %v2998 = vunpack.c.h.b16 %v2517
        %v2999 = vunpack.c.l.b16 %v2518
        %v3000 = vunpack.c.h.b16 %v2518
        %v3001 = vunpack.c.l.b16 %v2519
        %v3002 = vunpack.c.h.b16 %v2519
        %v3003 = vunpack.c.l.b16 %v2520
        %v3004 = vunpack.c.h.b16 %v2520
        %v3005 = vunpack.c.l.b16 %v2521
        %v3006 = vunpack.c.h.b16 %v2521
        %v3007 = vunpack.c.l.b16 %v2522
        %v3008 = vunpack.c.h.b16 %v2522
        %v3009 = vpack.c.b16 %v2943, %v2941
        %v3010 = vpack.c.b16 %v2944, %v2942
        %v3011 = vpack.c.b16 %v2947, %v2945
        %v3012 = vpack.c.b16 %v2948, %v2946
        %v3013 = vpack.c.b16 %v2951, %v2949
        %v3014 = vpack.c.b16 %v2952, %v2950
        %v3015 = vpack.c.b16 %v2955, %v2953
        %v3016 = vpack.c.b16 %v2956, %v2954
        %v3017 = vpack.c.b16 %v2959, %v2957
        %v3018 = vpack.c.b16 %v2960, %v2958
        %v3019 = vpack.c.b16 %v2963, %v2961
        %v3020 = vpack.c.b16 %v2964, %v2962
        %v3021 = vpack.c.b16 %v2967, %v2965
        %v3022 = vpack.c.b16 %v2968, %v2966
        %v3023 = vpack.c.b16 %v2971, %v2969
        %v3024 = vpack.c.b16 %v2972, %v2970
        %v3025 = vpack.c.b16 %v2975, %v2973
        %v3026 = vpack.c.b16 %v2976, %v2974
        %v3027 = vpack.c.b16 %v2979, %v2977
        %v3028 = vpack.c.b16 %v2980, %v2978
        %v3029 = vpack.c.b16 %v2983, %v2981
        %v3030 = vpack.c.b16 %v2984, %v2982
        %v3031 = vpack.c.b16 %v2987, %v2985
        %v3032 = vpack.c.b16 %v2988, %v2986
        %v3033 = vpack.c.b16 %v2991, %v2989
        %v3034 = vpack.c.b16 %v2992, %v2990
        %v3035 = vpack.c.b16 %v2995, %v2993
        %v3036 = vpack.c.b16 %v2996, %v2994
        %v3037 = vpack.c.b16 %v2999, %v2997
        %v3038 = vpack.c.b16 %v3000, %v2998
        %v3039 = vpack.c.b16 %v3003, %v3001
        %v3040 = vpack.c.b16 %v3004, %v3002
        %v3041 = vpack.c.b16 %v3007, %v3005
        %v3042 = vpack.c.b16 %v3008, %v3006
        %v3077 = vsel %vm2387, %v2485, 0
        %v3079 = vsel %vm2387, %v2488, 0
        %3081 = vmatprep.subr.bf16.mxu0 %v3010
        %3082 = vmatpush1.bf16.msra.mxu0 %v3009
        %3083 = vmatprep.subr.bf16.mxu0 %v3012
        %3084 = vmatpush1.bf16.msra.mxu0 %v3011
        %3085 = vmatprep.subr.bf16.mxu0 %v3014
        %3086 = vmatpush1.bf16.msra.mxu0 %v3013
        %3087 = vmatprep.subr.bf16.mxu0 %v3016
        %3088 = vmatpush1.bf16.msra.mxu0 %v3015
        %3089 = vmatprep.subr.bf16.mxu0 %v3018
        %3090 = vmatpush1.bf16.msra.mxu0 %v3017
        %3091 = vmatprep.subr.bf16.mxu0 %v3020
        %3092 = vmatpush1.bf16.msra.mxu0 %v3019
        %3093 = vmatprep.subr.bf16.mxu0 %v3022
        %3094 = vmatpush1.bf16.msra.mxu0 %v3021
        %3095 = vmatprep.subr.bf16.mxu0 %v3024
        %3096 = vmatpush1.bf16.msra.mxu0 %v3023
        %3097 = vmatprep.subr.bf16.mxu0 %v3026
        %3098 = vmatpush1.bf16.msra.mxu0 %v3025
        %3099 = vmatprep.subr.bf16.mxu0 %v3028
        %3100 = vmatpush1.bf16.msra.mxu0 %v3027
        %3101 = vmatprep.subr.bf16.mxu0 %v3030
        %3102 = vmatpush1.bf16.msra.mxu0 %v3029
        %3103 = vmatprep.subr.bf16.mxu0 %v3032
        %3104 = vmatpush1.bf16.msra.mxu0 %v3031
        %3105 = vmatprep.subr.bf16.mxu0 %v3034
        %3106 = vmatpush1.bf16.msra.mxu0 %v3033
        %3107 = vmatprep.subr.bf16.mxu0 %v3036
        %3108 = vmatpush1.bf16.msra.mxu0 %v3035
        %3109 = vmatprep.subr.bf16.mxu0 %v3038
        %3110 = vmatpush1.bf16.msra.mxu0 %v3037
        %3111 = vmatprep.subr.bf16.mxu0 %v3040
        %3112 = vmatpush1.bf16.msra.mxu0 %v3039
        %3113 = vmatprep.mubr.bf16.mxu0 %v2484
        %3114 = vmatmul.mubr.bf16.gmra.mrb[0].mxu0 %v2483
        %v3115 = vpop.f32.mrb[0].mxu0
        %v3116 = vadd.f32 %v2889, %v3115
        %v3117 = vpop.f32.mrb[0].mxu0
        %v3118 = vadd.f32 %v2891, %v3117
        %v3119 = vpop.f32.mrb[0].mxu0
        %v3120 = vadd.f32 %v2893, %v3119
        %v3121 = vpop.f32.mrb[0].mxu0
        %v3122 = vadd.f32 %v2895, %v3121
        %3123 = vmatprep.mubr.bf16.mxu0 %v2487
        %3124 = vmatmul.mubr.bf16.gmra.mrb[0].mxu0 %v2486
        %v3125 = vpop.f32.mrb[0].mxu0
        %v3126 = vadd.f32 %v2899, %v3125
        %v3127 = vpop.f32.mrb[0].mxu0
        %v3128 = vadd.f32 %v2901, %v3127
        %v3129 = vpop.f32.mrb[0].mxu0
        %v3130 = vadd.f32 %v2903, %v3129
        %v3131 = vpop.f32.mrb[0].mxu0
        %v3132 = vadd.f32 %v2905, %v3131
        %3133 = vdwg.mxu0
        %3134 = vmatprep.subr.bf16.mxu0 %v3042
        %3135 = vmatpush1.bf16.msra.mxu0 %v3041
        %3136 = vmatprep.subr.bf16.mxu0 0
        %3137 = vmatpush1.bf16.msra.mxu0 0
        %3138 = vmatprep.subr.bf16.mxu0 0
        %3139 = vmatpush1.bf16.msra.mxu0 0
        %3140 = vmatprep.subr.bf16.mxu0 0
        %3141 = vmatpush1.bf16.msra.mxu0 0
        %3142 = vmatprep.subr.bf16.mxu0 0
        %3143 = vmatpush1.bf16.msra.mxu0 0
        %3144 = vmatprep.subr.bf16.mxu0 0
        %3145 = vmatpush1.bf16.msra.mxu0 0
        %3146 = vmatprep.subr.bf16.mxu0 0
        %3147 = vmatpush1.bf16.msra.mxu0 0
        %3148 = vmatprep.subr.bf16.mxu0 0
        %3149 = vmatpush1.bf16.msra.mxu0 0
        %3150 = vmatprep.subr.bf16.mxu0 0
        %3151 = vmatpush1.bf16.msra.mxu0 0
        %3152 = vmatprep.subr.bf16.mxu0 0
        %3153 = vmatpush1.bf16.msra.mxu0 0
        %3154 = vmatprep.subr.bf16.mxu0 0
        %3155 = vmatpush1.bf16.msra.mxu0 0
        %3156 = vmatprep.subr.bf16.mxu0 0
        %3157 = vmatpush1.bf16.msra.mxu0 0
        %3158 = vmatprep.subr.bf16.mxu0 0
        %3159 = vmatpush1.bf16.msra.mxu0 0
        %3160 = vmatprep.subr.bf16.mxu0 0
        %3161 = vmatpush1.bf16.msra.mxu0 0
        %3162 = vmatprep.subr.bf16.mxu0 0
        %3163 = vmatpush1.bf16.msra.mxu0 0
        %3164 = vmatprep.subr.bf16.mxu0 0
        %3165 = vmatpush1.bf16.msra.mxu0 0
        %3166 = vmatprep.mubr.bf16.mxu0 0
        %3167 = vmatmul.mubr.bf16.gmra.mrb[0].mxu0 %v3077
        %v3168 = vpop.f32.mrb[0].mxu0
        %v3169 = vadd.f32 %v3116, %v3168
        %v3170 = vpop.f32.mrb[0].mxu0
        %v3171 = vadd.f32 %v3118, %v3170
        %v3172 = vpop.f32.mrb[0].mxu0
        %v3173 = vadd.f32 %v3120, %v3172
        %v3174 = vpop.f32.mrb[0].mxu0
        %v3175 = vadd.f32 %v3122, %v3174
        %3176 = vmatprep.mubr.bf16.mxu0 0
        %3177 = vmatmul.mubr.bf16.gmra.mrb[0].mxu0 %v3079
        %v3178 = vpop.f32.mrb[0].mxu0
        %v3179 = vadd.f32 %v3126, %v3178
        %v3180 = vpop.f32.mrb[0].mxu0
        %v3181 = vadd.f32 %v3128, %v3180
        %v3182 = vpop.f32.mrb[0].mxu0
        %v3183 = vadd.f32 %v3130, %v3182
        %v3184 = vpop.f32.mrb[0].mxu0
        %v3185 = vadd.f32 %v3132, %v3184
        %3186 = vdwg.mxu0
        %s3187 = scalar_lea.vmem [#allocation11], 544
        %v3188 = vld [vmem:[%s3187] sm:$0xff]
        %v3189 = vld [vmem:[%s3187 + $0x8] sm:$0xff]
        %v3190 = vld [vmem:[%s3187 + $0x10] sm:$0xff]
        %v3191 = vld [vmem:[%s3187 + $0x18] sm:$0xff]
        %v3192 = vld [vmem:[%s3187 + $0x20] sm:$0xff]
        %v3193 = vld [vmem:[%s3187 + $0x28] sm:$0xff]
        %v3194 = vld [vmem:[%s3187 + $0x30] sm:$0xff]
        %v3195 = vld [vmem:[%s3187 + $0x38] sm:$0xff]
        %v3196 = vld [vmem:[%s3187 + $0x40] sm:$0xff]
        %v3197 = vld [vmem:[%s3187 + $0x48] sm:$0xff]
        %v3198 = vld [vmem:[%s3187 + $0x50] sm:$0xff]
        %v3199 = vld [vmem:[%s3187 + $0x58] sm:$0xff]
        %v3200 = vld [vmem:[%s3187 + $0x60] sm:$0xff]
        %v3201 = vld [vmem:[%s3187 + $0x68] sm:$0xff]
        %v3202 = vld [vmem:[%s3187 + $0x70] sm:$0xff]
        %v3203 = vld [vmem:[%s3187 + $0x78] sm:$0xff]
        %v3204 = vld [vmem:[%s3187 + $0x80] sm:$0xff]
        %v3205 = vld [vmem:[%s3187 + $0x88] sm:$0xff]
        %v3206 = vld [vmem:[%s3187 + $0x90] sm:$0xff]
        %v3207 = vld [vmem:[%s3187 + $0x98] sm:$0xff]
        %v3208 = vld [vmem:[%s3187 + $0xa0] sm:$0xff]
        %v3209 = vld [vmem:[%s3187 + $0xa8] sm:$0xff]
        %v3210 = vld [vmem:[%s3187 + $0xb0] sm:$0xff]
        %v3211 = vld [vmem:[%s3187 + $0xb8] sm:$0xff]
        %v3212 = vld [vmem:[%s3187 + $0xc0] sm:$0xff]
        %v3213 = vld [vmem:[%s3187 + $0xc8] sm:$0xff]
        %v3214 = vld [vmem:[%s3187 + $0xd0] sm:$0xff]
        %v3215 = vld [vmem:[%s3187 + $0xd8] sm:$0xff]
        %v3216 = vld [vmem:[%s3187 + $0xe0] sm:$0xff]
        %v3217 = vld [vmem:[%s3187 + $0xe8] sm:$0xff]
        %v3218 = vld [vmem:[%s3187 + $0xf0] sm:$0xff]
        %v3219 = vld [vmem:[%s3187 + $0xf8] sm:$0xff]
        %v3220 = vld [vmem:[%s3187 + $0x100] sm:$0xff]
        %v3221 = vld [vmem:[%s3187 + $0x108] sm:$0xff]
        %v3231 = vrot.slane %v2483, 1
        %v3232 = vrot.slane %v2486, 1
        %v3233 = vsel %vm1754, %v3231, %v3232
        %v3234 = vrot.slane %v2484, 1
        %v3235 = vrot.slane %v2487, 1
        %v3236 = vsel %vm1754, %v3234, %v3235
        %v3237 = vrot.slane %v2485, 1
        %v3238 = vrot.slane %v2488, 1
        %v3239 = vsel %vm1754, %v3237, %v3238
        %v3240 = vrot.slane %v2523, 1
        %v3241 = vsel %vm1754, %v3232, %v3240
        %v3242 = vrot.slane %v2524, 1
        %v3243 = vsel %vm1754, %v3235, %v3242
        %v3244 = vrot.slane %v2525, 1
        %v3245 = vsel %vm1754, %v3238, %v3244
        %v3284 = vunpack.c.l.b16 %v3188
        %v3285 = vunpack.c.h.b16 %v3188
        %v3286 = vunpack.c.l.b16 %v3189
        %v3287 = vunpack.c.h.b16 %v3189
        %v3288 = vunpack.c.l.b16 %v3190
        %v3289 = vunpack.c.h.b16 %v3190
        %v3290 = vunpack.c.l.b16 %v3191
        %v3291 = vunpack.c.h.b16 %v3191
        %v3292 = vunpack.c.l.b16 %v3192
        %v3293 = vunpack.c.h.b16 %v3192
        %v3294 = vunpack.c.l.b16 %v3193
        %v3295 = vunpack.c.h.b16 %v3193
        %v3296 = vunpack.c.l.b16 %v3194
        %v3297 = vunpack.c.h.b16 %v3194
        %v3298 = vunpack.c.l.b16 %v3195
        %v3299 = vunpack.c.h.b16 %v3195
        %v3300 = vunpack.c.l.b16 %v3196
        %v3301 = vunpack.c.h.b16 %v3196
        %v3302 = vunpack.c.l.b16 %v3197
        %v3303 = vunpack.c.h.b16 %v3197
        %v3304 = vunpack.c.l.b16 %v3198
        %v3305 = vunpack.c.h.b16 %v3198
        %v3306 = vunpack.c.l.b16 %v3199
        %v3307 = vunpack.c.h.b16 %v3199
        %v3308 = vunpack.c.l.b16 %v3200
        %v3309 = vunpack.c.h.b16 %v3200
        %v3310 = vunpack.c.l.b16 %v3201
        %v3311 = vunpack.c.h.b16 %v3201
        %v3312 = vunpack.c.l.b16 %v3202
        %v3313 = vunpack.c.h.b16 %v3202
        %v3314 = vunpack.c.l.b16 %v3203
        %v3315 = vunpack.c.h.b16 %v3203
        %v3316 = vunpack.c.l.b16 %v3204
        %v3317 = vunpack.c.h.b16 %v3204
        %v3318 = vunpack.c.l.b16 %v3205
        %v3319 = vunpack.c.h.b16 %v3205
        %v3320 = vunpack.c.l.b16 %v3206
        %v3321 = vunpack.c.h.b16 %v3206
        %v3322 = vunpack.c.l.b16 %v3207
        %v3323 = vunpack.c.h.b16 %v3207
        %v3324 = vunpack.c.l.b16 %v3208
        %v3325 = vunpack.c.h.b16 %v3208
        %v3326 = vunpack.c.l.b16 %v3209
        %v3327 = vunpack.c.h.b16 %v3209
        %v3328 = vunpack.c.l.b16 %v3210
        %v3329 = vunpack.c.h.b16 %v3210
        %v3330 = vunpack.c.l.b16 %v3211
        %v3331 = vunpack.c.h.b16 %v3211
        %v3332 = vunpack.c.l.b16 %v3212
        %v3333 = vunpack.c.h.b16 %v3212
        %v3334 = vunpack.c.l.b16 %v3213
        %v3335 = vunpack.c.h.b16 %v3213
        %v3336 = vunpack.c.l.b16 %v3214
        %v3337 = vunpack.c.h.b16 %v3214
        %v3338 = vunpack.c.l.b16 %v3215
        %v3339 = vunpack.c.h.b16 %v3215
        %v3340 = vunpack.c.l.b16 %v3216
        %v3341 = vunpack.c.h.b16 %v3216
        %v3342 = vunpack.c.l.b16 %v3217
        %v3343 = vunpack.c.h.b16 %v3217
        %v3344 = vunpack.c.l.b16 %v3218
        %v3345 = vunpack.c.h.b16 %v3218
        %v3346 = vunpack.c.l.b16 %v3219
        %v3347 = vunpack.c.h.b16 %v3219
        %v3348 = vunpack.c.l.b16 %v3220
        %v3349 = vunpack.c.h.b16 %v3220
        %v3350 = vunpack.c.l.b16 %v3221
        %v3351 = vunpack.c.h.b16 %v3221
        %v3352 = vpack.c.b16 %v3286, %v3284
        %v3353 = vpack.c.b16 %v3287, %v3285
        %v3354 = vpack.c.b16 %v3290, %v3288
        %v3355 = vpack.c.b16 %v3291, %v3289
        %v3356 = vpack.c.b16 %v3294, %v3292
        %v3357 = vpack.c.b16 %v3295, %v3293
        %v3358 = vpack.c.b16 %v3298, %v3296
        %v3359 = vpack.c.b16 %v3299, %v3297
        %v3360 = vpack.c.b16 %v3302, %v3300
        %v3361 = vpack.c.b16 %v3303, %v3301
        %v3362 = vpack.c.b16 %v3306, %v3304
        %v3363 = vpack.c.b16 %v3307, %v3305
        %v3364 = vpack.c.b16 %v3310, %v3308
        %v3365 = vpack.c.b16 %v3311, %v3309
        %v3366 = vpack.c.b16 %v3314, %v3312
        %v3367 = vpack.c.b16 %v3315, %v3313
        %v3368 = vpack.c.b16 %v3318, %v3316
        %v3369 = vpack.c.b16 %v3319, %v3317
        %v3370 = vpack.c.b16 %v3322, %v3320
        %v3371 = vpack.c.b16 %v3323, %v3321
        %v3372 = vpack.c.b16 %v3326, %v3324
        %v3373 = vpack.c.b16 %v3327, %v3325
        %v3374 = vpack.c.b16 %v3330, %v3328
        %v3375 = vpack.c.b16 %v3331, %v3329
        %v3376 = vpack.c.b16 %v3334, %v3332
        %v3377 = vpack.c.b16 %v3335, %v3333
        %v3378 = vpack.c.b16 %v3338, %v3336
        %v3379 = vpack.c.b16 %v3339, %v3337
        %v3380 = vpack.c.b16 %v3342, %v3340
        %v3381 = vpack.c.b16 %v3343, %v3341
        %v3382 = vpack.c.b16 %v3346, %v3344
        %v3383 = vpack.c.b16 %v3347, %v3345
        %v3384 = vpack.c.b16 %v3350, %v3348
        %v3385 = vpack.c.b16 %v3351, %v3349
        %v3421 = vsel %vm2387, %v3239, 0
        %v3424 = vsel %vm2387, %v3245, 0
        %3426 = vmatprep.subr.bf16.mxu0 %v3353
        %3427 = vmatpush1.bf16.msra.mxu0 %v3352
        %3428 = vmatprep.subr.bf16.mxu0 %v3355
        %3429 = vmatpush1.bf16.msra.mxu0 %v3354
        %3430 = vmatprep.subr.bf16.mxu0 %v3357
        %3431 = vmatpush1.bf16.msra.mxu0 %v3356
        %3432 = vmatprep.subr.bf16.mxu0 %v3359
        %3433 = vmatpush1.bf16.msra.mxu0 %v3358
        %3434 = vmatprep.subr.bf16.mxu0 %v3361
        %3435 = vmatpush1.bf16.msra.mxu0 %v3360
        %3436 = vmatprep.subr.bf16.mxu0 %v3363
        %3437 = vmatpush1.bf16.msra.mxu0 %v3362
        %3438 = vmatprep.subr.bf16.mxu0 %v3365
        %3439 = vmatpush1.bf16.msra.mxu0 %v3364
        %3440 = vmatprep.subr.bf16.mxu0 %v3367
        %3441 = vmatpush1.bf16.msra.mxu0 %v3366
        %3442 = vmatprep.subr.bf16.mxu0 %v3369
        %3443 = vmatpush1.bf16.msra.mxu0 %v3368
        %3444 = vmatprep.subr.bf16.mxu0 %v3371
        %3445 = vmatpush1.bf16.msra.mxu0 %v3370
        %3446 = vmatprep.subr.bf16.mxu0 %v3373
        %3447 = vmatpush1.bf16.msra.mxu0 %v3372
        %3448 = vmatprep.subr.bf16.mxu0 %v3375
        %3449 = vmatpush1.bf16.msra.mxu0 %v3374
        %3450 = vmatprep.subr.bf16.mxu0 %v3377
        %3451 = vmatpush1.bf16.msra.mxu0 %v3376
        %3452 = vmatprep.subr.bf16.mxu0 %v3379
        %3453 = vmatpush1.bf16.msra.mxu0 %v3378
        %3454 = vmatprep.subr.bf16.mxu0 %v3381
        %3455 = vmatpush1.bf16.msra.mxu0 %v3380
        %3456 = vmatprep.subr.bf16.mxu0 %v3383
        %3457 = vmatpush1.bf16.msra.mxu0 %v3382
        %3458 = vmatprep.mubr.bf16.mxu0 %v3236
        %3459 = vmatmul.mubr.bf16.gmra.mrb[0].mxu0 %v3233
        %v3460 = vpop.f32.mrb[0].mxu0
        %v3461 = vadd.f32 0.0, %v3460
        %v3462 = vpop.f32.mrb[0].mxu0
        %v3463 = vadd.f32 0.0, %v3462
        %v3464 = vpop.f32.mrb[0].mxu0
        %v3465 = vadd.f32 0.0, %v3464
        %v3466 = vpop.f32.mrb[0].mxu0
        %v3467 = vadd.f32 0.0, %v3466
        %3468 = vmatprep.mubr.bf16.mxu0 %v3243
        %3469 = vmatmul.mubr.bf16.gmra.mrb[0].mxu0 %v3241
        %v3470 = vpop.f32.mrb[0].mxu0
        %v3471 = vadd.f32 0.0, %v3470
        %v3472 = vpop.f32.mrb[0].mxu0
        %v3473 = vadd.f32 0.0, %v3472
        %v3474 = vpop.f32.mrb[0].mxu0
        %v3475 = vadd.f32 0.0, %v3474
        %v3476 = vpop.f32.mrb[0].mxu0
        %v3477 = vadd.f32 0.0, %v3476
        %3478 = vdwg.mxu0
        %3479 = vmatprep.subr.bf16.mxu0 %v3385
        %3480 = vmatpush1.bf16.msra.mxu0 %v3384
        %3481 = vmatprep.subr.bf16.mxu0 0
        %3482 = vmatpush1.bf16.msra.mxu0 0
        %3483 = vmatprep.subr.bf16.mxu0 0
        %3484 = vmatpush1.bf16.msra.mxu0 0
        %3485 = vmatprep.subr.bf16.mxu0 0
        %3486 = vmatpush1.bf16.msra.mxu0 0
        %3487 = vmatprep.subr.bf16.mxu0 0
        %3488 = vmatpush1.bf16.msra.mxu0 0
        %3489 = vmatprep.subr.bf16.mxu0 0
        %3490 = vmatpush1.bf16.msra.mxu0 0
        %3491 = vmatprep.subr.bf16.mxu0 0
        %3492 = vmatpush1.bf16.msra.mxu0 0
        %3493 = vmatprep.subr.bf16.mxu0 0
        %3494 = vmatpush1.bf16.msra.mxu0 0
        %3495 = vmatprep.subr.bf16.mxu0 0
        %3496 = vmatpush1.bf16.msra.mxu0 0
        %3497 = vmatprep.subr.bf16.mxu0 0
        %3498 = vmatpush1.bf16.msra.mxu0 0
        %3499 = vmatprep.subr.bf16.mxu0 0
        %3500 = vmatpush1.bf16.msra.mxu0 0
        %3501 = vmatprep.subr.bf16.mxu0 0
        %3502 = vmatpush1.bf16.msra.mxu0 0
        %3503 = vmatprep.subr.bf16.mxu0 0
        %3504 = vmatpush1.bf16.msra.mxu0 0
        %3505 = vmatprep.subr.bf16.mxu0 0
        %3506 = vmatpush1.bf16.msra.mxu0 0
        %3507 = vmatprep.subr.bf16.mxu0 0
        %3508 = vmatpush1.bf16.msra.mxu0 0
        %3509 = vmatprep.subr.bf16.mxu0 0
        %3510 = vmatpush1.bf16.msra.mxu0 0
        %3511 = vmatprep.mubr.bf16.mxu0 0
        %3512 = vmatmul.mubr.bf16.gmra.mrb[0].mxu0 %v3421
        %v3513 = vpop.f32.mrb[0].mxu0
        %v3514 = vadd.f32 %v3461, %v3513
        %v3515 = vpop.f32.mrb[0].mxu0
        %v3516 = vadd.f32 %v3463, %v3515
        %v3517 = vpop.f32.mrb[0].mxu0
        %v3518 = vadd.f32 %v3465, %v3517
        %v3519 = vpop.f32.mrb[0].mxu0
        %v3520 = vadd.f32 %v3467, %v3519
        %3521 = vmatprep.mubr.bf16.mxu0 0
        %3522 = vmatmul.mubr.bf16.gmra.mrb[0].mxu0 %v3424
        %v3523 = vpop.f32.mrb[0].mxu0
        %v3524 = vadd.f32 %v3471, %v3523
        %v3525 = vpop.f32.mrb[0].mxu0
        %v3526 = vadd.f32 %v3473, %v3525
        %v3527 = vpop.f32.mrb[0].mxu0
        %v3528 = vadd.f32 %v3475, %v3527
        %v3529 = vpop.f32.mrb[0].mxu0
        %v3530 = vadd.f32 %v3477, %v3529
        %3531 = vdwg.mxu0
        %v3532 = vadd.f32 %v3169, %v3514
        %v3533 = vadd.f32 %v3171, %v3516
        %v3534 = vadd.f32 %v3173, %v3518
        %v3535 = vadd.f32 %v3175, %v3520
        %v3536 = vadd.f32 %v3179, %v3524
        %v3537 = vadd.f32 %v3181, %v3526
        %v3538 = vadd.f32 %v3183, %v3528
        %v3539 = vadd.f32 %v3185, %v3530
        %v3540 = vld [vmem:[#allocation14] sm:$0x3]
        %v3542 = vlaneseq
        %v3543 = vshrl.u32 %v3542, 7
        %v3544 = vsub.s32 0, %v3543
        %v3545 = vrot.slane %v3540, %v3544
        %v3546 = vlaneseq
        %v3547 = vshrl.u32 %v3546, 7
        %v3548 = vsub.s32 1, %v3547
        %v3549 = vrot.slane %v3540, %v3548
        %v3552 = vadd.f32 %v3532, %v3545
        %v3553 = vadd.f32 %v3533, %v3549
        %v3554 = vadd.f32 %v3534, %v3545
        %v3555 = vadd.f32 %v3535, %v3549
        %v3556 = vadd.f32 %v3536, %v3545
        %v3557 = vadd.f32 %v3537, %v3549
        %v3558 = vadd.f32 %v3538, %v3545
        %v3559 = vadd.f32 %v3539, %v3549
        %v3560 = vmax.f32 %v3552, 0.0
        %v3561 = vmax.f32 %v3553, 0.0
        %v3562 = vmax.f32 %v3554, 0.0
        %v3563 = vmax.f32 %v3555, 0.0
        %v3564 = vmax.f32 %v3556, 0.0
        %v3565 = vmax.f32 %v3557, 0.0
        %v3566 = vmax.f32 %v3558, 0.0
        %v3567 = vmax.f32 %v3559, 0.0
        %3568 = vst [vmem:[%s404] sm:$0xff] %v3560
        %3569 = vst [vmem:[%s404 + $0x8] sm:$0xff] %v3561
        %3570 = vst [vmem:[%s404 + $0x10] sm:$0xff] %v3562
        %3571 = vst [vmem:[%s404 + $0x18] sm:$0xff] %v3563
        %3572 = vst [vmem:[%s404 + $0x20] sm:$0xff] %v3564
        %3573 = vst [vmem:[%s404 + $0x28] sm:$0xff] %v3565
        %3574 = vst [vmem:[%s404 + $0x30] sm:$0xff] %v3566
        %3575 = vst [vmem:[%s404 + $0x38] sm:$0xff] %v3567
        %s3576 = sand.u32 %s194, 1
        %s3577 = scalar_lea.sflag [#allocation5], %s3576
        %s3578 = sand.u32 %s194, 1
        %s3579 = smul.addr %s3578, 64
        %s3580 = scalar_lea.vmem [#allocation15], %s3579
        // Predicated region
        $region77: #{decoder_block_forward.1} parent=47 // pred_check
          %p3581 = pneg %p204
        $region78: #{decoder_block_forward.1} parent=47 // pred_check_branch
          %3583 = sbr.rel (%p3581) target = $region80
        $region79: #{decoder_block_forward.1} parent=47 // pred_region
          %s3585 = ssub.s32 1024, 1024
          %3586 = vsyncadd %s3577, %s3585
          %s3587 = smul.addr %s29, 8
          %s3588 = smul.addr %s3587, 128
          %s3589 = scalar_lea.hbm %s7, %s3588
          %s3590 = sshll.u32 %s3580, 4
          %s3591 = int_to_ptr.vmem [resolvable:$true] %s3590
          %3596 = dma.vmem_to_hbm [thread:$0]  %s3591, 1024, %s3589, %s3577, 256, 256, 16
        $region80: #{decoder_block_forward.1} parent=47 // pred_fallthru
          _
      $region48: #{decoder_block_forward.1} parent=5 // pred_fallthru
        _
      %p3597 = scmp.le.s32.totalorder 2, %s24
      // Predicated region
      $region81: #{decoder_block_forward.1} parent=5 // pred_check
        %p3598 = pneg %p3597
      $region82: #{decoder_block_forward.1} parent=5 // pred_check_branch
        %3600 = sbr.rel (%p3598) target = $region84
      $region83: #{decoder_block_forward.1} parent=5 // pred_region
        %s3601 = ssub.s32 %s24, 2
        // Predicated region
        $region85: #{decoder_block_forward.1} parent=83 // pred_check
          %p3602 = pneg %p210
        $region86: #{decoder_block_forward.1} parent=83 // pred_check_branch
          %3604 = sbr.rel (%p3602) target = $region88
        $region87: #{decoder_block_forward.1} parent=83 // pred_region
          %s3605 = sand.u32 %s195, 1
          %s3606 = scalar_lea.sflag [#allocation5], %s3605
          %s3607 = sand.u32 %s195, 1
          %s3608 = smul.addr %s3607, 64
          %s3609 = scalar_lea.vmem [#allocation15], %s3608
          %3610 = dma.done %s3606, 1024
        $region88: #{decoder_block_forward.1} parent=83 // pred_fallthru
          _
      $region84: #{decoder_block_forward.1} parent=5 // pred_fallthru
        _
    $region6: #{decoder_block_forward.1} parent=1 // loop_footer
      %s28 = sadd.s32 1, %s24
    $region7: #{decoder_block_forward.1} parent=1 // loop_footer_branch
      %23 = sbr.rel target = $region3
    $region8: #{decoder_block_forward.1} parent=1 // loop_exit
      _
    %3611 = vsyncpa [#allocation4], 1
    %s3612 = scalar_lea.sflag [#allocation4], 1
    %3613 = vsyncpa %s3612, 1
    %3614 = vsyncpa [#allocation7], 1
    %s3615 = scalar_lea.sflag [#allocation7], 1
    %3616 = vsyncpa %s3615, 1
    %3617 = vsyncpa [#allocation10], 1
    %3618 = vsyncpa [#allocation13], 1
    %3619 = vsyncpa [#allocation5], 1
    %s3620 = scalar_lea.sflag [#allocation5], 1
    %3621 = vsyncpa %s3620, 1

</llo_original>
